<compile_context>
chip_gen: v7x
topology: tpu7x:2x2x1
jax: 0.10.0
libtpu: 0.0.40
codegen_flags: <defaults>
</compile_context>

<pallas_src>
import functools

import jax
import jax.numpy as jnp
from jax.experimental import pallas as pl
from jax.experimental.pallas import tpu as pltpu  # noqa: F401  (kept for TPU-specific tuning hooks)


ALARM_DIMS = [112, 100, 300, 200, 77, 2]
N_ALARM_LAYERS = len(ALARM_DIMS)


def _round_up(x, m=128):
    return ((x + m - 1) // m) * m


# ----------------------------------------------------------------------------
# Fused kernel: FC layer + all alarm MLPs + vote + mean, in one pallas_call.
# ----------------------------------------------------------------------------
def fused_dla_kernel(x_ref, fcw_ref, fcb_ref,
                     w1, b1, w2, b2, w3, b3, w4, b4, w5, b5, w6, b6,
                     logits_ref, sus_ref):
    # --- protected model final FC: (B, Din) @ (Din, Dp) + (1, Dp) ------------
    x = x_ref[...].astype(jnp.bfloat16)
    logits = jnp.dot(x, fcw_ref[...],
                     preferred_element_type=jnp.float32) + fcb_ref[...]
    logits_ref[...] = logits                          # (B, Dp) f32, lane-dense

    # --- all alarm MLPs, batched over the alarm axis --------------------------
    n_alarms = w1.shape[0]
    h = jnp.broadcast_to(logits.astype(jnp.bfloat16)[None],
                         (n_alarms,) + logits.shape)  # (A, B, Dp) bf16

    layers = ((w1, b1), (w2, b2), (w3, b3), (w4, b4), (w5, b5), (w6, b6))
    out = None
    for li, (w, b) in enumerate(layers):
        z = jnp.einsum('abd,ado->abo', h, w[...],
                       preferred_element_type=jnp.float32) + b[...]
        if li < len(layers) - 1:
            h = jnp.maximum(z, 0.0).astype(jnp.bfloat16)
        else:
            out = z                                   # (A, B, out_pad) f32

    # argmax over the 2 real classes; padded columns are exactly zero and are
    # never read. Strict '>' == first-max tie-breaking of argmax.
    vote = jnp.where(out[:, :, 1:2] > out[:, :, 0:1], 1.0, 0.0)  # (A, B, 1)
    sus_ref[...] = jnp.sum(vote, axis=0) * (1.0 / n_alarms)      # (B, 1)


# ----------------------------------------------------------------------------
# Parameter packing: zero-pad all dims to lane multiples, cast weights to bf16.
# ----------------------------------------------------------------------------
def prepare_packed_params(fc_w, fc_b, alarm_params):
    in_features, fc_out_dim = fc_w.shape
    d_pad = _round_up(fc_out_dim)

    fcw_p = (jnp.zeros((in_features, d_pad), jnp.float32)
             .at[:, :fc_out_dim].set(fc_w).astype(jnp.bfloat16))
    fcb_p = jnp.zeros((1, d_pad), jnp.float32).at[0, :fc_out_dim].set(fc_b)

    pdims = [d_pad] + [_round_up(d) for d in ALARM_DIMS]
    packed = []
    for li, (W, b) in enumerate(alarm_params):
        A, din, dout = W.shape
        dinp, doutp = pdims[li], pdims[li + 1]
        Wp = (jnp.zeros((A, dinp, doutp), jnp.float32)
              .at[:, :din, :dout].set(W).astype(jnp.bfloat16))
        bp = jnp.zeros((A, 1, doutp), jnp.float32).at[:, 0, :dout].set(b)
        packed.extend([Wp, bp])
    return fcw_p, fcb_p, tuple(packed)


@functools.partial(jax.jit, static_argnames=("fc_out_dim",))
def dla_protected_forward(x, fcw_p, fcb_p, packed_alarm, *, fc_out_dim):
    B = x.shape[0]
    x_flat = x.reshape(B, -1)                         # flatten NCHW -> (B, C*H*W)
    d_pad = fcw_p.shape[1]
    # TODO(synk): for production-size feature maps (large Din), add a K-tiled
    # grid for the FC (accumulator scratch, K axis "arbitrary") to stay within
    # v7x's smaller 64 MiB VMEM; at this toy size everything fits whole-array.
    logits_p, sus = pl.pallas_call(
        fused_dla_kernel,
        out_shape=(jax.ShapeDtypeStruct((B, d_pad), jnp.float32),
                   jax.ShapeDtypeStruct((B, 1), jnp.float32)),
    )(x_flat, fcw_p, fcb_p, *packed_alarm)
    return logits_p[:, :fc_out_dim], sus[:, 0]


# ----------------------------------------------------------------------------
# Deterministic synthetic parameters + pure-JAX reference
# ----------------------------------------------------------------------------
def make_params(key, in_features, fc_out_dim, n_alarms):
    keys = jax.random.split(key, 2 + 2 * N_ALARM_LAYERS)
    fc_w = jax.random.normal(keys[0], (in_features, fc_out_dim), jnp.float32) * 0.05
    fc_b = jax.random.normal(keys[1], (fc_out_dim,), jnp.float32) * 0.05

    alarm_params = []
    dims = [fc_out_dim] + ALARM_DIMS
    for li in range(N_ALARM_LAYERS):
        din, dout = dims[li], dims[li + 1]
        kw, kb = keys[2 + 2 * li], keys[3 + 2 * li]
        W = jax.random.normal(kw, (n_alarms, din, dout), jnp.float32) / jnp.sqrt(din)
        b = jax.random.normal(kb, (n_alarms, dout), jnp.float32) * 0.05
        alarm_params.append((W, b))
    return fc_w, fc_b, alarm_params


def reference_forward(x, fc_w, fc_b, alarm_params):
    """Pure-JAX reference using the same bf16-weight / f32-accumulate numerics."""
    bf = jnp.bfloat16
    B = x.shape[0]
    x_flat = x.reshape(B, -1)
    logits = jnp.dot(x_flat.astype(bf), fc_w.astype(bf),
                     preferred_element_type=jnp.float32) + fc_b
    n_alarms = alarm_params[0][0].shape[0]
    votes = []
    for a in range(n_alarms):
        h = logits
        for li, (W, b) in enumerate(alarm_params):
            h = jnp.dot(h.astype(bf), W[a].astype(bf),
                        preferred_element_type=jnp.float32) + b[a]
            if li < N_ALARM_LAYERS - 1:
                h = jnp.maximum(h, 0.0)
        votes.append(jnp.argmax(h, axis=1))
    votes = jnp.stack(votes, axis=1).astype(jnp.float32)
    return logits, jnp.mean(votes, axis=1)


if __name__ == "__main__":
    B, C, H, W = 2, 4, 16, 16
    fc_out_dim = 10
    n_alarms = 3

    key = jax.random.PRNGKey(0)
    kx, kp = jax.random.split(key)
    x = jax.random.normal(kx, (B, C, H, W), jnp.float32)
    fc_w, fc_b, alarm_params = make_params(kp, C * H * W, fc_out_dim, n_alarms)
    fcw_p, fcb_p, packed_alarm = prepare_packed_params(fc_w, fc_b, alarm_params)

    logits, sus = dla_protected_forward(x, fcw_p, fcb_p, packed_alarm,
                                        fc_out_dim=fc_out_dim)
    jax.block_until_ready((logits, sus))

    ref_logits, ref_sus = reference_forward(x, fc_w, fc_b, alarm_params)
    assert logits.shape == (B, fc_out_dim) and sus.shape == (B,)
    assert jnp.allclose(logits, ref_logits, atol=5e-3, rtol=5e-3), (
        float(jnp.max(jnp.abs(logits - ref_logits))))
    assert jnp.allclose(sus, ref_sus, atol=1e-6)

    print("KERNEL_OK")
</pallas_src>

<mosaic_0001>
module attributes {stable_mosaic.version = 11 : i64} {
  func.func @fused_dla_kernel(%arg0: memref<2x1024xf32, #tpu.memory_space<vmem>>, %arg1: memref<1024x128xbf16, #tpu.memory_space<vmem>>, %arg2: memref<1x128xf32, #tpu.memory_space<vmem>>, %arg3: memref<3x128x128xbf16, #tpu.memory_space<vmem>>, %arg4: memref<3x1x128xf32, #tpu.memory_space<vmem>>, %arg5: memref<3x128x128xbf16, #tpu.memory_space<vmem>>, %arg6: memref<3x1x128xf32, #tpu.memory_space<vmem>>, %arg7: memref<3x128x384xbf16, #tpu.memory_space<vmem>>, %arg8: memref<3x1x384xf32, #tpu.memory_space<vmem>>, %arg9: memref<3x384x256xbf16, #tpu.memory_space<vmem>>, %arg10: memref<3x1x256xf32, #tpu.memory_space<vmem>>, %arg11: memref<3x256x128xbf16, #tpu.memory_space<vmem>>, %arg12: memref<3x1x128xf32, #tpu.memory_space<vmem>>, %arg13: memref<3x128x128xbf16, #tpu.memory_space<vmem>>, %arg14: memref<3x1x128xf32, #tpu.memory_space<vmem>>, %arg15: memref<2x128xf32, #tpu.memory_space<vmem>>, %arg16: memref<2x1xf32, #tpu.memory_space<vmem>>) attributes {dimension_semantics = [], scalar_prefetch = 0 : i64, scratch_operands = 0 : i64, tpu.core_type = #tpu.core_type<tc>} {
    %c0 = arith.constant 0 : index
    %c0_0 = arith.constant 0 : index
    %0 = vector.load %arg0[%c0, %c0_0] : memref<2x1024xf32, #tpu.memory_space<vmem>>, vector<2x1024xf32>
    %1 = arith.truncf %0 : vector<2x1024xf32> to vector<2x1024xbf16>
    %c0_1 = arith.constant 0 : index
    %c0_2 = arith.constant 0 : index
    %2 = vector.load %arg1[%c0_1, %c0_2] : memref<1024x128xbf16, #tpu.memory_space<vmem>>, vector<1024x128xbf16>
    %cst = arith.constant dense<0.000000e+00> : vector<2x128xf32>
    %3 = tpu.matmul %1, %2, %cst {dimension_numbers = #tpu.dot_dimension_numbers<[1], [0], [0], [1], [0, 0, 1, 1], [], []>} : vector<2x1024xbf16>, vector<1024x128xbf16>, vector<2x128xf32> -> vector<2x128xf32>
    %c0_3 = arith.constant 0 : index
    %c0_4 = arith.constant 0 : index
    %4 = vector.load %arg2[%c0_3, %c0_4] : memref<1x128xf32, #tpu.memory_space<vmem>>, vector<1x128xf32>
    %5 = vector.broadcast %4 : vector<1x128xf32> to vector<2x128xf32>
    %6 = arith.addf %3, %5 : vector<2x128xf32>
    %c0_5 = arith.constant 0 : index
    %c0_6 = arith.constant 0 : index
    %7 = vector.load %arg15[%c0_5, %c0_6] : memref<2x128xf32, #tpu.memory_space<vmem>>, vector<2x128xf32>
    tpu.vector_store %arg15[%c0_5, %c0_6], %6 {strides = array<i32>} : memref<2x128xf32, #tpu.memory_space<vmem>>, vector<2x128xf32>,
    %8 = arith.truncf %6 : vector<2x128xf32> to vector<2x128xbf16>
    %9 = vector.shape_cast %8 : vector<2x128xbf16> to vector<1x2x128xbf16>
    %10 = vector.shape_cast %9 : vector<1x2x128xbf16> to vector<1x2x128xbf16>
    %11 = vector.broadcast %10 : vector<1x2x128xbf16> to vector<3x2x128xbf16>
    %c0_7 = arith.constant 0 : index
    %c0_8 = arith.constant 0 : index
    %c0_9 = arith.constant 0 : index
    %12 = vector.load %arg3[%c0_7, %c0_8, %c0_9] : memref<3x128x128xbf16, #tpu.memory_space<vmem>>, vector<3x128x128xbf16>
    "tpu.trace_start"() <{level = 10 : i32, message = "abd,ado->abo"}> : () -> ()
    %cst_10 = arith.constant dense<0.000000e+00> : vector<3x2x128xf32>
    %13 = tpu.matmul %11, %12, %cst_10 {dimension_numbers = #tpu.dot_dimension_numbers<[2], [1], [1], [2], [0, 0, 0, 1, 1, 2], [0], [0]>} : vector<3x2x128xbf16>, vector<3x128x128xbf16>, vector<3x2x128xf32> -> vector<3x2x128xf32>
    "tpu.trace_stop"() : () -> ()
    %c0_11 = arith.constant 0 : index
    %c0_12 = arith.constant 0 : index
    %c0_13 = arith.constant 0 : index
    %14 = vector.load %arg4[%c0_11, %c0_12, %c0_13] : memref<3x1x128xf32, #tpu.memory_space<vmem>>, vector<3x1x128xf32>
    %15 = vector.broadcast %14 : vector<3x1x128xf32> to vector<3x2x128xf32>
    %16 = arith.addf %13, %15 : vector<3x2x128xf32>
    %cst_14 = arith.constant 0.000000e+00 : f32
    %17 = vector.broadcast %cst_14 : f32 to vector<3x2x128xf32>
    %18 = arith.maximumf %16, %17 : vector<3x2x128xf32>
    %19 = arith.truncf %18 : vector<3x2x128xf32> to vector<3x2x128xbf16>
    %c0_15 = arith.constant 0 : index
    %c0_16 = arith.constant 0 : index
    %c0_17 = arith.constant 0 : index
    %20 = vector.load %arg5[%c0_15, %c0_16, %c0_17] : memref<3x128x128xbf16, #tpu.memory_space<vmem>>, vector<3x128x128xbf16>
    "tpu.trace_start"() <{level = 10 : i32, message = "abd,ado->abo"}> : () -> ()
    %cst_18 = arith.constant dense<0.000000e+00> : vector<3x2x128xf32>
    %21 = tpu.matmul %19, %20, %cst_18 {dimension_numbers = #tpu.dot_dimension_numbers<[2], [1], [1], [2], [0, 0, 0, 1, 1, 2], [0], [0]>} : vector<3x2x128xbf16>, vector<3x128x128xbf16>, vector<3x2x128xf32> -> vector<3x2x128xf32>
    "tpu.trace_stop"() : () -> ()
    %c0_19 = arith.constant 0 : index
    %c0_20 = arith.constant 0 : index
    %c0_21 = arith.constant 0 : index
    %22 = vector.load %arg6[%c0_19, %c0_20, %c0_21] : memref<3x1x128xf32, #tpu.memory_space<vmem>>, vector<3x1x128xf32>
    %23 = vector.broadcast %22 : vector<3x1x128xf32> to vector<3x2x128xf32>
    %24 = arith.addf %21, %23 : vector<3x2x128xf32>
    %cst_22 = arith.constant 0.000000e+00 : f32
    %25 = vector.broadcast %cst_22 : f32 to vector<3x2x128xf32>
    %26 = arith.maximumf %24, %25 : vector<3x2x128xf32>
    %27 = arith.truncf %26 : vector<3x2x128xf32> to vector<3x2x128xbf16>
    %c0_23 = arith.constant 0 : index
    %c0_24 = arith.constant 0 : index
    %c0_25 = arith.constant 0 : index
    %28 = vector.load %arg7[%c0_23, %c0_24, %c0_25] : memref<3x128x384xbf16, #tpu.memory_space<vmem>>, vector<3x128x384xbf16>
    "tpu.trace_start"() <{level = 10 : i32, message = "abd,ado->abo"}> : () -> ()
    %cst_26 = arith.constant dense<0.000000e+00> : vector<3x2x384xf32>
    %29 = tpu.matmul %27, %28, %cst_26 {dimension_numbers = #tpu.dot_dimension_numbers<[2], [1], [1], [2], [0, 0, 0, 1, 1, 2], [0], [0]>} : vector<3x2x128xbf16>, vector<3x128x384xbf16>, vector<3x2x384xf32> -> vector<3x2x384xf32>
    "tpu.trace_stop"() : () -> ()
    %c0_27 = arith.constant 0 : index
    %c0_28 = arith.constant 0 : index
    %c0_29 = arith.constant 0 : index
    %30 = vector.load %arg8[%c0_27, %c0_28, %c0_29] : memref<3x1x384xf32, #tpu.memory_space<vmem>>, vector<3x1x384xf32>
    %31 = vector.broadcast %30 : vector<3x1x384xf32> to vector<3x2x384xf32>
    %32 = arith.addf %29, %31 : vector<3x2x384xf32>
    %cst_30 = arith.constant 0.000000e+00 : f32
    %33 = vector.broadcast %cst_30 : f32 to vector<3x2x384xf32>
    %34 = arith.maximumf %32, %33 : vector<3x2x384xf32>
    %35 = arith.truncf %34 : vector<3x2x384xf32> to vector<3x2x384xbf16>
    %c0_31 = arith.constant 0 : index
    %c0_32 = arith.constant 0 : index
    %c0_33 = arith.constant 0 : index
    %36 = vector.load %arg9[%c0_31, %c0_32, %c0_33] : memref<3x384x256xbf16, #tpu.memory_space<vmem>>, vector<3x384x256xbf16>
    "tpu.trace_start"() <{level = 10 : i32, message = "abd,ado->abo"}> : () -> ()
    %cst_34 = arith.constant dense<0.000000e+00> : vector<3x2x256xf32>
    %37 = tpu.matmul %35, %36, %cst_34 {dimension_numbers = #tpu.dot_dimension_numbers<[2], [1], [1], [2], [0, 0, 0, 1, 1, 2], [0], [0]>} : vector<3x2x384xbf16>, vector<3x384x256xbf16>, vector<3x2x256xf32> -> vector<3x2x256xf32>
    "tpu.trace_stop"() : () -> ()
    %c0_35 = arith.constant 0 : index
    %c0_36 = arith.constant 0 : index
    %c0_37 = arith.constant 0 : index
    %38 = vector.load %arg10[%c0_35, %c0_36, %c0_37] : memref<3x1x256xf32, #tpu.memory_space<vmem>>, vector<3x1x256xf32>
    %39 = vector.broadcast %38 : vector<3x1x256xf32> to vector<3x2x256xf32>
    %40 = arith.addf %37, %39 : vector<3x2x256xf32>
    %cst_38 = arith.constant 0.000000e+00 : f32
    %41 = vector.broadcast %cst_38 : f32 to vector<3x2x256xf32>
    %42 = arith.maximumf %40, %41 : vector<3x2x256xf32>
    %43 = arith.truncf %42 : vector<3x2x256xf32> to vector<3x2x256xbf16>
    %c0_39 = arith.constant 0 : index
    %c0_40 = arith.constant 0 : index
    %c0_41 = arith.constant 0 : index
    %44 = vector.load %arg11[%c0_39, %c0_40, %c0_41] : memref<3x256x128xbf16, #tpu.memory_space<vmem>>, vector<3x256x128xbf16>
    "tpu.trace_start"() <{level = 10 : i32, message = "abd,ado->abo"}> : () -> ()
    %cst_42 = arith.constant dense<0.000000e+00> : vector<3x2x128xf32>
    %45 = tpu.matmul %43, %44, %cst_42 {dimension_numbers = #tpu.dot_dimension_numbers<[2], [1], [1], [2], [0, 0, 0, 1, 1, 2], [0], [0]>} : vector<3x2x256xbf16>, vector<3x256x128xbf16>, vector<3x2x128xf32> -> vector<3x2x128xf32>
    "tpu.trace_stop"() : () -> ()
    %c0_43 = arith.constant 0 : index
    %c0_44 = arith.constant 0 : index
    %c0_45 = arith.constant 0 : index
    %46 = vector.load %arg12[%c0_43, %c0_44, %c0_45] : memref<3x1x128xf32, #tpu.memory_space<vmem>>, vector<3x1x128xf32>
    %47 = vector.broadcast %46 : vector<3x1x128xf32> to vector<3x2x128xf32>
    %48 = arith.addf %45, %47 : vector<3x2x128xf32>
    %cst_46 = arith.constant 0.000000e+00 : f32
    %49 = vector.broadcast %cst_46 : f32 to vector<3x2x128xf32>
    %50 = arith.maximumf %48, %49 : vector<3x2x128xf32>
    %51 = arith.truncf %50 : vector<3x2x128xf32> to vector<3x2x128xbf16>
    %c0_47 = arith.constant 0 : index
    %c0_48 = arith.constant 0 : index
    %c0_49 = arith.constant 0 : index
    %52 = vector.load %arg13[%c0_47, %c0_48, %c0_49] : memref<3x128x128xbf16, #tpu.memory_space<vmem>>, vector<3x128x128xbf16>
    "tpu.trace_start"() <{level = 10 : i32, message = "abd,ado->abo"}> : () -> ()
    %cst_50 = arith.constant dense<0.000000e+00> : vector<3x2x128xf32>
    %53 = tpu.matmul %51, %52, %cst_50 {dimension_numbers = #tpu.dot_dimension_numbers<[2], [1], [1], [2], [0, 0, 0, 1, 1, 2], [0], [0]>} : vector<3x2x128xbf16>, vector<3x128x128xbf16>, vector<3x2x128xf32> -> vector<3x2x128xf32>
    "tpu.trace_stop"() : () -> ()
    %c0_51 = arith.constant 0 : index
    %c0_52 = arith.constant 0 : index
    %c0_53 = arith.constant 0 : index
    %54 = vector.load %arg14[%c0_51, %c0_52, %c0_53] : memref<3x1x128xf32, #tpu.memory_space<vmem>>, vector<3x1x128xf32>
    %55 = vector.broadcast %54 : vector<3x1x128xf32> to vector<3x2x128xf32>
    %56 = arith.addf %53, %55 : vector<3x2x128xf32>
    %57 = vector.extract_strided_slice %56 {offsets = [0, 0, 1], sizes = [3, 2, 1], strides = [1, 1, 1]} : vector<3x2x128xf32> to vector<3x2x1xf32>
    %58 = vector.extract_strided_slice %56 {offsets = [0, 0, 0], sizes = [3, 2, 1], strides = [1, 1, 1]} : vector<3x2x128xf32> to vector<3x2x1xf32>
    %59 = arith.cmpf ogt, %57, %58 : vector<3x2x1xf32>
    %cst_54 = arith.constant 1.000000e+00 : f32
    %cst_55 = arith.constant 0.000000e+00 : f32
    %60 = vector.broadcast %cst_54 : f32 to vector<3x2x1xf32>
    %61 = vector.broadcast %cst_55 : f32 to vector<3x2x1xf32>
    %62 = arith.select %59, %60, %61 : vector<3x2x1xi1>, vector<3x2x1xf32>
    %cst_56 = arith.constant dense<0.000000e+00> : vector<2x1xf32>
    %63 = vector.multi_reduction <add>, %62, %cst_56 [0] : vector<3x2x1xf32> to vector<2x1xf32>
    %cst_57 = arith.constant 0.333333343 : f32
    %64 = vector.broadcast %cst_57 : f32 to vector<2x1xf32>
    %65 = arith.mulf %63, %64 : vector<2x1xf32>
    %c0_58 = arith.constant 0 : index
    %c0_59 = arith.constant 0 : index
    %66 = vector.load %arg16[%c0_58, %c0_59] : memref<2x1xf32, #tpu.memory_space<vmem>>, vector<2x1xf32>
    tpu.vector_store %arg16[%c0_58, %c0_59], %65 {strides = array<i32>} : memref<2x1xf32, #tpu.memory_space<vmem>>, vector<2x1xf32>,
    return
  }
}

</mosaic_0001>

<llo_original>
// kernel: dla_protected_forward.1
$region0: #{dla_protected_forward.1}
  #allocation0 [shape = 'u32[]', space=smem, size = 0x4, offset = 0x4, fixed_abs, tag = 'smem constant byte address 0x4 - core index']
  #allocation1 [shape = 'u32[144,128]{1,0:T(1,128)}', space=vmem, size = 0x12000, scoped, tag = 'internal scratch']
  %s0 = inlined_call_operand.vmem [shape: f32[2,1024], index: 0, kind: input, shape index: {}]
  %s1 = inlined_call_operand.hbm [shape: bf16[1024,128], index: 1, kind: input, shape index: {}]
  %s2 = inlined_call_operand.vmem [shape: f32[1,128], index: 2, kind: input, shape index: {}]
  %s3 = inlined_call_operand.hbm [shape: bf16[3,128,128], index: 3, kind: input, shape index: {}]
  %s4 = inlined_call_operand.hbm [shape: f32[3,1,128], index: 4, kind: input, shape index: {}]
  %s5 = inlined_call_operand.hbm [shape: bf16[3,128,128], index: 5, kind: input, shape index: {}]
  %s6 = inlined_call_operand.hbm [shape: f32[3,1,128], index: 6, kind: input, shape index: {}]
  %s7 = inlined_call_operand.hbm [shape: bf16[3,128,384], index: 7, kind: input, shape index: {}]
  %s8 = inlined_call_operand.hbm [shape: f32[3,1,384], index: 8, kind: input, shape index: {}]
  %s9 = inlined_call_operand.hbm [shape: bf16[3,384,256], index: 9, kind: input, shape index: {}]
  %s10 = inlined_call_operand.hbm [shape: f32[3,1,256], index: 10, kind: input, shape index: {}]
  %s11 = inlined_call_operand.hbm [shape: bf16[3,256,128], index: 11, kind: input, shape index: {}]
  %s12 = inlined_call_operand.hbm [shape: f32[3,1,128], index: 12, kind: input, shape index: {}]
  %s13 = inlined_call_operand.vmem [shape: bf16[3,128,128], index: 13, kind: input, shape index: {}]
  %s14 = inlined_call_operand.vmem [shape: f32[3,1,128], index: 14, kind: input, shape index: {}]
  %s15 = inlined_call_operand.hbm [shape: f32[2,128], index: 15, kind: output, shape index: {0}]
  %s16 = inlined_call_operand.vmem [shape: f32[2,1], index: 16, kind: output, shape index: {1}]
  %17 = xla_tuple %s15, %s16
  %s18 = sld [smem:[#allocation0]]
  $region122: #{dla_protected_forward.1} parent=0
    _
  %s20 = ssub.s32 1, %s18
  %s21 = scalar_select 0, %s20, %s18
  $region1: #{dla_protected_forward.1} parent=0
    #allocation2 [shape = 'u8[262144]{0}', space=vmem, size = 0x40000, scoped, tag = 'input window, operand 1, single buffered']
    #allocation3 [shape = 's32[1]{0}', space=sflag, size = 0x4, scoped, tag = 'scoped memory for dla_protected_forward.1']
    #allocation4 [shape = 's32[1]{0}', space=sflag, size = 0x4, scoped, tag = 'scoped memory for dla_protected_forward.1']
    #allocation5 [shape = 'u8[98304]{0}', space=vmem, size = 0x18000, scoped, tag = 'input window, operand 3, single buffered']
    #allocation6 [shape = 's32[1]{0}', space=sflag, size = 0x4, scoped, tag = 'scoped memory for dla_protected_forward.1']
    #allocation7 [shape = 'u8[1536]{0}', space=vmem, size = 0x800, scoped, tag = 'input window, operand 4, single buffered']
    #allocation8 [shape = 'u8[98304]{0}', space=vmem, size = 0x18000, scoped, tag = 'input window, operand 5, single buffered']
    #allocation9 [shape = 's32[1]{0}', space=sflag, size = 0x4, scoped, tag = 'scoped memory for dla_protected_forward.1']
    #allocation10 [shape = 'u8[1536]{0}', space=vmem, size = 0x800, scoped, tag = 'input window, operand 6, single buffered']
    #allocation11 [shape = 'u8[294912]{0}', space=vmem, size = 0x48000, scoped, tag = 'input window, operand 7, single buffered']
    #allocation12 [shape = 's32[1]{0}', space=sflag, size = 0x4, scoped, tag = 'scoped memory for dla_protected_forward.1']
    #allocation13 [shape = 'u8[4608]{0}', space=vmem, size = 0x1400, scoped, tag = 'input window, operand 8, single buffered']
    #allocation14 [shape = 'u8[589824]{0}', space=vmem, size = 0x90000, scoped, tag = 'input window, operand 9, single buffered']
    #allocation15 [shape = 's32[1]{0}', space=sflag, size = 0x4, scoped, tag = 'scoped memory for dla_protected_forward.1']
    #allocation16 [shape = 'u8[3072]{0}', space=vmem, size = 0xc00, scoped, tag = 'input window, operand 10, single buffered']
    #allocation17 [shape = 'u8[196608]{0}', space=vmem, size = 0x30000, scoped, tag = 'input window, operand 11, single buffered']
    #allocation18 [shape = 's32[1]{0}', space=sflag, size = 0x4, scoped, tag = 'scoped memory for dla_protected_forward.1']
    #allocation19 [shape = 'u8[1536]{0}', space=vmem, size = 0x800, scoped, tag = 'input window, operand 12, single buffered']
    #allocation20 [shape = 'u8[1024]{0}', space=vmem, size = 0x400, scoped, tag = 'output window, operand 0, single buffered']
    %22 = vsyncpa [#allocation3], 0
    %23 = vsyncpa [#allocation6], 0
    %24 = vsyncpa [#allocation9], 0
    %25 = vsyncpa [#allocation12], 0
    %26 = vsyncpa [#allocation15], 0
    %27 = vsyncpa [#allocation18], 0
    %28 = vsyncpa [#allocation4], 0
    // Predicated region
    $region2: #{dla_protected_forward.1} parent=1 // pred_check
      _
    $region3: #{dla_protected_forward.1} parent=1 // pred_check_branch
      %30 = sbr.rel (0) target = $region5
    $region4: #{dla_protected_forward.1} parent=1 // pred_region
      _
    $region5: #{dla_protected_forward.1} parent=1 // pred_fallthru
      _
    // Predicated region
    $region6: #{dla_protected_forward.1} parent=1 // pred_check
      _
    $region7: #{dla_protected_forward.1} parent=1 // pred_check_branch
      %32 = sbr.rel (0) target = $region9
    $region8: #{dla_protected_forward.1} parent=1 // pred_region
      %s34 = ssub.s32 8192, 8192
      %35 = vsyncadd [#allocation3], %s34
      %s36 = sshll.u32 [#allocation2], 4
      %s37 = int_to_ptr.vmem [resolvable:$true] %s36
      %42 = dma.hbm_to_vmem [thread:$0]  %s1, 8192, %s37, [#allocation3], 64, 64, 4
    $region9: #{dla_protected_forward.1} parent=1 // pred_fallthru
      _
    // Predicated region
    $region10: #{dla_protected_forward.1} parent=1 // pred_check
      _
    $region11: #{dla_protected_forward.1} parent=1 // pred_check_branch
      %44 = sbr.rel (0) target = $region13
    $region12: #{dla_protected_forward.1} parent=1 // pred_region
      _
    $region13: #{dla_protected_forward.1} parent=1 // pred_fallthru
      _
    // Predicated region
    $region14: #{dla_protected_forward.1} parent=1 // pred_check
      _
    $region15: #{dla_protected_forward.1} parent=1 // pred_check_branch
      %46 = sbr.rel (0) target = $region17
    $region16: #{dla_protected_forward.1} parent=1 // pred_region
      %s48 = ssub.s32 3072, 3072
      %49 = vsyncadd [#allocation6], %s48
      %s50 = sshll.u32 [#allocation5], 4
      %s51 = int_to_ptr.vmem [resolvable:$true] %s50
      %56 = dma.hbm_to_vmem [thread:$0]  %s3, 3072, %s51, [#allocation6], 64, 64, 4
    $region17: #{dla_protected_forward.1} parent=1 // pred_fallthru
      _
    // Predicated region
    $region18: #{dla_protected_forward.1} parent=1 // pred_check
      _
    $region19: #{dla_protected_forward.1} parent=1 // pred_check_branch
      %58 = sbr.rel (0) target = $region21
    $region20: #{dla_protected_forward.1} parent=1 // pred_region
      %s60 = ssub.s32 48, 48
      %61 = vsyncadd [#allocation6], %s60
      %s62 = sshll.u32 [#allocation7], 4
      %s63 = int_to_ptr.vmem [resolvable:$true] %s62
      %68 = dma.hbm_to_vmem [thread:$0]  %s4, 48, %s63, [#allocation6], 16, 16, 1
    $region21: #{dla_protected_forward.1} parent=1 // pred_fallthru
      _
    // Predicated region
    $region22: #{dla_protected_forward.1} parent=1 // pred_check
      _
    $region23: #{dla_protected_forward.1} parent=1 // pred_check_branch
      %70 = sbr.rel (0) target = $region25
    $region24: #{dla_protected_forward.1} parent=1 // pred_region
      %s72 = ssub.s32 3072, 3072
      %73 = vsyncadd [#allocation9], %s72
      %s74 = sshll.u32 [#allocation8], 4
      %s75 = int_to_ptr.vmem [resolvable:$true] %s74
      %80 = dma.hbm_to_vmem [thread:$0]  %s5, 3072, %s75, [#allocation9], 64, 64, 4
    $region25: #{dla_protected_forward.1} parent=1 // pred_fallthru
      _
    // Predicated region
    $region26: #{dla_protected_forward.1} parent=1 // pred_check
      _
    $region27: #{dla_protected_forward.1} parent=1 // pred_check_branch
      %82 = sbr.rel (0) target = $region29
    $region28: #{dla_protected_forward.1} parent=1 // pred_region
      %s84 = ssub.s32 48, 48
      %85 = vsyncadd [#allocation9], %s84
      %s86 = sshll.u32 [#allocation10], 4
      %s87 = int_to_ptr.vmem [resolvable:$true] %s86
      %92 = dma.hbm_to_vmem [thread:$0]  %s6, 48, %s87, [#allocation9], 16, 16, 1
    $region29: #{dla_protected_forward.1} parent=1 // pred_fallthru
      _
    // Predicated region
    $region30: #{dla_protected_forward.1} parent=1 // pred_check
      _
    $region31: #{dla_protected_forward.1} parent=1 // pred_check_branch
      %94 = sbr.rel (0) target = $region33
    $region32: #{dla_protected_forward.1} parent=1 // pred_region
      %s96 = ssub.s32 9216, 9216
      %97 = vsyncadd [#allocation12], %s96
      %s98 = sshll.u32 [#allocation11], 4
      %s99 = int_to_ptr.vmem [resolvable:$true] %s98
      %104 = dma.hbm_to_vmem [thread:$0]  %s7, 9216, %s99, [#allocation12], 192, 192, 12
    $region33: #{dla_protected_forward.1} parent=1 // pred_fallthru
      _
    // Predicated region
    $region34: #{dla_protected_forward.1} parent=1 // pred_check
      _
    $region35: #{dla_protected_forward.1} parent=1 // pred_check_branch
      %106 = sbr.rel (0) target = $region37
    $region36: #{dla_protected_forward.1} parent=1 // pred_region
      %s108 = ssub.s32 144, 144
      %109 = vsyncadd [#allocation12], %s108
      %s110 = sshll.u32 [#allocation13], 4
      %s111 = int_to_ptr.vmem [resolvable:$true] %s110
      %116 = dma.hbm_to_vmem [thread:$0]  %s8, 144, %s111, [#allocation12], 48, 48, 3
    $region37: #{dla_protected_forward.1} parent=1 // pred_fallthru
      _
    // Predicated region
    $region38: #{dla_protected_forward.1} parent=1 // pred_check
      _
    $region39: #{dla_protected_forward.1} parent=1 // pred_check_branch
      %118 = sbr.rel (0) target = $region41
    $region40: #{dla_protected_forward.1} parent=1 // pred_region
      %s120 = ssub.s32 18432, 18432
      %121 = vsyncadd [#allocation15], %s120
      %s122 = sshll.u32 [#allocation14], 4
      %s123 = int_to_ptr.vmem [resolvable:$true] %s122
      %128 = dma.hbm_to_vmem [thread:$0]  %s9, 18432, %s123, [#allocation15], 128, 128, 8
    $region41: #{dla_protected_forward.1} parent=1 // pred_fallthru
      _
    // Predicated region
    $region42: #{dla_protected_forward.1} parent=1 // pred_check
      _
    $region43: #{dla_protected_forward.1} parent=1 // pred_check_branch
      %130 = sbr.rel (0) target = $region45
    $region44: #{dla_protected_forward.1} parent=1 // pred_region
      %s132 = ssub.s32 96, 96
      %133 = vsyncadd [#allocation15], %s132
      %s134 = sshll.u32 [#allocation16], 4
      %s135 = int_to_ptr.vmem [resolvable:$true] %s134
      %140 = dma.hbm_to_vmem [thread:$0]  %s10, 96, %s135, [#allocation15], 32, 32, 2
    $region45: #{dla_protected_forward.1} parent=1 // pred_fallthru
      _
    // Predicated region
    $region46: #{dla_protected_forward.1} parent=1 // pred_check
      _
    $region47: #{dla_protected_forward.1} parent=1 // pred_check_branch
      %142 = sbr.rel (0) target = $region49
    $region48: #{dla_protected_forward.1} parent=1 // pred_region
      %s144 = ssub.s32 6144, 6144
      %145 = vsyncadd [#allocation18], %s144
      %s146 = sshll.u32 [#allocation17], 4
      %s147 = int_to_ptr.vmem [resolvable:$true] %s146
      %152 = dma.hbm_to_vmem [thread:$0]  %s11, 6144, %s147, [#allocation18], 64, 64, 4
    $region49: #{dla_protected_forward.1} parent=1 // pred_fallthru
      _
    // Predicated region
    $region50: #{dla_protected_forward.1} parent=1 // pred_check
      _
    $region51: #{dla_protected_forward.1} parent=1 // pred_check_branch
      %154 = sbr.rel (0) target = $region53
    $region52: #{dla_protected_forward.1} parent=1 // pred_region
      %s156 = ssub.s32 48, 48
      %157 = vsyncadd [#allocation18], %s156
      %s158 = sshll.u32 [#allocation19], 4
      %s159 = int_to_ptr.vmem [resolvable:$true] %s158
      %164 = dma.hbm_to_vmem [thread:$0]  %s12, 48, %s159, [#allocation18], 16, 16, 1
    $region53: #{dla_protected_forward.1} parent=1 // pred_fallthru
      _
    // Predicated region
    $region54: #{dla_protected_forward.1} parent=1 // pred_check
      _
    $region55: #{dla_protected_forward.1} parent=1 // pred_check_branch
      %166 = sbr.rel (0) target = $region57
    $region56: #{dla_protected_forward.1} parent=1 // pred_region
      _
    $region57: #{dla_protected_forward.1} parent=1 // pred_fallthru
      _
    // Predicated region
    $region58: #{dla_protected_forward.1} parent=1 // pred_check
      _
    $region59: #{dla_protected_forward.1} parent=1 // pred_check_branch
      %168 = sbr.rel (0) target = $region61
    $region60: #{dla_protected_forward.1} parent=1 // pred_region
      _
    $region61: #{dla_protected_forward.1} parent=1 // pred_fallthru
      _
    // Predicated region
    $region62: #{dla_protected_forward.1} parent=1 // pred_check
      _
    $region63: #{dla_protected_forward.1} parent=1 // pred_check_branch
      %170 = sbr.rel (0) target = $region65
    $region64: #{dla_protected_forward.1} parent=1 // pred_region
      %171 = dma.done [#allocation3], 8192
    $region65: #{dla_protected_forward.1} parent=1 // pred_fallthru
      _
    // Predicated region
    $region66: #{dla_protected_forward.1} parent=1 // pred_check
      _
    $region67: #{dla_protected_forward.1} parent=1 // pred_check_branch
      %173 = sbr.rel (0) target = $region69
    $region68: #{dla_protected_forward.1} parent=1 // pred_region
      %174 = dma.done [#allocation6], 3072
    $region69: #{dla_protected_forward.1} parent=1 // pred_fallthru
      _
    // Predicated region
    $region70: #{dla_protected_forward.1} parent=1 // pred_check
      _
    $region71: #{dla_protected_forward.1} parent=1 // pred_check_branch
      %176 = sbr.rel (0) target = $region73
    $region72: #{dla_protected_forward.1} parent=1 // pred_region
      %177 = dma.done [#allocation6], 48
    $region73: #{dla_protected_forward.1} parent=1 // pred_fallthru
      _
    // Predicated region
    $region74: #{dla_protected_forward.1} parent=1 // pred_check
      _
    $region75: #{dla_protected_forward.1} parent=1 // pred_check_branch
      %179 = sbr.rel (0) target = $region77
    $region76: #{dla_protected_forward.1} parent=1 // pred_region
      %180 = dma.done [#allocation9], 3072
    $region77: #{dla_protected_forward.1} parent=1 // pred_fallthru
      _
    // Predicated region
    $region78: #{dla_protected_forward.1} parent=1 // pred_check
      _
    $region79: #{dla_protected_forward.1} parent=1 // pred_check_branch
      %182 = sbr.rel (0) target = $region81
    $region80: #{dla_protected_forward.1} parent=1 // pred_region
      %183 = dma.done [#allocation9], 48
    $region81: #{dla_protected_forward.1} parent=1 // pred_fallthru
      _
    // Predicated region
    $region82: #{dla_protected_forward.1} parent=1 // pred_check
      _
    $region83: #{dla_protected_forward.1} parent=1 // pred_check_branch
      %185 = sbr.rel (0) target = $region85
    $region84: #{dla_protected_forward.1} parent=1 // pred_region
      %186 = dma.done [#allocation12], 9216
    $region85: #{dla_protected_forward.1} parent=1 // pred_fallthru
      _
    // Predicated region
    $region86: #{dla_protected_forward.1} parent=1 // pred_check
      _
    $region87: #{dla_protected_forward.1} parent=1 // pred_check_branch
      %188 = sbr.rel (0) target = $region89
    $region88: #{dla_protected_forward.1} parent=1 // pred_region
      %189 = dma.done [#allocation12], 144
    $region89: #{dla_protected_forward.1} parent=1 // pred_fallthru
      _
    // Predicated region
    $region90: #{dla_protected_forward.1} parent=1 // pred_check
      _
    $region91: #{dla_protected_forward.1} parent=1 // pred_check_branch
      %191 = sbr.rel (0) target = $region93
    $region92: #{dla_protected_forward.1} parent=1 // pred_region
      %192 = dma.done [#allocation15], 18432
    $region93: #{dla_protected_forward.1} parent=1 // pred_fallthru
      _
    // Predicated region
    $region94: #{dla_protected_forward.1} parent=1 // pred_check
      _
    $region95: #{dla_protected_forward.1} parent=1 // pred_check_branch
      %194 = sbr.rel (0) target = $region97
    $region96: #{dla_protected_forward.1} parent=1 // pred_region
      %195 = dma.done [#allocation15], 96
    $region97: #{dla_protected_forward.1} parent=1 // pred_fallthru
      _
    // Predicated region
    $region98: #{dla_protected_forward.1} parent=1 // pred_check
      _
    $region99: #{dla_protected_forward.1} parent=1 // pred_check_branch
      %197 = sbr.rel (0) target = $region101
    $region100: #{dla_protected_forward.1} parent=1 // pred_region
      %198 = dma.done [#allocation18], 6144
    $region101: #{dla_protected_forward.1} parent=1 // pred_fallthru
      _
    // Predicated region
    $region102: #{dla_protected_forward.1} parent=1 // pred_check
      _
    $region103: #{dla_protected_forward.1} parent=1 // pred_check_branch
      %200 = sbr.rel (0) target = $region105
    $region104: #{dla_protected_forward.1} parent=1 // pred_region
      %201 = dma.done [#allocation18], 48
    $region105: #{dla_protected_forward.1} parent=1 // pred_fallthru
      _
    %v203 = vld [vmem:[%s0] sm:$0xff]
    %v204 = vld [vmem:[%s0 + $0x8] sm:$0xff]
    %v207 = vcombine.high %v203, %v203
    %v209 = vunpack.c.l.s4 1983009808
    %v210 = vunpack.c.0.s8 %v209
    %v211 = vlaneseq
    %v212 = vshrl.u32 %v211, 7
    %v213 = vsub.s32 %v210, %v212
    %v214 = vrot.slane %v203, %v213
    %v216 = vunpack.c.l.s4 1983009808
    %v217 = vunpack.c.0.s8 %v216
    %v218 = vlaneseq
    %v219 = vshrl.u32 %v218, 7
    %v220 = vsub.s32 %v217, %v219
    %v221 = vrot.slane %v207, %v220
    %v222 = vcombine.high %v214, %v214
    %v223 = vcombine.high %v221, %v221
    %v224 = vcombine.high %v204, %v204
    %v226 = vunpack.c.l.s4 1983009808
    %v227 = vunpack.c.0.s8 %v226
    %v228 = vlaneseq
    %v229 = vshrl.u32 %v228, 7
    %v230 = vsub.s32 %v227, %v229
    %v231 = vrot.slane %v204, %v230
    %v233 = vunpack.c.l.s4 1983009808
    %v234 = vunpack.c.0.s8 %v233
    %v235 = vlaneseq
    %v236 = vshrl.u32 %v235, 7
    %v237 = vsub.s32 %v234, %v236
    %v238 = vrot.slane %v224, %v237
    %v239 = vcombine.high %v231, %v231
    %v240 = vcombine.high %v238, %v238
    %v249 = vpack.c.bf16 %v214, %v214
    %v250 = vpack.c.bf16 %v222, %v222
    %v251 = vpack.c.bf16 %v221, %v221
    %v252 = vpack.c.bf16 %v223, %v223
    %v253 = vpack.c.bf16 %v231, %v231
    %v254 = vpack.c.bf16 %v239, %v239
    %v255 = vpack.c.bf16 %v238, %v238
    %v256 = vpack.c.bf16 %v240, %v240
    %v257 = vld [vmem:[#allocation2] sm:$0xf]
    %v258 = vld [vmem:[#allocation2 + $0x4] sm:$0xf]
    %v259 = vld [vmem:[#allocation2 + $0x8] sm:$0xf]
    %v260 = vld [vmem:[#allocation2 + $0xc] sm:$0xf]
    %v261 = vld [vmem:[#allocation2 + $0x10] sm:$0xf]
    %v262 = vld [vmem:[#allocation2 + $0x14] sm:$0xf]
    %v263 = vld [vmem:[#allocation2 + $0x18] sm:$0xf]
    %v264 = vld [vmem:[#allocation2 + $0x1c] sm:$0xf]
    %v265 = vld [vmem:[#allocation2 + $0x20] sm:$0xf]
    %v266 = vld [vmem:[#allocation2 + $0x24] sm:$0xf]
    %v267 = vld [vmem:[#allocation2 + $0x28] sm:$0xf]
    %v268 = vld [vmem:[#allocation2 + $0x2c] sm:$0xf]
    %v269 = vld [vmem:[#allocation2 + $0x30] sm:$0xf]
    %v270 = vld [vmem:[#allocation2 + $0x34] sm:$0xf]
    %v271 = vld [vmem:[#allocation2 + $0x38] sm:$0xf]
    %v272 = vld [vmem:[#allocation2 + $0x3c] sm:$0xf]
    %v273 = vld [vmem:[#allocation2 + $0x40] sm:$0xf]
    %v274 = vld [vmem:[#allocation2 + $0x44] sm:$0xf]
    %v275 = vld [vmem:[#allocation2 + $0x48] sm:$0xf]
    %v276 = vld [vmem:[#allocation2 + $0x4c] sm:$0xf]
    %v277 = vld [vmem:[#allocation2 + $0x50] sm:$0xf]
    %v278 = vld [vmem:[#allocation2 + $0x54] sm:$0xf]
    %v279 = vld [vmem:[#allocation2 + $0x58] sm:$0xf]
    %v280 = vld [vmem:[#allocation2 + $0x5c] sm:$0xf]
    %v281 = vld [vmem:[#allocation2 + $0x60] sm:$0xf]
    %v282 = vld [vmem:[#allocation2 + $0x64] sm:$0xf]
    %v283 = vld [vmem:[#allocation2 + $0x68] sm:$0xf]
    %v284 = vld [vmem:[#allocation2 + $0x6c] sm:$0xf]
    %v285 = vld [vmem:[#allocation2 + $0x70] sm:$0xf]
    %v286 = vld [vmem:[#allocation2 + $0x74] sm:$0xf]
    %v287 = vld [vmem:[#allocation2 + $0x78] sm:$0xf]
    %v288 = vld [vmem:[#allocation2 + $0x7c] sm:$0xf]
    %v289 = vld [vmem:[#allocation2 + $0x80] sm:$0xf]
    %v290 = vld [vmem:[#allocation2 + $0x84] sm:$0xf]
    %v291 = vld [vmem:[#allocation2 + $0x88] sm:$0xf]
    %v292 = vld [vmem:[#allocation2 + $0x8c] sm:$0xf]
    %v293 = vld [vmem:[#allocation2 + $0x90] sm:$0xf]
    %v294 = vld [vmem:[#allocation2 + $0x94] sm:$0xf]
    %v295 = vld [vmem:[#allocation2 + $0x98] sm:$0xf]
    %v296 = vld [vmem:[#allocation2 + $0x9c] sm:$0xf]
    %v297 = vld [vmem:[#allocation2 + $0xa0] sm:$0xf]
    %v298 = vld [vmem:[#allocation2 + $0xa4] sm:$0xf]
    %v299 = vld [vmem:[#allocation2 + $0xa8] sm:$0xf]
    %v300 = vld [vmem:[#allocation2 + $0xac] sm:$0xf]
    %v301 = vld [vmem:[#allocation2 + $0xb0] sm:$0xf]
    %v302 = vld [vmem:[#allocation2 + $0xb4] sm:$0xf]
    %v303 = vld [vmem:[#allocation2 + $0xb8] sm:$0xf]
    %v304 = vld [vmem:[#allocation2 + $0xbc] sm:$0xf]
    %v305 = vld [vmem:[#allocation2 + $0xc0] sm:$0xf]
    %v306 = vld [vmem:[#allocation2 + $0xc4] sm:$0xf]
    %v307 = vld [vmem:[#allocation2 + $0xc8] sm:$0xf]
    %v308 = vld [vmem:[#allocation2 + $0xcc] sm:$0xf]
    %v309 = vld [vmem:[#allocation2 + $0xd0] sm:$0xf]
    %v310 = vld [vmem:[#allocation2 + $0xd4] sm:$0xf]
    %v311 = vld [vmem:[#allocation2 + $0xd8] sm:$0xf]
    %v312 = vld [vmem:[#allocation2 + $0xdc] sm:$0xf]
    %v313 = vld [vmem:[#allocation2 + $0xe0] sm:$0xf]
    %v314 = vld [vmem:[#allocation2 + $0xe4] sm:$0xf]
    %v315 = vld [vmem:[#allocation2 + $0xe8] sm:$0xf]
    %v316 = vld [vmem:[#allocation2 + $0xec] sm:$0xf]
    %v317 = vld [vmem:[#allocation2 + $0xf0] sm:$0xf]
    %v318 = vld [vmem:[#allocation2 + $0xf4] sm:$0xf]
    %v319 = vld [vmem:[#allocation2 + $0xf8] sm:$0xf]
    %v320 = vld [vmem:[#allocation2 + $0xfc] sm:$0xf]
    %v321 = vld [vmem:[#allocation2 + $0x100] sm:$0xf]
    %v322 = vld [vmem:[#allocation2 + $0x104] sm:$0xf]
    %v323 = vld [vmem:[#allocation2 + $0x108] sm:$0xf]
    %v324 = vld [vmem:[#allocation2 + $0x10c] sm:$0xf]
    %v325 = vld [vmem:[#allocation2 + $0x110] sm:$0xf]
    %v326 = vld [vmem:[#allocation2 + $0x114] sm:$0xf]
    %v327 = vld [vmem:[#allocation2 + $0x118] sm:$0xf]
    %v328 = vld [vmem:[#allocation2 + $0x11c] sm:$0xf]
    %v329 = vld [vmem:[#allocation2 + $0x120] sm:$0xf]
    %v330 = vld [vmem:[#allocation2 + $0x124] sm:$0xf]
    %v331 = vld [vmem:[#allocation2 + $0x128] sm:$0xf]
    %v332 = vld [vmem:[#allocation2 + $0x12c] sm:$0xf]
    %v333 = vld [vmem:[#allocation2 + $0x130] sm:$0xf]
    %v334 = vld [vmem:[#allocation2 + $0x134] sm:$0xf]
    %v335 = vld [vmem:[#allocation2 + $0x138] sm:$0xf]
    %v336 = vld [vmem:[#allocation2 + $0x13c] sm:$0xf]
    %v337 = vld [vmem:[#allocation2 + $0x140] sm:$0xf]
    %v338 = vld [vmem:[#allocation2 + $0x144] sm:$0xf]
    %v339 = vld [vmem:[#allocation2 + $0x148] sm:$0xf]
    %v340 = vld [vmem:[#allocation2 + $0x14c] sm:$0xf]
    %v341 = vld [vmem:[#allocation2 + $0x150] sm:$0xf]
    %v342 = vld [vmem:[#allocation2 + $0x154] sm:$0xf]
    %v343 = vld [vmem:[#allocation2 + $0x158] sm:$0xf]
    %v344 = vld [vmem:[#allocation2 + $0x15c] sm:$0xf]
    %v345 = vld [vmem:[#allocation2 + $0x160] sm:$0xf]
    %v346 = vld [vmem:[#allocation2 + $0x164] sm:$0xf]
    %v347 = vld [vmem:[#allocation2 + $0x168] sm:$0xf]
    %v348 = vld [vmem:[#allocation2 + $0x16c] sm:$0xf]
    %v349 = vld [vmem:[#allocation2 + $0x170] sm:$0xf]
    %v350 = vld [vmem:[#allocation2 + $0x174] sm:$0xf]
    %v351 = vld [vmem:[#allocation2 + $0x178] sm:$0xf]
    %v352 = vld [vmem:[#allocation2 + $0x17c] sm:$0xf]
    %v353 = vld [vmem:[#allocation2 + $0x180] sm:$0xf]
    %v354 = vld [vmem:[#allocation2 + $0x184] sm:$0xf]
    %v355 = vld [vmem:[#allocation2 + $0x188] sm:$0xf]
    %v356 = vld [vmem:[#allocation2 + $0x18c] sm:$0xf]
    %v357 = vld [vmem:[#allocation2 + $0x190] sm:$0xf]
    %v358 = vld [vmem:[#allocation2 + $0x194] sm:$0xf]
    %v359 = vld [vmem:[#allocation2 + $0x198] sm:$0xf]
    %v360 = vld [vmem:[#allocation2 + $0x19c] sm:$0xf]
    %v361 = vld [vmem:[#allocation2 + $0x1a0] sm:$0xf]
    %v362 = vld [vmem:[#allocation2 + $0x1a4] sm:$0xf]
    %v363 = vld [vmem:[#allocation2 + $0x1a8] sm:$0xf]
    %v364 = vld [vmem:[#allocation2 + $0x1ac] sm:$0xf]
    %v365 = vld [vmem:[#allocation2 + $0x1b0] sm:$0xf]
    %v366 = vld [vmem:[#allocation2 + $0x1b4] sm:$0xf]
    %v367 = vld [vmem:[#allocation2 + $0x1b8] sm:$0xf]
    %v368 = vld [vmem:[#allocation2 + $0x1bc] sm:$0xf]
    %v369 = vld [vmem:[#allocation2 + $0x1c0] sm:$0xf]
    %v370 = vld [vmem:[#allocation2 + $0x1c4] sm:$0xf]
    %v371 = vld [vmem:[#allocation2 + $0x1c8] sm:$0xf]
    %v372 = vld [vmem:[#allocation2 + $0x1cc] sm:$0xf]
    %v373 = vld [vmem:[#allocation2 + $0x1d0] sm:$0xf]
    %v374 = vld [vmem:[#allocation2 + $0x1d4] sm:$0xf]
    %v375 = vld [vmem:[#allocation2 + $0x1d8] sm:$0xf]
    %v376 = vld [vmem:[#allocation2 + $0x1dc] sm:$0xf]
    %v377 = vld [vmem:[#allocation2 + $0x1e0] sm:$0xf]
    %v378 = vld [vmem:[#allocation2 + $0x1e4] sm:$0xf]
    %v379 = vld [vmem:[#allocation2 + $0x1e8] sm:$0xf]
    %v380 = vld [vmem:[#allocation2 + $0x1ec] sm:$0xf]
    %v381 = vld [vmem:[#allocation2 + $0x1f0] sm:$0xf]
    %v382 = vld [vmem:[#allocation2 + $0x1f4] sm:$0xf]
    %v383 = vld [vmem:[#allocation2 + $0x1f8] sm:$0xf]
    %v384 = vld [vmem:[#allocation2 + $0x1fc] sm:$0xf]
    %v385 = vld [vmem:[%s2] sm:$0x1]
    %v387 = vlaneseq
    %v388 = vshrl.u32 %v387, 7
    %v389 = vsub.s32 0, %v388
    %v390 = vrot.slane %v385, %v389
    %v520 = vunpack.c.l.b16 %v257
    %v521 = vunpack.c.l.b16 %v258
    %v522 = vunpack.c.l.b16 %v259
    %v523 = vunpack.c.l.b16 %v260
    %v524 = vunpack.c.l.b16 %v261
    %v525 = vunpack.c.l.b16 %v262
    %v526 = vunpack.c.l.b16 %v263
    %v527 = vunpack.c.l.b16 %v264
    %v528 = vunpack.c.l.b16 %v265
    %v529 = vunpack.c.l.b16 %v266
    %v530 = vunpack.c.l.b16 %v267
    %v531 = vunpack.c.l.b16 %v268
    %v532 = vunpack.c.l.b16 %v269
    %v533 = vunpack.c.l.b16 %v270
    %v534 = vunpack.c.l.b16 %v271
    %v535 = vunpack.c.l.b16 %v272
    %v536 = vunpack.c.l.b16 %v273
    %v537 = vunpack.c.l.b16 %v274
    %v538 = vunpack.c.l.b16 %v275
    %v539 = vunpack.c.l.b16 %v276
    %v540 = vunpack.c.l.b16 %v277
    %v541 = vunpack.c.l.b16 %v278
    %v542 = vunpack.c.l.b16 %v279
    %v543 = vunpack.c.l.b16 %v280
    %v544 = vunpack.c.l.b16 %v281
    %v545 = vunpack.c.l.b16 %v282
    %v546 = vunpack.c.l.b16 %v283
    %v547 = vunpack.c.l.b16 %v284
    %v548 = vunpack.c.l.b16 %v285
    %v549 = vunpack.c.l.b16 %v286
    %v550 = vunpack.c.l.b16 %v287
    %v551 = vunpack.c.l.b16 %v288
    %v552 = vunpack.c.l.b16 %v289
    %v553 = vunpack.c.l.b16 %v290
    %v554 = vunpack.c.l.b16 %v291
    %v555 = vunpack.c.l.b16 %v292
    %v556 = vunpack.c.l.b16 %v293
    %v557 = vunpack.c.l.b16 %v294
    %v558 = vunpack.c.l.b16 %v295
    %v559 = vunpack.c.l.b16 %v296
    %v560 = vunpack.c.l.b16 %v297
    %v561 = vunpack.c.l.b16 %v298
    %v562 = vunpack.c.l.b16 %v299
    %v563 = vunpack.c.l.b16 %v300
    %v564 = vunpack.c.l.b16 %v301
    %v565 = vunpack.c.l.b16 %v302
    %v566 = vunpack.c.l.b16 %v303
    %v567 = vunpack.c.l.b16 %v304
    %v568 = vunpack.c.l.b16 %v305
    %v569 = vunpack.c.l.b16 %v306
    %v570 = vunpack.c.l.b16 %v307
    %v571 = vunpack.c.l.b16 %v308
    %v572 = vunpack.c.l.b16 %v309
    %v573 = vunpack.c.l.b16 %v310
    %v574 = vunpack.c.l.b16 %v311
    %v575 = vunpack.c.l.b16 %v312
    %v576 = vunpack.c.l.b16 %v313
    %v577 = vunpack.c.l.b16 %v314
    %v578 = vunpack.c.l.b16 %v315
    %v579 = vunpack.c.l.b16 %v316
    %v580 = vunpack.c.l.b16 %v317
    %v581 = vunpack.c.l.b16 %v318
    %v582 = vunpack.c.l.b16 %v319
    %v583 = vunpack.c.l.b16 %v320
    %v584 = vunpack.c.l.b16 %v321
    %v585 = vunpack.c.l.b16 %v322
    %v586 = vunpack.c.l.b16 %v323
    %v587 = vunpack.c.l.b16 %v324
    %v588 = vunpack.c.l.b16 %v325
    %v589 = vunpack.c.l.b16 %v326
    %v590 = vunpack.c.l.b16 %v327
    %v591 = vunpack.c.l.b16 %v328
    %v592 = vunpack.c.l.b16 %v329
    %v593 = vunpack.c.l.b16 %v330
    %v594 = vunpack.c.l.b16 %v331
    %v595 = vunpack.c.l.b16 %v332
    %v596 = vunpack.c.l.b16 %v333
    %v597 = vunpack.c.l.b16 %v334
    %v598 = vunpack.c.l.b16 %v335
    %v599 = vunpack.c.l.b16 %v336
    %v600 = vunpack.c.l.b16 %v337
    %v601 = vunpack.c.l.b16 %v338
    %v602 = vunpack.c.l.b16 %v339
    %v603 = vunpack.c.l.b16 %v340
    %v604 = vunpack.c.l.b16 %v341
    %v605 = vunpack.c.l.b16 %v342
    %v606 = vunpack.c.l.b16 %v343
    %v607 = vunpack.c.l.b16 %v344
    %v608 = vunpack.c.l.b16 %v345
    %v609 = vunpack.c.l.b16 %v346
    %v610 = vunpack.c.l.b16 %v347
    %v611 = vunpack.c.l.b16 %v348
    %v612 = vunpack.c.l.b16 %v349
    %v613 = vunpack.c.l.b16 %v350
    %v614 = vunpack.c.l.b16 %v351
    %v615 = vunpack.c.l.b16 %v352
    %v616 = vunpack.c.l.b16 %v353
    %v617 = vunpack.c.l.b16 %v354
    %v618 = vunpack.c.l.b16 %v355
    %v619 = vunpack.c.l.b16 %v356
    %v620 = vunpack.c.l.b16 %v357
    %v621 = vunpack.c.l.b16 %v358
    %v622 = vunpack.c.l.b16 %v359
    %v623 = vunpack.c.l.b16 %v360
    %v624 = vunpack.c.l.b16 %v361
    %v625 = vunpack.c.l.b16 %v362
    %v626 = vunpack.c.l.b16 %v363
    %v627 = vunpack.c.l.b16 %v364
    %v628 = vunpack.c.l.b16 %v365
    %v629 = vunpack.c.l.b16 %v366
    %v630 = vunpack.c.l.b16 %v367
    %v631 = vunpack.c.l.b16 %v368
    %v632 = vunpack.c.l.b16 %v369
    %v633 = vunpack.c.l.b16 %v370
    %v634 = vunpack.c.l.b16 %v371
    %v635 = vunpack.c.l.b16 %v372
    %v636 = vunpack.c.l.b16 %v373
    %v637 = vunpack.c.l.b16 %v374
    %v638 = vunpack.c.l.b16 %v375
    %v639 = vunpack.c.l.b16 %v376
    %v640 = vunpack.c.l.b16 %v377
    %v641 = vunpack.c.l.b16 %v378
    %v642 = vunpack.c.l.b16 %v379
    %v643 = vunpack.c.l.b16 %v380
    %v644 = vunpack.c.l.b16 %v381
    %v645 = vunpack.c.l.b16 %v382
    %v646 = vunpack.c.l.b16 %v383
    %v647 = vunpack.c.l.b16 %v384
    %v648 = vpack.c.b16 %v521, %v520
    %v649 = vpack.c.b16 %v523, %v522
    %v650 = vpack.c.b16 %v525, %v524
    %v651 = vpack.c.b16 %v527, %v526
    %v652 = vpack.c.b16 %v529, %v528
    %v653 = vpack.c.b16 %v531, %v530
    %v654 = vpack.c.b16 %v533, %v532
    %v655 = vpack.c.b16 %v535, %v534
    %v656 = vpack.c.b16 %v537, %v536
    %v657 = vpack.c.b16 %v539, %v538
    %v658 = vpack.c.b16 %v541, %v540
    %v659 = vpack.c.b16 %v543, %v542
    %v660 = vpack.c.b16 %v545, %v544
    %v661 = vpack.c.b16 %v547, %v546
    %v662 = vpack.c.b16 %v549, %v548
    %v663 = vpack.c.b16 %v551, %v550
    %v664 = vpack.c.b16 %v553, %v552
    %v665 = vpack.c.b16 %v555, %v554
    %v666 = vpack.c.b16 %v557, %v556
    %v667 = vpack.c.b16 %v559, %v558
    %v668 = vpack.c.b16 %v561, %v560
    %v669 = vpack.c.b16 %v563, %v562
    %v670 = vpack.c.b16 %v565, %v564
    %v671 = vpack.c.b16 %v567, %v566
    %v672 = vpack.c.b16 %v569, %v568
    %v673 = vpack.c.b16 %v571, %v570
    %v674 = vpack.c.b16 %v573, %v572
    %v675 = vpack.c.b16 %v575, %v574
    %v676 = vpack.c.b16 %v577, %v576
    %v677 = vpack.c.b16 %v579, %v578
    %v678 = vpack.c.b16 %v581, %v580
    %v679 = vpack.c.b16 %v583, %v582
    %v680 = vpack.c.b16 %v585, %v584
    %v681 = vpack.c.b16 %v587, %v586
    %v682 = vpack.c.b16 %v589, %v588
    %v683 = vpack.c.b16 %v591, %v590
    %v684 = vpack.c.b16 %v593, %v592
    %v685 = vpack.c.b16 %v595, %v594
    %v686 = vpack.c.b16 %v597, %v596
    %v687 = vpack.c.b16 %v599, %v598
    %v688 = vpack.c.b16 %v601, %v600
    %v689 = vpack.c.b16 %v603, %v602
    %v690 = vpack.c.b16 %v605, %v604
    %v691 = vpack.c.b16 %v607, %v606
    %v692 = vpack.c.b16 %v609, %v608
    %v693 = vpack.c.b16 %v611, %v610
    %v694 = vpack.c.b16 %v613, %v612
    %v695 = vpack.c.b16 %v615, %v614
    %v696 = vpack.c.b16 %v617, %v616
    %v697 = vpack.c.b16 %v619, %v618
    %v698 = vpack.c.b16 %v621, %v620
    %v699 = vpack.c.b16 %v623, %v622
    %v700 = vpack.c.b16 %v625, %v624
    %v701 = vpack.c.b16 %v627, %v626
    %v702 = vpack.c.b16 %v629, %v628
    %v703 = vpack.c.b16 %v631, %v630
    %v704 = vpack.c.b16 %v633, %v632
    %v705 = vpack.c.b16 %v635, %v634
    %v706 = vpack.c.b16 %v637, %v636
    %v707 = vpack.c.b16 %v639, %v638
    %v708 = vpack.c.b16 %v641, %v640
    %v709 = vpack.c.b16 %v643, %v642
    %v710 = vpack.c.b16 %v645, %v644
    %v711 = vpack.c.b16 %v647, %v646
    %776 = vmatprep.subr.bf16.mxu0 0
    %777 = vmatpush1.bf16.msra.mxu0 %v648
    %778 = vmatprep.subr.bf16.mxu0 0
    %779 = vmatpush1.bf16.msra.mxu0 %v649
    %780 = vmatprep.subr.bf16.mxu0 0
    %781 = vmatpush1.bf16.msra.mxu0 %v650
    %782 = vmatprep.subr.bf16.mxu0 0
    %783 = vmatpush1.bf16.msra.mxu0 %v651
    %784 = vmatprep.subr.bf16.mxu0 0
    %785 = vmatpush1.bf16.msra.mxu0 %v652
    %786 = vmatprep.subr.bf16.mxu0 0
    %787 = vmatpush1.bf16.msra.mxu0 %v653
    %788 = vmatprep.subr.bf16.mxu0 0
    %789 = vmatpush1.bf16.msra.mxu0 %v654
    %790 = vmatprep.subr.bf16.mxu0 0
    %791 = vmatpush1.bf16.msra.mxu0 %v655
    %792 = vmatprep.subr.bf16.mxu0 0
    %793 = vmatpush1.bf16.msra.mxu0 %v656
    %794 = vmatprep.subr.bf16.mxu0 0
    %795 = vmatpush1.bf16.msra.mxu0 %v657
    %796 = vmatprep.subr.bf16.mxu0 0
    %797 = vmatpush1.bf16.msra.mxu0 %v658
    %798 = vmatprep.subr.bf16.mxu0 0
    %799 = vmatpush1.bf16.msra.mxu0 %v659
    %800 = vmatprep.subr.bf16.mxu0 0
    %801 = vmatpush1.bf16.msra.mxu0 %v660
    %802 = vmatprep.subr.bf16.mxu0 0
    %803 = vmatpush1.bf16.msra.mxu0 %v661
    %804 = vmatprep.subr.bf16.mxu0 0
    %805 = vmatpush1.bf16.msra.mxu0 %v662
    %806 = vmatprep.subr.bf16.mxu0 0
    %807 = vmatpush1.bf16.msra.mxu0 %v663
    %808 = vmatprep.mubr.bf16.mxu0 %v250
    %809 = vmatmul.mubr.bf16.gmra.mrb[0].mxu0 %v249
    %v810 = vpop.f32.mrb[0].mxu0
    %v811 = vadd.f32 %v390, %v810
    %v812 = vpop.f32.mrb[0].mxu0
    %v813 = vpop.f32.mrb[0].mxu0
    %v814 = vpop.f32.mrb[0].mxu0
    %815 = vdwg.mxu0
    %816 = vmatprep.subr.bf16.mxu0 0
    %817 = vmatpush1.bf16.msra.mxu0 %v664
    %818 = vmatprep.subr.bf16.mxu0 0
    %819 = vmatpush1.bf16.msra.mxu0 %v665
    %820 = vmatprep.subr.bf16.mxu0 0
    %821 = vmatpush1.bf16.msra.mxu0 %v666
    %822 = vmatprep.subr.bf16.mxu0 0
    %823 = vmatpush1.bf16.msra.mxu0 %v667
    %824 = vmatprep.subr.bf16.mxu0 0
    %825 = vmatpush1.bf16.msra.mxu0 %v668
    %826 = vmatprep.subr.bf16.mxu0 0
    %827 = vmatpush1.bf16.msra.mxu0 %v669
    %828 = vmatprep.subr.bf16.mxu0 0
    %829 = vmatpush1.bf16.msra.mxu0 %v670
    %830 = vmatprep.subr.bf16.mxu0 0
    %831 = vmatpush1.bf16.msra.mxu0 %v671
    %832 = vmatprep.subr.bf16.mxu0 0
    %833 = vmatpush1.bf16.msra.mxu0 %v672
    %834 = vmatprep.subr.bf16.mxu0 0
    %835 = vmatpush1.bf16.msra.mxu0 %v673
    %836 = vmatprep.subr.bf16.mxu0 0
    %837 = vmatpush1.bf16.msra.mxu0 %v674
    %838 = vmatprep.subr.bf16.mxu0 0
    %839 = vmatpush1.bf16.msra.mxu0 %v675
    %840 = vmatprep.subr.bf16.mxu0 0
    %841 = vmatpush1.bf16.msra.mxu0 %v676
    %842 = vmatprep.subr.bf16.mxu0 0
    %843 = vmatpush1.bf16.msra.mxu0 %v677
    %844 = vmatprep.subr.bf16.mxu0 0
    %845 = vmatpush1.bf16.msra.mxu0 %v678
    %846 = vmatprep.subr.bf16.mxu0 0
    %847 = vmatpush1.bf16.msra.mxu0 %v679
    %848 = vmatprep.mubr.bf16.mxu0 %v252
    %849 = vmatmul.mubr.bf16.gmra.mrb[0].mxu0 %v251
    %v850 = vpop.f32.mrb[0].mxu0
    %v851 = vadd.f32 %v811, %v850
    %v852 = vpop.f32.mrb[0].mxu0
    %v853 = vpop.f32.mrb[0].mxu0
    %v854 = vpop.f32.mrb[0].mxu0
    %855 = vdwg.mxu0
    %856 = vmatprep.subr.bf16.mxu0 0
    %857 = vmatpush1.bf16.msra.mxu0 %v680
    %858 = vmatprep.subr.bf16.mxu0 0
    %859 = vmatpush1.bf16.msra.mxu0 %v681
    %860 = vmatprep.subr.bf16.mxu0 0
    %861 = vmatpush1.bf16.msra.mxu0 %v682
    %862 = vmatprep.subr.bf16.mxu0 0
    %863 = vmatpush1.bf16.msra.mxu0 %v683
    %864 = vmatprep.subr.bf16.mxu0 0
    %865 = vmatpush1.bf16.msra.mxu0 %v684
    %866 = vmatprep.subr.bf16.mxu0 0
    %867 = vmatpush1.bf16.msra.mxu0 %v685
    %868 = vmatprep.subr.bf16.mxu0 0
    %869 = vmatpush1.bf16.msra.mxu0 %v686
    %870 = vmatprep.subr.bf16.mxu0 0
    %871 = vmatpush1.bf16.msra.mxu0 %v687
    %872 = vmatprep.subr.bf16.mxu0 0
    %873 = vmatpush1.bf16.msra.mxu0 %v688
    %874 = vmatprep.subr.bf16.mxu0 0
    %875 = vmatpush1.bf16.msra.mxu0 %v689
    %876 = vmatprep.subr.bf16.mxu0 0
    %877 = vmatpush1.bf16.msra.mxu0 %v690
    %878 = vmatprep.subr.bf16.mxu0 0
    %879 = vmatpush1.bf16.msra.mxu0 %v691
    %880 = vmatprep.subr.bf16.mxu0 0
    %881 = vmatpush1.bf16.msra.mxu0 %v692
    %882 = vmatprep.subr.bf16.mxu0 0
    %883 = vmatpush1.bf16.msra.mxu0 %v693
    %884 = vmatprep.subr.bf16.mxu0 0
    %885 = vmatpush1.bf16.msra.mxu0 %v694
    %886 = vmatprep.subr.bf16.mxu0 0
    %887 = vmatpush1.bf16.msra.mxu0 %v695
    %888 = vmatprep.mubr.bf16.mxu0 %v254
    %889 = vmatmul.mubr.bf16.gmra.mrb[0].mxu0 %v253
    %v890 = vpop.f32.mrb[0].mxu0
    %v891 = vadd.f32 %v851, %v890
    %v892 = vpop.f32.mrb[0].mxu0
    %v893 = vpop.f32.mrb[0].mxu0
    %v894 = vpop.f32.mrb[0].mxu0
    %895 = vdwg.mxu0
    %896 = vmatprep.subr.bf16.mxu0 0
    %897 = vmatpush1.bf16.msra.mxu0 %v696
    %898 = vmatprep.subr.bf16.mxu0 0
    %899 = vmatpush1.bf16.msra.mxu0 %v697
    %900 = vmatprep.subr.bf16.mxu0 0
    %901 = vmatpush1.bf16.msra.mxu0 %v698
    %902 = vmatprep.subr.bf16.mxu0 0
    %903 = vmatpush1.bf16.msra.mxu0 %v699
    %904 = vmatprep.subr.bf16.mxu0 0
    %905 = vmatpush1.bf16.msra.mxu0 %v700
    %906 = vmatprep.subr.bf16.mxu0 0
    %907 = vmatpush1.bf16.msra.mxu0 %v701
    %908 = vmatprep.subr.bf16.mxu0 0
    %909 = vmatpush1.bf16.msra.mxu0 %v702
    %910 = vmatprep.subr.bf16.mxu0 0
    %911 = vmatpush1.bf16.msra.mxu0 %v703
    %912 = vmatprep.subr.bf16.mxu0 0
    %913 = vmatpush1.bf16.msra.mxu0 %v704
    %914 = vmatprep.subr.bf16.mxu0 0
    %915 = vmatpush1.bf16.msra.mxu0 %v705
    %916 = vmatprep.subr.bf16.mxu0 0
    %917 = vmatpush1.bf16.msra.mxu0 %v706
    %918 = vmatprep.subr.bf16.mxu0 0
    %919 = vmatpush1.bf16.msra.mxu0 %v707
    %920 = vmatprep.subr.bf16.mxu0 0
    %921 = vmatpush1.bf16.msra.mxu0 %v708
    %922 = vmatprep.subr.bf16.mxu0 0
    %923 = vmatpush1.bf16.msra.mxu0 %v709
    %924 = vmatprep.subr.bf16.mxu0 0
    %925 = vmatpush1.bf16.msra.mxu0 %v710
    %926 = vmatprep.subr.bf16.mxu0 0
    %927 = vmatpush1.bf16.msra.mxu0 %v711
    %928 = vmatprep.mubr.bf16.mxu0 %v256
    %929 = vmatmul.mubr.bf16.gmra.mrb[0].mxu0 %v255
    %v930 = vpop.f32.mrb[0].mxu0
    %v931 = vadd.f32 %v891, %v930
    %v932 = vpop.f32.mrb[0].mxu0
    %v933 = vpop.f32.mrb[0].mxu0
    %v934 = vpop.f32.mrb[0].mxu0
    %935 = vdwg.mxu0
    %936 = vst [vmem:[#allocation20] sm:$0x3] %v931
    %v937 = vpack.c.bf16 %v931, %v931
    %v938 = vld [vmem:[#allocation5] sm:$0xf]
    %v939 = vld [vmem:[#allocation5 + $0x4] sm:$0xf]
    %v940 = vld [vmem:[#allocation5 + $0x8] sm:$0xf]
    %v941 = vld [vmem:[#allocation5 + $0xc] sm:$0xf]
    %v942 = vld [vmem:[#allocation5 + $0x10] sm:$0xf]
    %v943 = vld [vmem:[#allocation5 + $0x14] sm:$0xf]
    %v944 = vld [vmem:[#allocation5 + $0x18] sm:$0xf]
    %v945 = vld [vmem:[#allocation5 + $0x1c] sm:$0xf]
    %v946 = vld [vmem:[#allocation5 + $0x20] sm:$0xf]
    %v947 = vld [vmem:[#allocation5 + $0x24] sm:$0xf]
    %v948 = vld [vmem:[#allocation5 + $0x28] sm:$0xf]
    %v949 = vld [vmem:[#allocation5 + $0x2c] sm:$0xf]
    %v950 = vld [vmem:[#allocation5 + $0x30] sm:$0xf]
    %v951 = vld [vmem:[#allocation5 + $0x34] sm:$0xf]
    %v952 = vld [vmem:[#allocation5 + $0x38] sm:$0xf]
    %v953 = vld [vmem:[#allocation5 + $0x3c] sm:$0xf]
    %v954 = vld [vmem:[#allocation5 + $0x40] sm:$0xf]
    %v955 = vld [vmem:[#allocation5 + $0x44] sm:$0xf]
    %v956 = vld [vmem:[#allocation5 + $0x48] sm:$0xf]
    %v957 = vld [vmem:[#allocation5 + $0x4c] sm:$0xf]
    %v958 = vld [vmem:[#allocation5 + $0x50] sm:$0xf]
    %v959 = vld [vmem:[#allocation5 + $0x54] sm:$0xf]
    %v960 = vld [vmem:[#allocation5 + $0x58] sm:$0xf]
    %v961 = vld [vmem:[#allocation5 + $0x5c] sm:$0xf]
    %v962 = vld [vmem:[#allocation5 + $0x60] sm:$0xf]
    %v963 = vld [vmem:[#allocation5 + $0x64] sm:$0xf]
    %v964 = vld [vmem:[#allocation5 + $0x68] sm:$0xf]
    %v965 = vld [vmem:[#allocation5 + $0x6c] sm:$0xf]
    %v966 = vld [vmem:[#allocation5 + $0x70] sm:$0xf]
    %v967 = vld [vmem:[#allocation5 + $0x74] sm:$0xf]
    %v968 = vld [vmem:[#allocation5 + $0x78] sm:$0xf]
    %v969 = vld [vmem:[#allocation5 + $0x7c] sm:$0xf]
    %v970 = vld [vmem:[#allocation5 + $0x80] sm:$0xf]
    %v971 = vld [vmem:[#allocation5 + $0x84] sm:$0xf]
    %v972 = vld [vmem:[#allocation5 + $0x88] sm:$0xf]
    %v973 = vld [vmem:[#allocation5 + $0x8c] sm:$0xf]
    %v974 = vld [vmem:[#allocation5 + $0x90] sm:$0xf]
    %v975 = vld [vmem:[#allocation5 + $0x94] sm:$0xf]
    %v976 = vld [vmem:[#allocation5 + $0x98] sm:$0xf]
    %v977 = vld [vmem:[#allocation5 + $0x9c] sm:$0xf]
    %v978 = vld [vmem:[#allocation5 + $0xa0] sm:$0xf]
    %v979 = vld [vmem:[#allocation5 + $0xa4] sm:$0xf]
    %v980 = vld [vmem:[#allocation5 + $0xa8] sm:$0xf]
    %v981 = vld [vmem:[#allocation5 + $0xac] sm:$0xf]
    %v982 = vld [vmem:[#allocation5 + $0xb0] sm:$0xf]
    %v983 = vld [vmem:[#allocation5 + $0xb4] sm:$0xf]
    %v984 = vld [vmem:[#allocation5 + $0xb8] sm:$0xf]
    %v985 = vld [vmem:[#allocation5 + $0xbc] sm:$0xf]
    %v986 = vld [vmem:[#allocation7] sm:$0x1]
    %v987 = vld [vmem:[#allocation7 + $0x1] sm:$0x1]
    %v988 = vld [vmem:[#allocation7 + $0x2] sm:$0x1]
    %v992 = vlaneseq
    %v993 = vshrl.u32 %v992, 7
    %v994 = vsub.s32 0, %v993
    %v995 = vrot.slane %v986, %v994
    %v996 = vlaneseq
    %v997 = vshrl.u32 %v996, 7
    %v998 = vsub.s32 0, %v997
    %v999 = vrot.slane %v987, %v998
    %v1000 = vlaneseq
    %v1001 = vshrl.u32 %v1000, 7
    %v1002 = vsub.s32 0, %v1001
    %v1003 = vrot.slane %v988, %v1002
    %v1023 = vunpack.c.l.b16 %v938
    %v1024 = vunpack.c.l.b16 %v939
    %v1025 = vunpack.c.l.b16 %v940
    %v1026 = vunpack.c.l.b16 %v941
    %v1027 = vunpack.c.l.b16 %v942
    %v1028 = vunpack.c.l.b16 %v943
    %v1029 = vunpack.c.l.b16 %v944
    %v1030 = vunpack.c.l.b16 %v945
    %v1031 = vunpack.c.l.b16 %v946
    %v1032 = vunpack.c.l.b16 %v947
    %v1033 = vunpack.c.l.b16 %v948
    %v1034 = vunpack.c.l.b16 %v949
    %v1035 = vunpack.c.l.b16 %v950
    %v1036 = vunpack.c.l.b16 %v951
    %v1037 = vunpack.c.l.b16 %v952
    %v1038 = vunpack.c.l.b16 %v953
    %v1039 = vpack.c.b16 %v1024, %v1023
    %v1040 = vpack.c.b16 %v1026, %v1025
    %v1041 = vpack.c.b16 %v1028, %v1027
    %v1042 = vpack.c.b16 %v1030, %v1029
    %v1043 = vpack.c.b16 %v1032, %v1031
    %v1044 = vpack.c.b16 %v1034, %v1033
    %v1045 = vpack.c.b16 %v1036, %v1035
    %v1046 = vpack.c.b16 %v1038, %v1037
    %1055 = vmatprep.subr.bf16.mxu0 0
    %1056 = vmatpush1.bf16.msra.mxu0 %v1039
    %1057 = vmatprep.subr.bf16.mxu0 0
    %1058 = vmatpush1.bf16.msra.mxu0 %v1040
    %1059 = vmatprep.subr.bf16.mxu0 0
    %1060 = vmatpush1.bf16.msra.mxu0 %v1041
    %1061 = vmatprep.subr.bf16.mxu0 0
    %1062 = vmatpush1.bf16.msra.mxu0 %v1042
    %1063 = vmatprep.subr.bf16.mxu0 0
    %1064 = vmatpush1.bf16.msra.mxu0 %v1043
    %1065 = vmatprep.subr.bf16.mxu0 0
    %1066 = vmatpush1.bf16.msra.mxu0 %v1044
    %1067 = vmatprep.subr.bf16.mxu0 0
    %1068 = vmatpush1.bf16.msra.mxu0 %v1045
    %1069 = vmatprep.subr.bf16.mxu0 0
    %1070 = vmatpush1.bf16.msra.mxu0 %v1046
    %1071 = vmatprep.subr.bf16.mxu0 0
    %1072 = vmatpush1.bf16.msra.mxu0 0
    %1073 = vmatprep.subr.bf16.mxu0 0
    %1074 = vmatpush1.bf16.msra.mxu0 0
    %1075 = vmatprep.subr.bf16.mxu0 0
    %1076 = vmatpush1.bf16.msra.mxu0 0
    %1077 = vmatprep.subr.bf16.mxu0 0
    %1078 = vmatpush1.bf16.msra.mxu0 0
    %1079 = vmatprep.subr.bf16.mxu0 0
    %1080 = vmatpush1.bf16.msra.mxu0 0
    %1081 = vmatprep.subr.bf16.mxu0 0
    %1082 = vmatpush1.bf16.msra.mxu0 0
    %1083 = vmatprep.subr.bf16.mxu0 0
    %1084 = vmatpush1.bf16.msra.mxu0 0
    %1085 = vmatprep.subr.bf16.mxu0 0
    %1086 = vmatpush1.bf16.msra.mxu0 0
    %1087 = vmatprep.mubr.bf16.mxu0 0
    %1088 = vmatmul.mubr.bf16.gmra.mrb[0].mxu0 %v937
    %v1089 = vpop.f32.mrb[0].mxu0
    %v1090 = vadd.f32 %v995, %v1089
    %v1091 = vpop.f32.mrb[0].mxu0
    %v1092 = vpop.f32.mrb[0].mxu0
    %v1093 = vpop.f32.mrb[0].mxu0
    %1094 = vdwg.mxu0
    %v1111 = vunpack.c.l.b16 %v954
    %v1112 = vunpack.c.l.b16 %v955
    %v1113 = vunpack.c.l.b16 %v956
    %v1114 = vunpack.c.l.b16 %v957
    %v1115 = vunpack.c.l.b16 %v958
    %v1116 = vunpack.c.l.b16 %v959
    %v1117 = vunpack.c.l.b16 %v960
    %v1118 = vunpack.c.l.b16 %v961
    %v1119 = vunpack.c.l.b16 %v962
    %v1120 = vunpack.c.l.b16 %v963
    %v1121 = vunpack.c.l.b16 %v964
    %v1122 = vunpack.c.l.b16 %v965
    %v1123 = vunpack.c.l.b16 %v966
    %v1124 = vunpack.c.l.b16 %v967
    %v1125 = vunpack.c.l.b16 %v968
    %v1126 = vunpack.c.l.b16 %v969
    %v1127 = vpack.c.b16 %v1112, %v1111
    %v1128 = vpack.c.b16 %v1114, %v1113
    %v1129 = vpack.c.b16 %v1116, %v1115
    %v1130 = vpack.c.b16 %v1118, %v1117
    %v1131 = vpack.c.b16 %v1120, %v1119
    %v1132 = vpack.c.b16 %v1122, %v1121
    %v1133 = vpack.c.b16 %v1124, %v1123
    %v1134 = vpack.c.b16 %v1126, %v1125
    %1143 = vmatprep.subr.bf16.mxu0 0
    %1144 = vmatpush1.bf16.msra.mxu0 %v1127
    %1145 = vmatprep.subr.bf16.mxu0 0
    %1146 = vmatpush1.bf16.msra.mxu0 %v1128
    %1147 = vmatprep.subr.bf16.mxu0 0
    %1148 = vmatpush1.bf16.msra.mxu0 %v1129
    %1149 = vmatprep.subr.bf16.mxu0 0
    %1150 = vmatpush1.bf16.msra.mxu0 %v1130
    %1151 = vmatprep.subr.bf16.mxu0 0
    %1152 = vmatpush1.bf16.msra.mxu0 %v1131
    %1153 = vmatprep.subr.bf16.mxu0 0
    %1154 = vmatpush1.bf16.msra.mxu0 %v1132
    %1155 = vmatprep.subr.bf16.mxu0 0
    %1156 = vmatpush1.bf16.msra.mxu0 %v1133
    %1157 = vmatprep.subr.bf16.mxu0 0
    %1158 = vmatpush1.bf16.msra.mxu0 %v1134
    %1159 = vmatprep.subr.bf16.mxu0 0
    %1160 = vmatpush1.bf16.msra.mxu0 0
    %1161 = vmatprep.subr.bf16.mxu0 0
    %1162 = vmatpush1.bf16.msra.mxu0 0
    %1163 = vmatprep.subr.bf16.mxu0 0
    %1164 = vmatpush1.bf16.msra.mxu0 0
    %1165 = vmatprep.subr.bf16.mxu0 0
    %1166 = vmatpush1.bf16.msra.mxu0 0
    %1167 = vmatprep.subr.bf16.mxu0 0
    %1168 = vmatpush1.bf16.msra.mxu0 0
    %1169 = vmatprep.subr.bf16.mxu0 0
    %1170 = vmatpush1.bf16.msra.mxu0 0
    %1171 = vmatprep.subr.bf16.mxu0 0
    %1172 = vmatpush1.bf16.msra.mxu0 0
    %1173 = vmatprep.subr.bf16.mxu0 0
    %1174 = vmatpush1.bf16.msra.mxu0 0
    %1175 = vmatprep.mubr.bf16.mxu0 0
    %1176 = vmatmul.mubr.bf16.gmra.mrb[0].mxu0 %v937
    %v1177 = vpop.f32.mrb[0].mxu0
    %v1178 = vadd.f32 %v999, %v1177
    %v1179 = vpop.f32.mrb[0].mxu0
    %v1180 = vpop.f32.mrb[0].mxu0
    %v1181 = vpop.f32.mrb[0].mxu0
    %1182 = vdwg.mxu0
    %v1199 = vunpack.c.l.b16 %v970
    %v1200 = vunpack.c.l.b16 %v971
    %v1201 = vunpack.c.l.b16 %v972
    %v1202 = vunpack.c.l.b16 %v973
    %v1203 = vunpack.c.l.b16 %v974
    %v1204 = vunpack.c.l.b16 %v975
    %v1205 = vunpack.c.l.b16 %v976
    %v1206 = vunpack.c.l.b16 %v977
    %v1207 = vunpack.c.l.b16 %v978
    %v1208 = vunpack.c.l.b16 %v979
    %v1209 = vunpack.c.l.b16 %v980
    %v1210 = vunpack.c.l.b16 %v981
    %v1211 = vunpack.c.l.b16 %v982
    %v1212 = vunpack.c.l.b16 %v983
    %v1213 = vunpack.c.l.b16 %v984
    %v1214 = vunpack.c.l.b16 %v985
    %v1215 = vpack.c.b16 %v1200, %v1199
    %v1216 = vpack.c.b16 %v1202, %v1201
    %v1217 = vpack.c.b16 %v1204, %v1203
    %v1218 = vpack.c.b16 %v1206, %v1205
    %v1219 = vpack.c.b16 %v1208, %v1207
    %v1220 = vpack.c.b16 %v1210, %v1209
    %v1221 = vpack.c.b16 %v1212, %v1211
    %v1222 = vpack.c.b16 %v1214, %v1213
    %1231 = vmatprep.subr.bf16.mxu0 0
    %1232 = vmatpush1.bf16.msra.mxu0 %v1215
    %1233 = vmatprep.subr.bf16.mxu0 0
    %1234 = vmatpush1.bf16.msra.mxu0 %v1216
    %1235 = vmatprep.subr.bf16.mxu0 0
    %1236 = vmatpush1.bf16.msra.mxu0 %v1217
    %1237 = vmatprep.subr.bf16.mxu0 0
    %1238 = vmatpush1.bf16.msra.mxu0 %v1218
    %1239 = vmatprep.subr.bf16.mxu0 0
    %1240 = vmatpush1.bf16.msra.mxu0 %v1219
    %1241 = vmatprep.subr.bf16.mxu0 0
    %1242 = vmatpush1.bf16.msra.mxu0 %v1220
    %1243 = vmatprep.subr.bf16.mxu0 0
    %1244 = vmatpush1.bf16.msra.mxu0 %v1221
    %1245 = vmatprep.subr.bf16.mxu0 0
    %1246 = vmatpush1.bf16.msra.mxu0 %v1222
    %1247 = vmatprep.subr.bf16.mxu0 0
    %1248 = vmatpush1.bf16.msra.mxu0 0
    %1249 = vmatprep.subr.bf16.mxu0 0
    %1250 = vmatpush1.bf16.msra.mxu0 0
    %1251 = vmatprep.subr.bf16.mxu0 0
    %1252 = vmatpush1.bf16.msra.mxu0 0
    %1253 = vmatprep.subr.bf16.mxu0 0
    %1254 = vmatpush1.bf16.msra.mxu0 0
    %1255 = vmatprep.subr.bf16.mxu0 0
    %1256 = vmatpush1.bf16.msra.mxu0 0
    %1257 = vmatprep.subr.bf16.mxu0 0
    %1258 = vmatpush1.bf16.msra.mxu0 0
    %1259 = vmatprep.subr.bf16.mxu0 0
    %1260 = vmatpush1.bf16.msra.mxu0 0
    %1261 = vmatprep.subr.bf16.mxu0 0
    %1262 = vmatpush1.bf16.msra.mxu0 0
    %1263 = vmatprep.mubr.bf16.mxu0 0
    %1264 = vmatmul.mubr.bf16.gmra.mrb[0].mxu0 %v937
    %v1265 = vpop.f32.mrb[0].mxu0
    %v1266 = vadd.f32 %v1003, %v1265
    %v1267 = vpop.f32.mrb[0].mxu0
    %v1268 = vpop.f32.mrb[0].mxu0
    %v1269 = vpop.f32.mrb[0].mxu0
    %1270 = vdwg.mxu0
    %v1271 = vmax.f32 %v1090, 0.0
    %v1272 = vmax.f32 %v1178, 0.0
    %v1273 = vmax.f32 %v1266, 0.0
    %v1274 = vpack.c.bf16 %v1271, %v1271
    %v1275 = vpack.c.bf16 %v1272, %v1272
    %v1276 = vpack.c.bf16 %v1273, %v1273
    %v1277 = vld [vmem:[#allocation8] sm:$0xf]
    %v1278 = vld [vmem:[#allocation8 + $0x4] sm:$0xf]
    %v1279 = vld [vmem:[#allocation8 + $0x8] sm:$0xf]
    %v1280 = vld [vmem:[#allocation8 + $0xc] sm:$0xf]
    %v1281 = vld [vmem:[#allocation8 + $0x10] sm:$0xf]
    %v1282 = vld [vmem:[#allocation8 + $0x14] sm:$0xf]
    %v1283 = vld [vmem:[#allocation8 + $0x18] sm:$0xf]
    %v1284 = vld [vmem:[#allocation8 + $0x1c] sm:$0xf]
    %v1285 = vld [vmem:[#allocation8 + $0x20] sm:$0xf]
    %v1286 = vld [vmem:[#allocation8 + $0x24] sm:$0xf]
    %v1287 = vld [vmem:[#allocation8 + $0x28] sm:$0xf]
    %v1288 = vld [vmem:[#allocation8 + $0x2c] sm:$0xf]
    %v1289 = vld [vmem:[#allocation8 + $0x30] sm:$0xf]
    %v1290 = vld [vmem:[#allocation8 + $0x34] sm:$0xf]
    %v1291 = vld [vmem:[#allocation8 + $0x38] sm:$0xf]
    %v1292 = vld [vmem:[#allocation8 + $0x3c] sm:$0xf]
    %v1293 = vld [vmem:[#allocation8 + $0x40] sm:$0xf]
    %v1294 = vld [vmem:[#allocation8 + $0x44] sm:$0xf]
    %v1295 = vld [vmem:[#allocation8 + $0x48] sm:$0xf]
    %v1296 = vld [vmem:[#allocation8 + $0x4c] sm:$0xf]
    %v1297 = vld [vmem:[#allocation8 + $0x50] sm:$0xf]
    %v1298 = vld [vmem:[#allocation8 + $0x54] sm:$0xf]
    %v1299 = vld [vmem:[#allocation8 + $0x58] sm:$0xf]
    %v1300 = vld [vmem:[#allocation8 + $0x5c] sm:$0xf]
    %v1301 = vld [vmem:[#allocation8 + $0x60] sm:$0xf]
    %v1302 = vld [vmem:[#allocation8 + $0x64] sm:$0xf]
    %v1303 = vld [vmem:[#allocation8 + $0x68] sm:$0xf]
    %v1304 = vld [vmem:[#allocation8 + $0x6c] sm:$0xf]
    %v1305 = vld [vmem:[#allocation8 + $0x70] sm:$0xf]
    %v1306 = vld [vmem:[#allocation8 + $0x74] sm:$0xf]
    %v1307 = vld [vmem:[#allocation8 + $0x78] sm:$0xf]
    %v1308 = vld [vmem:[#allocation8 + $0x7c] sm:$0xf]
    %v1309 = vld [vmem:[#allocation8 + $0x80] sm:$0xf]
    %v1310 = vld [vmem:[#allocation8 + $0x84] sm:$0xf]
    %v1311 = vld [vmem:[#allocation8 + $0x88] sm:$0xf]
    %v1312 = vld [vmem:[#allocation8 + $0x8c] sm:$0xf]
    %v1313 = vld [vmem:[#allocation8 + $0x90] sm:$0xf]
    %v1314 = vld [vmem:[#allocation8 + $0x94] sm:$0xf]
    %v1315 = vld [vmem:[#allocation8 + $0x98] sm:$0xf]
    %v1316 = vld [vmem:[#allocation8 + $0x9c] sm:$0xf]
    %v1317 = vld [vmem:[#allocation8 + $0xa0] sm:$0xf]
    %v1318 = vld [vmem:[#allocation8 + $0xa4] sm:$0xf]
    %v1319 = vld [vmem:[#allocation8 + $0xa8] sm:$0xf]
    %v1320 = vld [vmem:[#allocation8 + $0xac] sm:$0xf]
    %v1321 = vld [vmem:[#allocation8 + $0xb0] sm:$0xf]
    %v1322 = vld [vmem:[#allocation8 + $0xb4] sm:$0xf]
    %v1323 = vld [vmem:[#allocation8 + $0xb8] sm:$0xf]
    %v1324 = vld [vmem:[#allocation8 + $0xbc] sm:$0xf]
    %v1325 = vld [vmem:[#allocation10] sm:$0x1]
    %v1326 = vld [vmem:[#allocation10 + $0x1] sm:$0x1]
    %v1327 = vld [vmem:[#allocation10 + $0x2] sm:$0x1]
    %v1331 = vlaneseq
    %v1332 = vshrl.u32 %v1331, 7
    %v1333 = vsub.s32 0, %v1332
    %v1334 = vrot.slane %v1325, %v1333
    %v1335 = vlaneseq
    %v1336 = vshrl.u32 %v1335, 7
    %v1337 = vsub.s32 0, %v1336
    %v1338 = vrot.slane %v1326, %v1337
    %v1339 = vlaneseq
    %v1340 = vshrl.u32 %v1339, 7
    %v1341 = vsub.s32 0, %v1340
    %v1342 = vrot.slane %v1327, %v1341
    %v1362 = vunpack.c.l.b16 %v1277
    %v1363 = vunpack.c.l.b16 %v1278
    %v1364 = vunpack.c.l.b16 %v1279
    %v1365 = vunpack.c.l.b16 %v1280
    %v1366 = vunpack.c.l.b16 %v1281
    %v1367 = vunpack.c.l.b16 %v1282
    %v1368 = vunpack.c.l.b16 %v1283
    %v1369 = vunpack.c.l.b16 %v1284
    %v1370 = vunpack.c.l.b16 %v1285
    %v1371 = vunpack.c.l.b16 %v1286
    %v1372 = vunpack.c.l.b16 %v1287
    %v1373 = vunpack.c.l.b16 %v1288
    %v1374 = vunpack.c.l.b16 %v1289
    %v1375 = vunpack.c.l.b16 %v1290
    %v1376 = vunpack.c.l.b16 %v1291
    %v1377 = vunpack.c.l.b16 %v1292
    %v1378 = vpack.c.b16 %v1363, %v1362
    %v1379 = vpack.c.b16 %v1365, %v1364
    %v1380 = vpack.c.b16 %v1367, %v1366
    %v1381 = vpack.c.b16 %v1369, %v1368
    %v1382 = vpack.c.b16 %v1371, %v1370
    %v1383 = vpack.c.b16 %v1373, %v1372
    %v1384 = vpack.c.b16 %v1375, %v1374
    %v1385 = vpack.c.b16 %v1377, %v1376
    %1394 = vmatprep.subr.bf16.mxu0 0
    %1395 = vmatpush1.bf16.msra.mxu0 %v1378
    %1396 = vmatprep.subr.bf16.mxu0 0
    %1397 = vmatpush1.bf16.msra.mxu0 %v1379
    %1398 = vmatprep.subr.bf16.mxu0 0
    %1399 = vmatpush1.bf16.msra.mxu0 %v1380
    %1400 = vmatprep.subr.bf16.mxu0 0
    %1401 = vmatpush1.bf16.msra.mxu0 %v1381
    %1402 = vmatprep.subr.bf16.mxu0 0
    %1403 = vmatpush1.bf16.msra.mxu0 %v1382
    %1404 = vmatprep.subr.bf16.mxu0 0
    %1405 = vmatpush1.bf16.msra.mxu0 %v1383
    %1406 = vmatprep.subr.bf16.mxu0 0
    %1407 = vmatpush1.bf16.msra.mxu0 %v1384
    %1408 = vmatprep.subr.bf16.mxu0 0
    %1409 = vmatpush1.bf16.msra.mxu0 %v1385
    %1410 = vmatprep.subr.bf16.mxu0 0
    %1411 = vmatpush1.bf16.msra.mxu0 0
    %1412 = vmatprep.subr.bf16.mxu0 0
    %1413 = vmatpush1.bf16.msra.mxu0 0
    %1414 = vmatprep.subr.bf16.mxu0 0
    %1415 = vmatpush1.bf16.msra.mxu0 0
    %1416 = vmatprep.subr.bf16.mxu0 0
    %1417 = vmatpush1.bf16.msra.mxu0 0
    %1418 = vmatprep.subr.bf16.mxu0 0
    %1419 = vmatpush1.bf16.msra.mxu0 0
    %1420 = vmatprep.subr.bf16.mxu0 0
    %1421 = vmatpush1.bf16.msra.mxu0 0
    %1422 = vmatprep.subr.bf16.mxu0 0
    %1423 = vmatpush1.bf16.msra.mxu0 0
    %1424 = vmatprep.subr.bf16.mxu0 0
    %1425 = vmatpush1.bf16.msra.mxu0 0
    %1426 = vmatprep.mubr.bf16.mxu0 0
    %1427 = vmatmul.mubr.bf16.gmra.mrb[0].mxu0 %v1274
    %v1428 = vpop.f32.mrb[0].mxu0
    %v1429 = vadd.f32 %v1334, %v1428
    %v1430 = vpop.f32.mrb[0].mxu0
    %v1431 = vpop.f32.mrb[0].mxu0
    %v1432 = vpop.f32.mrb[0].mxu0
    %1433 = vdwg.mxu0
    %v1450 = vunpack.c.l.b16 %v1293
    %v1451 = vunpack.c.l.b16 %v1294
    %v1452 = vunpack.c.l.b16 %v1295
    %v1453 = vunpack.c.l.b16 %v1296
    %v1454 = vunpack.c.l.b16 %v1297
    %v1455 = vunpack.c.l.b16 %v1298
    %v1456 = vunpack.c.l.b16 %v1299
    %v1457 = vunpack.c.l.b16 %v1300
    %v1458 = vunpack.c.l.b16 %v1301
    %v1459 = vunpack.c.l.b16 %v1302
    %v1460 = vunpack.c.l.b16 %v1303
    %v1461 = vunpack.c.l.b16 %v1304
    %v1462 = vunpack.c.l.b16 %v1305
    %v1463 = vunpack.c.l.b16 %v1306
    %v1464 = vunpack.c.l.b16 %v1307
    %v1465 = vunpack.c.l.b16 %v1308
    %v1466 = vpack.c.b16 %v1451, %v1450
    %v1467 = vpack.c.b16 %v1453, %v1452
    %v1468 = vpack.c.b16 %v1455, %v1454
    %v1469 = vpack.c.b16 %v1457, %v1456
    %v1470 = vpack.c.b16 %v1459, %v1458
    %v1471 = vpack.c.b16 %v1461, %v1460
    %v1472 = vpack.c.b16 %v1463, %v1462
    %v1473 = vpack.c.b16 %v1465, %v1464
    %1482 = vmatprep.subr.bf16.mxu0 0
    %1483 = vmatpush1.bf16.msra.mxu0 %v1466
    %1484 = vmatprep.subr.bf16.mxu0 0
    %1485 = vmatpush1.bf16.msra.mxu0 %v1467
    %1486 = vmatprep.subr.bf16.mxu0 0
    %1487 = vmatpush1.bf16.msra.mxu0 %v1468
    %1488 = vmatprep.subr.bf16.mxu0 0
    %1489 = vmatpush1.bf16.msra.mxu0 %v1469
    %1490 = vmatprep.subr.bf16.mxu0 0
    %1491 = vmatpush1.bf16.msra.mxu0 %v1470
    %1492 = vmatprep.subr.bf16.mxu0 0
    %1493 = vmatpush1.bf16.msra.mxu0 %v1471
    %1494 = vmatprep.subr.bf16.mxu0 0
    %1495 = vmatpush1.bf16.msra.mxu0 %v1472
    %1496 = vmatprep.subr.bf16.mxu0 0
    %1497 = vmatpush1.bf16.msra.mxu0 %v1473
    %1498 = vmatprep.subr.bf16.mxu0 0
    %1499 = vmatpush1.bf16.msra.mxu0 0
    %1500 = vmatprep.subr.bf16.mxu0 0
    %1501 = vmatpush1.bf16.msra.mxu0 0
    %1502 = vmatprep.subr.bf16.mxu0 0
    %1503 = vmatpush1.bf16.msra.mxu0 0
    %1504 = vmatprep.subr.bf16.mxu0 0
    %1505 = vmatpush1.bf16.msra.mxu0 0
    %1506 = vmatprep.subr.bf16.mxu0 0
    %1507 = vmatpush1.bf16.msra.mxu0 0
    %1508 = vmatprep.subr.bf16.mxu0 0
    %1509 = vmatpush1.bf16.msra.mxu0 0
    %1510 = vmatprep.subr.bf16.mxu0 0
    %1511 = vmatpush1.bf16.msra.mxu0 0
    %1512 = vmatprep.subr.bf16.mxu0 0
    %1513 = vmatpush1.bf16.msra.mxu0 0
    %1514 = vmatprep.mubr.bf16.mxu0 0
    %1515 = vmatmul.mubr.bf16.gmra.mrb[0].mxu0 %v1275
    %v1516 = vpop.f32.mrb[0].mxu0
    %v1517 = vadd.f32 %v1338, %v1516
    %v1518 = vpop.f32.mrb[0].mxu0
    %v1519 = vpop.f32.mrb[0].mxu0
    %v1520 = vpop.f32.mrb[0].mxu0
    %1521 = vdwg.mxu0
    %v1538 = vunpack.c.l.b16 %v1309
    %v1539 = vunpack.c.l.b16 %v1310
    %v1540 = vunpack.c.l.b16 %v1311
    %v1541 = vunpack.c.l.b16 %v1312
    %v1542 = vunpack.c.l.b16 %v1313
    %v1543 = vunpack.c.l.b16 %v1314
    %v1544 = vunpack.c.l.b16 %v1315
    %v1545 = vunpack.c.l.b16 %v1316
    %v1546 = vunpack.c.l.b16 %v1317
    %v1547 = vunpack.c.l.b16 %v1318
    %v1548 = vunpack.c.l.b16 %v1319
    %v1549 = vunpack.c.l.b16 %v1320
    %v1550 = vunpack.c.l.b16 %v1321
    %v1551 = vunpack.c.l.b16 %v1322
    %v1552 = vunpack.c.l.b16 %v1323
    %v1553 = vunpack.c.l.b16 %v1324
    %v1554 = vpack.c.b16 %v1539, %v1538
    %v1555 = vpack.c.b16 %v1541, %v1540
    %v1556 = vpack.c.b16 %v1543, %v1542
    %v1557 = vpack.c.b16 %v1545, %v1544
    %v1558 = vpack.c.b16 %v1547, %v1546
    %v1559 = vpack.c.b16 %v1549, %v1548
    %v1560 = vpack.c.b16 %v1551, %v1550
    %v1561 = vpack.c.b16 %v1553, %v1552
    %1570 = vmatprep.subr.bf16.mxu0 0
    %1571 = vmatpush1.bf16.msra.mxu0 %v1554
    %1572 = vmatprep.subr.bf16.mxu0 0
    %1573 = vmatpush1.bf16.msra.mxu0 %v1555
    %1574 = vmatprep.subr.bf16.mxu0 0
    %1575 = vmatpush1.bf16.msra.mxu0 %v1556
    %1576 = vmatprep.subr.bf16.mxu0 0
    %1577 = vmatpush1.bf16.msra.mxu0 %v1557
    %1578 = vmatprep.subr.bf16.mxu0 0
    %1579 = vmatpush1.bf16.msra.mxu0 %v1558
    %1580 = vmatprep.subr.bf16.mxu0 0
    %1581 = vmatpush1.bf16.msra.mxu0 %v1559
    %1582 = vmatprep.subr.bf16.mxu0 0
    %1583 = vmatpush1.bf16.msra.mxu0 %v1560
    %1584 = vmatprep.subr.bf16.mxu0 0
    %1585 = vmatpush1.bf16.msra.mxu0 %v1561
    %1586 = vmatprep.subr.bf16.mxu0 0
    %1587 = vmatpush1.bf16.msra.mxu0 0
    %1588 = vmatprep.subr.bf16.mxu0 0
    %1589 = vmatpush1.bf16.msra.mxu0 0
    %1590 = vmatprep.subr.bf16.mxu0 0
    %1591 = vmatpush1.bf16.msra.mxu0 0
    %1592 = vmatprep.subr.bf16.mxu0 0
    %1593 = vmatpush1.bf16.msra.mxu0 0
    %1594 = vmatprep.subr.bf16.mxu0 0
    %1595 = vmatpush1.bf16.msra.mxu0 0
    %1596 = vmatprep.subr.bf16.mxu0 0
    %1597 = vmatpush1.bf16.msra.mxu0 0
    %1598 = vmatprep.subr.bf16.mxu0 0
    %1599 = vmatpush1.bf16.msra.mxu0 0
    %1600 = vmatprep.subr.bf16.mxu0 0
    %1601 = vmatpush1.bf16.msra.mxu0 0
    %1602 = vmatprep.mubr.bf16.mxu0 0
    %1603 = vmatmul.mubr.bf16.gmra.mrb[0].mxu0 %v1276
    %v1604 = vpop.f32.mrb[0].mxu0
    %v1605 = vadd.f32 %v1342, %v1604
    %v1606 = vpop.f32.mrb[0].mxu0
    %v1607 = vpop.f32.mrb[0].mxu0
    %v1608 = vpop.f32.mrb[0].mxu0
    %1609 = vdwg.mxu0
    %v1610 = vmax.f32 %v1429, 0.0
    %v1611 = vmax.f32 %v1517, 0.0
    %v1612 = vmax.f32 %v1605, 0.0
    %v1613 = vpack.c.bf16 %v1610, %v1610
    %v1614 = vpack.c.bf16 %v1611, %v1611
    %v1615 = vpack.c.bf16 %v1612, %v1612
    %v1616 = vld [vmem:[#allocation11] sm:$0xff]
    %v1617 = vld [vmem:[#allocation11 + $0x8] sm:$0xf]
    %v1618 = vld [vmem:[#allocation11 + $0xc] sm:$0xff]
    %v1619 = vld [vmem:[#allocation11 + $0x14] sm:$0xf]
    %v1620 = vld [vmem:[#allocation11 + $0x18] sm:$0xff]
    %v1621 = vld [vmem:[#allocation11 + $0x20] sm:$0xf]
    %v1622 = vld [vmem:[#allocation11 + $0x24] sm:$0xff]
    %v1623 = vld [vmem:[#allocation11 + $0x2c] sm:$0xf]
    %v1624 = vld [vmem:[#allocation11 + $0x30] sm:$0xff]
    %v1625 = vld [vmem:[#allocation11 + $0x38] sm:$0xf]
    %v1626 = vld [vmem:[#allocation11 + $0x3c] sm:$0xff]
    %v1627 = vld [vmem:[#allocation11 + $0x44] sm:$0xf]
    %v1628 = vld [vmem:[#allocation11 + $0x48] sm:$0xff]
    %v1629 = vld [vmem:[#allocation11 + $0x50] sm:$0xf]
    %v1630 = vld [vmem:[#allocation11 + $0x54] sm:$0xff]
    %v1631 = vld [vmem:[#allocation11 + $0x5c] sm:$0xf]
    %v1632 = vld [vmem:[#allocation11 + $0x60] sm:$0xff]
    %v1633 = vld [vmem:[#allocation11 + $0x68] sm:$0xf]
    %v1634 = vld [vmem:[#allocation11 + $0x6c] sm:$0xff]
    %v1635 = vld [vmem:[#allocation11 + $0x74] sm:$0xf]
    %v1636 = vld [vmem:[#allocation11 + $0x78] sm:$0xff]
    %v1637 = vld [vmem:[#allocation11 + $0x80] sm:$0xf]
    %v1638 = vld [vmem:[#allocation11 + $0x84] sm:$0xff]
    %v1639 = vld [vmem:[#allocation11 + $0x8c] sm:$0xf]
    %v1640 = vld [vmem:[#allocation11 + $0x90] sm:$0xff]
    %v1641 = vld [vmem:[#allocation11 + $0x98] sm:$0xf]
    %v1642 = vld [vmem:[#allocation11 + $0x9c] sm:$0xff]
    %v1643 = vld [vmem:[#allocation11 + $0xa4] sm:$0xf]
    %v1644 = vld [vmem:[#allocation11 + $0xa8] sm:$0xff]
    %v1645 = vld [vmem:[#allocation11 + $0xb0] sm:$0xf]
    %v1646 = vld [vmem:[#allocation11 + $0xb4] sm:$0xff]
    %v1647 = vld [vmem:[#allocation11 + $0xbc] sm:$0xf]
    %v1648 = vld [vmem:[#allocation11 + $0xc0] sm:$0xff]
    %v1649 = vld [vmem:[#allocation11 + $0xc8] sm:$0xf]
    %v1650 = vld [vmem:[#allocation11 + $0xcc] sm:$0xff]
    %v1651 = vld [vmem:[#allocation11 + $0xd4] sm:$0xf]
    %v1652 = vld [vmem:[#allocation11 + $0xd8] sm:$0xff]
    %v1653 = vld [vmem:[#allocation11 + $0xe0] sm:$0xf]
    %v1654 = vld [vmem:[#allocation11 + $0xe4] sm:$0xff]
    %v1655 = vld [vmem:[#allocation11 + $0xec] sm:$0xf]
    %v1656 = vld [vmem:[#allocation11 + $0xf0] sm:$0xff]
    %v1657 = vld [vmem:[#allocation11 + $0xf8] sm:$0xf]
    %v1658 = vld [vmem:[#allocation11 + $0xfc] sm:$0xff]
    %v1659 = vld [vmem:[#allocation11 + $0x104] sm:$0xf]
    %v1660 = vld [vmem:[#allocation11 + $0x108] sm:$0xff]
    %v1661 = vld [vmem:[#allocation11 + $0x110] sm:$0xf]
    %v1662 = vld [vmem:[#allocation11 + $0x114] sm:$0xff]
    %v1663 = vld [vmem:[#allocation11 + $0x11c] sm:$0xf]
    %v1664 = vld [vmem:[#allocation11 + $0x120] sm:$0xff]
    %v1665 = vld [vmem:[#allocation11 + $0x128] sm:$0xf]
    %v1666 = vld [vmem:[#allocation11 + $0x12c] sm:$0xff]
    %v1667 = vld [vmem:[#allocation11 + $0x134] sm:$0xf]
    %v1668 = vld [vmem:[#allocation11 + $0x138] sm:$0xff]
    %v1669 = vld [vmem:[#allocation11 + $0x140] sm:$0xf]
    %v1670 = vld [vmem:[#allocation11 + $0x144] sm:$0xff]
    %v1671 = vld [vmem:[#allocation11 + $0x14c] sm:$0xf]
    %v1672 = vld [vmem:[#allocation11 + $0x150] sm:$0xff]
    %v1673 = vld [vmem:[#allocation11 + $0x158] sm:$0xf]
    %v1674 = vld [vmem:[#allocation11 + $0x15c] sm:$0xff]
    %v1675 = vld [vmem:[#allocation11 + $0x164] sm:$0xf]
    %v1676 = vld [vmem:[#allocation11 + $0x168] sm:$0xff]
    %v1677 = vld [vmem:[#allocation11 + $0x170] sm:$0xf]
    %v1678 = vld [vmem:[#allocation11 + $0x174] sm:$0xff]
    %v1679 = vld [vmem:[#allocation11 + $0x17c] sm:$0xf]
    %v1680 = vld [vmem:[#allocation11 + $0x180] sm:$0xff]
    %v1681 = vld [vmem:[#allocation11 + $0x188] sm:$0xf]
    %v1682 = vld [vmem:[#allocation11 + $0x18c] sm:$0xff]
    %v1683 = vld [vmem:[#allocation11 + $0x194] sm:$0xf]
    %v1684 = vld [vmem:[#allocation11 + $0x198] sm:$0xff]
    %v1685 = vld [vmem:[#allocation11 + $0x1a0] sm:$0xf]
    %v1686 = vld [vmem:[#allocation11 + $0x1a4] sm:$0xff]
    %v1687 = vld [vmem:[#allocation11 + $0x1ac] sm:$0xf]
    %v1688 = vld [vmem:[#allocation11 + $0x1b0] sm:$0xff]
    %v1689 = vld [vmem:[#allocation11 + $0x1b8] sm:$0xf]
    %v1690 = vld [vmem:[#allocation11 + $0x1bc] sm:$0xff]
    %v1691 = vld [vmem:[#allocation11 + $0x1c4] sm:$0xf]
    %v1692 = vld [vmem:[#allocation11 + $0x1c8] sm:$0xff]
    %v1693 = vld [vmem:[#allocation11 + $0x1d0] sm:$0xf]
    %v1694 = vld [vmem:[#allocation11 + $0x1d4] sm:$0xff]
    %v1695 = vld [vmem:[#allocation11 + $0x1dc] sm:$0xf]
    %v1696 = vld [vmem:[#allocation11 + $0x1e0] sm:$0xff]
    %v1697 = vld [vmem:[#allocation11 + $0x1e8] sm:$0xf]
    %v1698 = vld [vmem:[#allocation11 + $0x1ec] sm:$0xff]
    %v1699 = vld [vmem:[#allocation11 + $0x1f4] sm:$0xf]
    %v1700 = vld [vmem:[#allocation11 + $0x1f8] sm:$0xff]
    %v1701 = vld [vmem:[#allocation11 + $0x200] sm:$0xf]
    %v1702 = vld [vmem:[#allocation11 + $0x204] sm:$0xff]
    %v1703 = vld [vmem:[#allocation11 + $0x20c] sm:$0xf]
    %v1704 = vld [vmem:[#allocation11 + $0x210] sm:$0xff]
    %v1705 = vld [vmem:[#allocation11 + $0x218] sm:$0xf]
    %v1706 = vld [vmem:[#allocation11 + $0x21c] sm:$0xff]
    %v1707 = vld [vmem:[#allocation11 + $0x224] sm:$0xf]
    %v1708 = vld [vmem:[#allocation11 + $0x228] sm:$0xff]
    %v1709 = vld [vmem:[#allocation11 + $0x230] sm:$0xf]
    %v1710 = vld [vmem:[#allocation11 + $0x234] sm:$0xff]
    %v1711 = vld [vmem:[#allocation11 + $0x23c] sm:$0xf]
    %v1712 = vld [vmem:[#allocation13] sm:$0x7]
    %v1713 = vld [vmem:[#allocation13 + $0x3] sm:$0x7]
    %v1714 = vld [vmem:[#allocation13 + $0x6] sm:$0x7]
    %v1718 = vlaneseq
    %v1719 = vshrl.u32 %v1718, 7
    %v1720 = vsub.s32 0, %v1719
    %v1721 = vrot.slane %v1712, %v1720
    %v1722 = vlaneseq
    %v1723 = vshrl.u32 %v1722, 7
    %v1724 = vsub.s32 1, %v1723
    %v1725 = vrot.slane %v1712, %v1724
    %v1726 = vlaneseq
    %v1727 = vshrl.u32 %v1726, 7
    %v1728 = vsub.s32 2, %v1727
    %v1729 = vrot.slane %v1712, %v1728
    %v1730 = vlaneseq
    %v1731 = vshrl.u32 %v1730, 7
    %v1732 = vsub.s32 0, %v1731
    %v1733 = vrot.slane %v1713, %v1732
    %v1734 = vlaneseq
    %v1735 = vshrl.u32 %v1734, 7
    %v1736 = vsub.s32 1, %v1735
    %v1737 = vrot.slane %v1713, %v1736
    %v1738 = vlaneseq
    %v1739 = vshrl.u32 %v1738, 7
    %v1740 = vsub.s32 2, %v1739
    %v1741 = vrot.slane %v1713, %v1740
    %v1742 = vlaneseq
    %v1743 = vshrl.u32 %v1742, 7
    %v1744 = vsub.s32 0, %v1743
    %v1745 = vrot.slane %v1714, %v1744
    %v1746 = vlaneseq
    %v1747 = vshrl.u32 %v1746, 7
    %v1748 = vsub.s32 1, %v1747
    %v1749 = vrot.slane %v1714, %v1748
    %v1750 = vlaneseq
    %v1751 = vshrl.u32 %v1750, 7
    %v1752 = vsub.s32 2, %v1751
    %v1753 = vrot.slane %v1714, %v1752
    %v1795 = vunpack.c.l.b16 %v1616
    %v1796 = vunpack.c.h.b16 %v1616
    %v1797 = vunpack.c.l.b16 %v1617
    %v1798 = vunpack.c.l.b16 %v1618
    %v1799 = vunpack.c.h.b16 %v1618
    %v1800 = vunpack.c.l.b16 %v1619
    %v1801 = vunpack.c.l.b16 %v1620
    %v1802 = vunpack.c.h.b16 %v1620
    %v1803 = vunpack.c.l.b16 %v1621
    %v1804 = vunpack.c.l.b16 %v1622
    %v1805 = vunpack.c.h.b16 %v1622
    %v1806 = vunpack.c.l.b16 %v1623
    %v1807 = vunpack.c.l.b16 %v1624
    %v1808 = vunpack.c.h.b16 %v1624
    %v1809 = vunpack.c.l.b16 %v1625
    %v1810 = vunpack.c.l.b16 %v1626
    %v1811 = vunpack.c.h.b16 %v1626
    %v1812 = vunpack.c.l.b16 %v1627
    %v1813 = vunpack.c.l.b16 %v1628
    %v1814 = vunpack.c.h.b16 %v1628
    %v1815 = vunpack.c.l.b16 %v1629
    %v1816 = vunpack.c.l.b16 %v1630
    %v1817 = vunpack.c.h.b16 %v1630
    %v1818 = vunpack.c.l.b16 %v1631
    %v1819 = vunpack.c.l.b16 %v1632
    %v1820 = vunpack.c.h.b16 %v1632
    %v1821 = vunpack.c.l.b16 %v1633
    %v1822 = vunpack.c.l.b16 %v1634
    %v1823 = vunpack.c.h.b16 %v1634
    %v1824 = vunpack.c.l.b16 %v1635
    %v1825 = vunpack.c.l.b16 %v1636
    %v1826 = vunpack.c.h.b16 %v1636
    %v1827 = vunpack.c.l.b16 %v1637
    %v1828 = vunpack.c.l.b16 %v1638
    %v1829 = vunpack.c.h.b16 %v1638
    %v1830 = vunpack.c.l.b16 %v1639
    %v1831 = vunpack.c.l.b16 %v1640
    %v1832 = vunpack.c.h.b16 %v1640
    %v1833 = vunpack.c.l.b16 %v1641
    %v1834 = vunpack.c.l.b16 %v1642
    %v1835 = vunpack.c.h.b16 %v1642
    %v1836 = vunpack.c.l.b16 %v1643
    %v1837 = vunpack.c.l.b16 %v1644
    %v1838 = vunpack.c.h.b16 %v1644
    %v1839 = vunpack.c.l.b16 %v1645
    %v1840 = vunpack.c.l.b16 %v1646
    %v1841 = vunpack.c.h.b16 %v1646
    %v1842 = vunpack.c.l.b16 %v1647
    %v1843 = vpack.c.b16 %v1798, %v1795
    %v1844 = vpack.c.b16 %v1799, %v1796
    %v1845 = vpack.c.b16 %v1800, %v1797
    %v1846 = vpack.c.b16 %v1804, %v1801
    %v1847 = vpack.c.b16 %v1805, %v1802
    %v1848 = vpack.c.b16 %v1806, %v1803
    %v1849 = vpack.c.b16 %v1810, %v1807
    %v1850 = vpack.c.b16 %v1811, %v1808
    %v1851 = vpack.c.b16 %v1812, %v1809
    %v1852 = vpack.c.b16 %v1816, %v1813
    %v1853 = vpack.c.b16 %v1817, %v1814
    %v1854 = vpack.c.b16 %v1818, %v1815
    %v1855 = vpack.c.b16 %v1822, %v1819
    %v1856 = vpack.c.b16 %v1823, %v1820
    %v1857 = vpack.c.b16 %v1824, %v1821
    %v1858 = vpack.c.b16 %v1828, %v1825
    %v1859 = vpack.c.b16 %v1829, %v1826
    %v1860 = vpack.c.b16 %v1830, %v1827
    %v1861 = vpack.c.b16 %v1834, %v1831
    %v1862 = vpack.c.b16 %v1835, %v1832
    %v1863 = vpack.c.b16 %v1836, %v1833
    %v1864 = vpack.c.b16 %v1840, %v1837
    %v1865 = vpack.c.b16 %v1841, %v1838
    %v1866 = vpack.c.b16 %v1842, %v1839
    %1891 = vmatprep.subr.bf16.mxu0 %v1844
    %1892 = vmatpush1.bf16.msra.mxu0 %v1843
    %1893 = vmatprep.subr.bf16.mxu0 %v1847
    %1894 = vmatpush1.bf16.msra.mxu0 %v1846
    %1895 = vmatprep.subr.bf16.mxu0 %v1850
    %1896 = vmatpush1.bf16.msra.mxu0 %v1849
    %1897 = vmatprep.subr.bf16.mxu0 %v1853
    %1898 = vmatpush1.bf16.msra.mxu0 %v1852
    %1899 = vmatprep.subr.bf16.mxu0 %v1856
    %1900 = vmatpush1.bf16.msra.mxu0 %v1855
    %1901 = vmatprep.subr.bf16.mxu0 %v1859
    %1902 = vmatpush1.bf16.msra.mxu0 %v1858
    %1903 = vmatprep.subr.bf16.mxu0 %v1862
    %1904 = vmatpush1.bf16.msra.mxu0 %v1861
    %1905 = vmatprep.subr.bf16.mxu0 %v1865
    %1906 = vmatpush1.bf16.msra.mxu0 %v1864
    %1907 = vmatprep.subr.bf16.mxu0 0
    %1908 = vmatpush1.bf16.msra.mxu0 0
    %1909 = vmatprep.subr.bf16.mxu0 0
    %1910 = vmatpush1.bf16.msra.mxu0 0
    %1911 = vmatprep.subr.bf16.mxu0 0
    %1912 = vmatpush1.bf16.msra.mxu0 0
    %1913 = vmatprep.subr.bf16.mxu0 0
    %1914 = vmatpush1.bf16.msra.mxu0 0
    %1915 = vmatprep.subr.bf16.mxu0 0
    %1916 = vmatpush1.bf16.msra.mxu0 0
    %1917 = vmatprep.subr.bf16.mxu0 0
    %1918 = vmatpush1.bf16.msra.mxu0 0
    %1919 = vmatprep.subr.bf16.mxu0 0
    %1920 = vmatpush1.bf16.msra.mxu0 0
    %1921 = vmatprep.subr.bf16.mxu0 0
    %1922 = vmatpush1.bf16.msra.mxu0 0
    %1923 = vmatprep.mubr.bf16.mxu0 0
    %1924 = vmatmul.mubr.bf16.gmra.mrb[0].mxu0 %v1613
    %v1925 = vpop.f32.mrb[0].mxu0
    %v1926 = vadd.f32 %v1721, %v1925
    %v1927 = vpop.f32.mrb[0].mxu0
    %v1928 = vadd.f32 %v1725, %v1927
    %v1929 = vpop.f32.mrb[0].mxu0
    %v1930 = vpop.f32.mrb[0].mxu0
    %1931 = vdwg.mxu0
    %1932 = vmatprep.subr.bf16.mxu0 0
    %1933 = vmatpush1.bf16.msra.mxu0 %v1845
    %1934 = vmatprep.subr.bf16.mxu0 0
    %1935 = vmatpush1.bf16.msra.mxu0 %v1848
    %1936 = vmatprep.subr.bf16.mxu0 0
    %1937 = vmatpush1.bf16.msra.mxu0 %v1851
    %1938 = vmatprep.subr.bf16.mxu0 0
    %1939 = vmatpush1.bf16.msra.mxu0 %v1854
    %1940 = vmatprep.subr.bf16.mxu0 0
    %1941 = vmatpush1.bf16.msra.mxu0 %v1857
    %1942 = vmatprep.subr.bf16.mxu0 0
    %1943 = vmatpush1.bf16.msra.mxu0 %v1860
    %1944 = vmatprep.subr.bf16.mxu0 0
    %1945 = vmatpush1.bf16.msra.mxu0 %v1863
    %1946 = vmatprep.subr.bf16.mxu0 0
    %1947 = vmatpush1.bf16.msra.mxu0 %v1866
    %1948 = vmatprep.subr.bf16.mxu0 0
    %1949 = vmatpush1.bf16.msra.mxu0 0
    %1950 = vmatprep.subr.bf16.mxu0 0
    %1951 = vmatpush1.bf16.msra.mxu0 0
    %1952 = vmatprep.subr.bf16.mxu0 0
    %1953 = vmatpush1.bf16.msra.mxu0 0
    %1954 = vmatprep.subr.bf16.mxu0 0
    %1955 = vmatpush1.bf16.msra.mxu0 0
    %1956 = vmatprep.subr.bf16.mxu0 0
    %1957 = vmatpush1.bf16.msra.mxu0 0
    %1958 = vmatprep.subr.bf16.mxu0 0
    %1959 = vmatpush1.bf16.msra.mxu0 0
    %1960 = vmatprep.subr.bf16.mxu0 0
    %1961 = vmatpush1.bf16.msra.mxu0 0
    %1962 = vmatprep.subr.bf16.mxu0 0
    %1963 = vmatpush1.bf16.msra.mxu0 0
    %1964 = vmatprep.mubr.bf16.mxu0 0
    %1965 = vmatmul.mubr.bf16.gmra.mrb[0].mxu0 %v1613
    %v1966 = vpop.f32.mrb[0].mxu0
    %v1967 = vadd.f32 %v1729, %v1966
    %v1968 = vpop.f32.mrb[0].mxu0
    %v1969 = vpop.f32.mrb[0].mxu0
    %v1970 = vpop.f32.mrb[0].mxu0
    %1971 = vdwg.mxu0
    %v2004 = vunpack.c.l.b16 %v1648
    %v2005 = vunpack.c.h.b16 %v1648
    %v2006 = vunpack.c.l.b16 %v1649
    %v2007 = vunpack.c.l.b16 %v1650
    %v2008 = vunpack.c.h.b16 %v1650
    %v2009 = vunpack.c.l.b16 %v1651
    %v2010 = vunpack.c.l.b16 %v1652
    %v2011 = vunpack.c.h.b16 %v1652
    %v2012 = vunpack.c.l.b16 %v1653
    %v2013 = vunpack.c.l.b16 %v1654
    %v2014 = vunpack.c.h.b16 %v1654
    %v2015 = vunpack.c.l.b16 %v1655
    %v2016 = vunpack.c.l.b16 %v1656
    %v2017 = vunpack.c.h.b16 %v1656
    %v2018 = vunpack.c.l.b16 %v1657
    %v2019 = vunpack.c.l.b16 %v1658
    %v2020 = vunpack.c.h.b16 %v1658
    %v2021 = vunpack.c.l.b16 %v1659
    %v2022 = vunpack.c.l.b16 %v1660
    %v2023 = vunpack.c.h.b16 %v1660
    %v2024 = vunpack.c.l.b16 %v1661
    %v2025 = vunpack.c.l.b16 %v1662
    %v2026 = vunpack.c.h.b16 %v1662
    %v2027 = vunpack.c.l.b16 %v1663
    %v2028 = vunpack.c.l.b16 %v1664
    %v2029 = vunpack.c.h.b16 %v1664
    %v2030 = vunpack.c.l.b16 %v1665
    %v2031 = vunpack.c.l.b16 %v1666
    %v2032 = vunpack.c.h.b16 %v1666
    %v2033 = vunpack.c.l.b16 %v1667
    %v2034 = vunpack.c.l.b16 %v1668
    %v2035 = vunpack.c.h.b16 %v1668
    %v2036 = vunpack.c.l.b16 %v1669
    %v2037 = vunpack.c.l.b16 %v1670
    %v2038 = vunpack.c.h.b16 %v1670
    %v2039 = vunpack.c.l.b16 %v1671
    %v2040 = vunpack.c.l.b16 %v1672
    %v2041 = vunpack.c.h.b16 %v1672
    %v2042 = vunpack.c.l.b16 %v1673
    %v2043 = vunpack.c.l.b16 %v1674
    %v2044 = vunpack.c.h.b16 %v1674
    %v2045 = vunpack.c.l.b16 %v1675
    %v2046 = vunpack.c.l.b16 %v1676
    %v2047 = vunpack.c.h.b16 %v1676
    %v2048 = vunpack.c.l.b16 %v1677
    %v2049 = vunpack.c.l.b16 %v1678
    %v2050 = vunpack.c.h.b16 %v1678
    %v2051 = vunpack.c.l.b16 %v1679
    %v2052 = vpack.c.b16 %v2007, %v2004
    %v2053 = vpack.c.b16 %v2008, %v2005
    %v2054 = vpack.c.b16 %v2009, %v2006
    %v2055 = vpack.c.b16 %v2013, %v2010
    %v2056 = vpack.c.b16 %v2014, %v2011
    %v2057 = vpack.c.b16 %v2015, %v2012
    %v2058 = vpack.c.b16 %v2019, %v2016
    %v2059 = vpack.c.b16 %v2020, %v2017
    %v2060 = vpack.c.b16 %v2021, %v2018
    %v2061 = vpack.c.b16 %v2025, %v2022
    %v2062 = vpack.c.b16 %v2026, %v2023
    %v2063 = vpack.c.b16 %v2027, %v2024
    %v2064 = vpack.c.b16 %v2031, %v2028
    %v2065 = vpack.c.b16 %v2032, %v2029
    %v2066 = vpack.c.b16 %v2033, %v2030
    %v2067 = vpack.c.b16 %v2037, %v2034
    %v2068 = vpack.c.b16 %v2038, %v2035
    %v2069 = vpack.c.b16 %v2039, %v2036
    %v2070 = vpack.c.b16 %v2043, %v2040
    %v2071 = vpack.c.b16 %v2044, %v2041
    %v2072 = vpack.c.b16 %v2045, %v2042
    %v2073 = vpack.c.b16 %v2049, %v2046
    %v2074 = vpack.c.b16 %v2050, %v2047
    %v2075 = vpack.c.b16 %v2051, %v2048
    %2100 = vmatprep.subr.bf16.mxu0 %v2053
    %2101 = vmatpush1.bf16.msra.mxu0 %v2052
    %2102 = vmatprep.subr.bf16.mxu0 %v2056
    %2103 = vmatpush1.bf16.msra.mxu0 %v2055
    %2104 = vmatprep.subr.bf16.mxu0 %v2059
    %2105 = vmatpush1.bf16.msra.mxu0 %v2058
    %2106 = vmatprep.subr.bf16.mxu0 %v2062
    %2107 = vmatpush1.bf16.msra.mxu0 %v2061
    %2108 = vmatprep.subr.bf16.mxu0 %v2065
    %2109 = vmatpush1.bf16.msra.mxu0 %v2064
    %2110 = vmatprep.subr.bf16.mxu0 %v2068
    %2111 = vmatpush1.bf16.msra.mxu0 %v2067
    %2112 = vmatprep.subr.bf16.mxu0 %v2071
    %2113 = vmatpush1.bf16.msra.mxu0 %v2070
    %2114 = vmatprep.subr.bf16.mxu0 %v2074
    %2115 = vmatpush1.bf16.msra.mxu0 %v2073
    %2116 = vmatprep.subr.bf16.mxu0 0
    %2117 = vmatpush1.bf16.msra.mxu0 0
    %2118 = vmatprep.subr.bf16.mxu0 0
    %2119 = vmatpush1.bf16.msra.mxu0 0
    %2120 = vmatprep.subr.bf16.mxu0 0
    %2121 = vmatpush1.bf16.msra.mxu0 0
    %2122 = vmatprep.subr.bf16.mxu0 0
    %2123 = vmatpush1.bf16.msra.mxu0 0
    %2124 = vmatprep.subr.bf16.mxu0 0
    %2125 = vmatpush1.bf16.msra.mxu0 0
    %2126 = vmatprep.subr.bf16.mxu0 0
    %2127 = vmatpush1.bf16.msra.mxu0 0
    %2128 = vmatprep.subr.bf16.mxu0 0
    %2129 = vmatpush1.bf16.msra.mxu0 0
    %2130 = vmatprep.subr.bf16.mxu0 0
    %2131 = vmatpush1.bf16.msra.mxu0 0
    %2132 = vmatprep.mubr.bf16.mxu0 0
    %2133 = vmatmul.mubr.bf16.gmra.mrb[0].mxu0 %v1614
    %v2134 = vpop.f32.mrb[0].mxu0
    %v2135 = vadd.f32 %v1733, %v2134
    %v2136 = vpop.f32.mrb[0].mxu0
    %v2137 = vadd.f32 %v1737, %v2136
    %v2138 = vpop.f32.mrb[0].mxu0
    %v2139 = vpop.f32.mrb[0].mxu0
    %2140 = vdwg.mxu0
    %2141 = vmatprep.subr.bf16.mxu0 0
    %2142 = vmatpush1.bf16.msra.mxu0 %v2054
    %2143 = vmatprep.subr.bf16.mxu0 0
    %2144 = vmatpush1.bf16.msra.mxu0 %v2057
    %2145 = vmatprep.subr.bf16.mxu0 0
    %2146 = vmatpush1.bf16.msra.mxu0 %v2060
    %2147 = vmatprep.subr.bf16.mxu0 0
    %2148 = vmatpush1.bf16.msra.mxu0 %v2063
    %2149 = vmatprep.subr.bf16.mxu0 0
    %2150 = vmatpush1.bf16.msra.mxu0 %v2066
    %2151 = vmatprep.subr.bf16.mxu0 0
    %2152 = vmatpush1.bf16.msra.mxu0 %v2069
    %2153 = vmatprep.subr.bf16.mxu0 0
    %2154 = vmatpush1.bf16.msra.mxu0 %v2072
    %2155 = vmatprep.subr.bf16.mxu0 0
    %2156 = vmatpush1.bf16.msra.mxu0 %v2075
    %2157 = vmatprep.subr.bf16.mxu0 0
    %2158 = vmatpush1.bf16.msra.mxu0 0
    %2159 = vmatprep.subr.bf16.mxu0 0
    %2160 = vmatpush1.bf16.msra.mxu0 0
    %2161 = vmatprep.subr.bf16.mxu0 0
    %2162 = vmatpush1.bf16.msra.mxu0 0
    %2163 = vmatprep.subr.bf16.mxu0 0
    %2164 = vmatpush1.bf16.msra.mxu0 0
    %2165 = vmatprep.subr.bf16.mxu0 0
    %2166 = vmatpush1.bf16.msra.mxu0 0
    %2167 = vmatprep.subr.bf16.mxu0 0
    %2168 = vmatpush1.bf16.msra.mxu0 0
    %2169 = vmatprep.subr.bf16.mxu0 0
    %2170 = vmatpush1.bf16.msra.mxu0 0
    %2171 = vmatprep.subr.bf16.mxu0 0
    %2172 = vmatpush1.bf16.msra.mxu0 0
    %2173 = vmatprep.mubr.bf16.mxu0 0
    %2174 = vmatmul.mubr.bf16.gmra.mrb[0].mxu0 %v1614
    %v2175 = vpop.f32.mrb[0].mxu0
    %v2176 = vadd.f32 %v1741, %v2175
    %v2177 = vpop.f32.mrb[0].mxu0
    %v2178 = vpop.f32.mrb[0].mxu0
    %v2179 = vpop.f32.mrb[0].mxu0
    %2180 = vdwg.mxu0
    %v2213 = vunpack.c.l.b16 %v1680
    %v2214 = vunpack.c.h.b16 %v1680
    %v2215 = vunpack.c.l.b16 %v1681
    %v2216 = vunpack.c.l.b16 %v1682
    %v2217 = vunpack.c.h.b16 %v1682
    %v2218 = vunpack.c.l.b16 %v1683
    %v2219 = vunpack.c.l.b16 %v1684
    %v2220 = vunpack.c.h.b16 %v1684
    %v2221 = vunpack.c.l.b16 %v1685
    %v2222 = vunpack.c.l.b16 %v1686
    %v2223 = vunpack.c.h.b16 %v1686
    %v2224 = vunpack.c.l.b16 %v1687
    %v2225 = vunpack.c.l.b16 %v1688
    %v2226 = vunpack.c.h.b16 %v1688
    %v2227 = vunpack.c.l.b16 %v1689
    %v2228 = vunpack.c.l.b16 %v1690
    %v2229 = vunpack.c.h.b16 %v1690
    %v2230 = vunpack.c.l.b16 %v1691
    %v2231 = vunpack.c.l.b16 %v1692
    %v2232 = vunpack.c.h.b16 %v1692
    %v2233 = vunpack.c.l.b16 %v1693
    %v2234 = vunpack.c.l.b16 %v1694
    %v2235 = vunpack.c.h.b16 %v1694
    %v2236 = vunpack.c.l.b16 %v1695
    %v2237 = vunpack.c.l.b16 %v1696
    %v2238 = vunpack.c.h.b16 %v1696
    %v2239 = vunpack.c.l.b16 %v1697
    %v2240 = vunpack.c.l.b16 %v1698
    %v2241 = vunpack.c.h.b16 %v1698
    %v2242 = vunpack.c.l.b16 %v1699
    %v2243 = vunpack.c.l.b16 %v1700
    %v2244 = vunpack.c.h.b16 %v1700
    %v2245 = vunpack.c.l.b16 %v1701
    %v2246 = vunpack.c.l.b16 %v1702
    %v2247 = vunpack.c.h.b16 %v1702
    %v2248 = vunpack.c.l.b16 %v1703
    %v2249 = vunpack.c.l.b16 %v1704
    %v2250 = vunpack.c.h.b16 %v1704
    %v2251 = vunpack.c.l.b16 %v1705
    %v2252 = vunpack.c.l.b16 %v1706
    %v2253 = vunpack.c.h.b16 %v1706
    %v2254 = vunpack.c.l.b16 %v1707
    %v2255 = vunpack.c.l.b16 %v1708
    %v2256 = vunpack.c.h.b16 %v1708
    %v2257 = vunpack.c.l.b16 %v1709
    %v2258 = vunpack.c.l.b16 %v1710
    %v2259 = vunpack.c.h.b16 %v1710
    %v2260 = vunpack.c.l.b16 %v1711
    %v2261 = vpack.c.b16 %v2216, %v2213
    %v2262 = vpack.c.b16 %v2217, %v2214
    %v2263 = vpack.c.b16 %v2218, %v2215
    %v2264 = vpack.c.b16 %v2222, %v2219
    %v2265 = vpack.c.b16 %v2223, %v2220
    %v2266 = vpack.c.b16 %v2224, %v2221
    %v2267 = vpack.c.b16 %v2228, %v2225
    %v2268 = vpack.c.b16 %v2229, %v2226
    %v2269 = vpack.c.b16 %v2230, %v2227
    %v2270 = vpack.c.b16 %v2234, %v2231
    %v2271 = vpack.c.b16 %v2235, %v2232
    %v2272 = vpack.c.b16 %v2236, %v2233
    %v2273 = vpack.c.b16 %v2240, %v2237
    %v2274 = vpack.c.b16 %v2241, %v2238
    %v2275 = vpack.c.b16 %v2242, %v2239
    %v2276 = vpack.c.b16 %v2246, %v2243
    %v2277 = vpack.c.b16 %v2247, %v2244
    %v2278 = vpack.c.b16 %v2248, %v2245
    %v2279 = vpack.c.b16 %v2252, %v2249
    %v2280 = vpack.c.b16 %v2253, %v2250
    %v2281 = vpack.c.b16 %v2254, %v2251
    %v2282 = vpack.c.b16 %v2258, %v2255
    %v2283 = vpack.c.b16 %v2259, %v2256
    %v2284 = vpack.c.b16 %v2260, %v2257
    %2309 = vmatprep.subr.bf16.mxu0 %v2262
    %2310 = vmatpush1.bf16.msra.mxu0 %v2261
    %2311 = vmatprep.subr.bf16.mxu0 %v2265
    %2312 = vmatpush1.bf16.msra.mxu0 %v2264
    %2313 = vmatprep.subr.bf16.mxu0 %v2268
    %2314 = vmatpush1.bf16.msra.mxu0 %v2267
    %2315 = vmatprep.subr.bf16.mxu0 %v2271
    %2316 = vmatpush1.bf16.msra.mxu0 %v2270
    %2317 = vmatprep.subr.bf16.mxu0 %v2274
    %2318 = vmatpush1.bf16.msra.mxu0 %v2273
    %2319 = vmatprep.subr.bf16.mxu0 %v2277
    %2320 = vmatpush1.bf16.msra.mxu0 %v2276
    %2321 = vmatprep.subr.bf16.mxu0 %v2280
    %2322 = vmatpush1.bf16.msra.mxu0 %v2279
    %2323 = vmatprep.subr.bf16.mxu0 %v2283
    %2324 = vmatpush1.bf16.msra.mxu0 %v2282
    %2325 = vmatprep.subr.bf16.mxu0 0
    %2326 = vmatpush1.bf16.msra.mxu0 0
    %2327 = vmatprep.subr.bf16.mxu0 0
    %2328 = vmatpush1.bf16.msra.mxu0 0
    %2329 = vmatprep.subr.bf16.mxu0 0
    %2330 = vmatpush1.bf16.msra.mxu0 0
    %2331 = vmatprep.subr.bf16.mxu0 0
    %2332 = vmatpush1.bf16.msra.mxu0 0
    %2333 = vmatprep.subr.bf16.mxu0 0
    %2334 = vmatpush1.bf16.msra.mxu0 0
    %2335 = vmatprep.subr.bf16.mxu0 0
    %2336 = vmatpush1.bf16.msra.mxu0 0
    %2337 = vmatprep.subr.bf16.mxu0 0
    %2338 = vmatpush1.bf16.msra.mxu0 0
    %2339 = vmatprep.subr.bf16.mxu0 0
    %2340 = vmatpush1.bf16.msra.mxu0 0
    %2341 = vmatprep.mubr.bf16.mxu0 0
    %2342 = vmatmul.mubr.bf16.gmra.mrb[0].mxu0 %v1615
    %v2343 = vpop.f32.mrb[0].mxu0
    %v2344 = vadd.f32 %v1745, %v2343
    %v2345 = vpop.f32.mrb[0].mxu0
    %v2346 = vadd.f32 %v1749, %v2345
    %v2347 = vpop.f32.mrb[0].mxu0
    %v2348 = vpop.f32.mrb[0].mxu0
    %2349 = vdwg.mxu0
    %2350 = vmatprep.subr.bf16.mxu0 0
    %2351 = vmatpush1.bf16.msra.mxu0 %v2263
    %2352 = vmatprep.subr.bf16.mxu0 0
    %2353 = vmatpush1.bf16.msra.mxu0 %v2266
    %2354 = vmatprep.subr.bf16.mxu0 0
    %2355 = vmatpush1.bf16.msra.mxu0 %v2269
    %2356 = vmatprep.subr.bf16.mxu0 0
    %2357 = vmatpush1.bf16.msra.mxu0 %v2272
    %2358 = vmatprep.subr.bf16.mxu0 0
    %2359 = vmatpush1.bf16.msra.mxu0 %v2275
    %2360 = vmatprep.subr.bf16.mxu0 0
    %2361 = vmatpush1.bf16.msra.mxu0 %v2278
    %2362 = vmatprep.subr.bf16.mxu0 0
    %2363 = vmatpush1.bf16.msra.mxu0 %v2281
    %2364 = vmatprep.subr.bf16.mxu0 0
    %2365 = vmatpush1.bf16.msra.mxu0 %v2284
    %2366 = vmatprep.subr.bf16.mxu0 0
    %2367 = vmatpush1.bf16.msra.mxu0 0
    %2368 = vmatprep.subr.bf16.mxu0 0
    %2369 = vmatpush1.bf16.msra.mxu0 0
    %2370 = vmatprep.subr.bf16.mxu0 0
    %2371 = vmatpush1.bf16.msra.mxu0 0
    %2372 = vmatprep.subr.bf16.mxu0 0
    %2373 = vmatpush1.bf16.msra.mxu0 0
    %2374 = vmatprep.subr.bf16.mxu0 0
    %2375 = vmatpush1.bf16.msra.mxu0 0
    %2376 = vmatprep.subr.bf16.mxu0 0
    %2377 = vmatpush1.bf16.msra.mxu0 0
    %2378 = vmatprep.subr.bf16.mxu0 0
    %2379 = vmatpush1.bf16.msra.mxu0 0
    %2380 = vmatprep.subr.bf16.mxu0 0
    %2381 = vmatpush1.bf16.msra.mxu0 0
    %2382 = vmatprep.mubr.bf16.mxu0 0
    %2383 = vmatmul.mubr.bf16.gmra.mrb[0].mxu0 %v1615
    %v2384 = vpop.f32.mrb[0].mxu0
    %v2385 = vadd.f32 %v1753, %v2384
    %v2386 = vpop.f32.mrb[0].mxu0
    %v2387 = vpop.f32.mrb[0].mxu0
    %v2388 = vpop.f32.mrb[0].mxu0
    %2389 = vdwg.mxu0
    %v2390 = vmax.f32 %v1926, 0.0
    %v2391 = vmax.f32 %v1928, 0.0
    %v2392 = vmax.f32 %v1967, 0.0
    %v2393 = vmax.f32 %v2135, 0.0
    %v2394 = vmax.f32 %v2137, 0.0
    %v2395 = vmax.f32 %v2176, 0.0
    %v2396 = vmax.f32 %v2344, 0.0
    %v2397 = vmax.f32 %v2346, 0.0
    %v2398 = vmax.f32 %v2385, 0.0
    %v2399 = vpack.c.bf16 %v2390, %v2390
    %v2400 = vpack.c.bf16 %v2391, %v2391
    %v2401 = vpack.c.bf16 %v2392, %v2392
    %v2402 = vpack.c.bf16 %v2393, %v2393
    %v2403 = vpack.c.bf16 %v2394, %v2394
    %v2404 = vpack.c.bf16 %v2395, %v2395
    %v2405 = vpack.c.bf16 %v2396, %v2396
    %v2406 = vpack.c.bf16 %v2397, %v2397
    %v2407 = vpack.c.bf16 %v2398, %v2398
    %v2408 = vld [vmem:[#allocation14] sm:$0xff]
    %v2409 = vld [vmem:[#allocation14 + $0x8] sm:$0xff]
    %v2410 = vld [vmem:[#allocation14 + $0x10] sm:$0xff]
    %v2411 = vld [vmem:[#allocation14 + $0x18] sm:$0xff]
    %v2412 = vld [vmem:[#allocation14 + $0x20] sm:$0xff]
    %v2413 = vld [vmem:[#allocation14 + $0x28] sm:$0xff]
    %v2414 = vld [vmem:[#allocation14 + $0x30] sm:$0xff]
    %v2415 = vld [vmem:[#allocation14 + $0x38] sm:$0xff]
    %v2416 = vld [vmem:[#allocation14 + $0x40] sm:$0xff]
    %v2417 = vld [vmem:[#allocation14 + $0x48] sm:$0xff]
    %v2418 = vld [vmem:[#allocation14 + $0x50] sm:$0xff]
    %v2419 = vld [vmem:[#allocation14 + $0x58] sm:$0xff]
    %v2420 = vld [vmem:[#allocation14 + $0x60] sm:$0xff]
    %v2421 = vld [vmem:[#allocation14 + $0x68] sm:$0xff]
    %v2422 = vld [vmem:[#allocation14 + $0x70] sm:$0xff]
    %v2423 = vld [vmem:[#allocation14 + $0x78] sm:$0xff]
    %v2424 = vld [vmem:[#allocation14 + $0x80] sm:$0xff]
    %v2425 = vld [vmem:[#allocation14 + $0x88] sm:$0xff]
    %v2426 = vld [vmem:[#allocation14 + $0x90] sm:$0xff]
    %v2427 = vld [vmem:[#allocation14 + $0x98] sm:$0xff]
    %v2428 = vld [vmem:[#allocation14 + $0xa0] sm:$0xff]
    %v2429 = vld [vmem:[#allocation14 + $0xa8] sm:$0xff]
    %v2430 = vld [vmem:[#allocation14 + $0xb0] sm:$0xff]
    %v2431 = vld [vmem:[#allocation14 + $0xb8] sm:$0xff]
    %v2432 = vld [vmem:[#allocation14 + $0xc0] sm:$0xff]
    %v2433 = vld [vmem:[#allocation14 + $0xc8] sm:$0xff]
    %v2434 = vld [vmem:[#allocation14 + $0xd0] sm:$0xff]
    %v2435 = vld [vmem:[#allocation14 + $0xd8] sm:$0xff]
    %v2436 = vld [vmem:[#allocation14 + $0xe0] sm:$0xff]
    %v2437 = vld [vmem:[#allocation14 + $0xe8] sm:$0xff]
    %v2438 = vld [vmem:[#allocation14 + $0xf0] sm:$0xff]
    %v2439 = vld [vmem:[#allocation14 + $0xf8] sm:$0xff]
    %v2440 = vld [vmem:[#allocation14 + $0x100] sm:$0xff]
    %v2441 = vld [vmem:[#allocation14 + $0x108] sm:$0xff]
    %v2442 = vld [vmem:[#allocation14 + $0x110] sm:$0xff]
    %v2443 = vld [vmem:[#allocation14 + $0x118] sm:$0xff]
    %v2444 = vld [vmem:[#allocation14 + $0x120] sm:$0xff]
    %v2445 = vld [vmem:[#allocation14 + $0x128] sm:$0xff]
    %v2446 = vld [vmem:[#allocation14 + $0x130] sm:$0xff]
    %v2447 = vld [vmem:[#allocation14 + $0x138] sm:$0xff]
    %v2448 = vld [vmem:[#allocation14 + $0x140] sm:$0xff]
    %v2449 = vld [vmem:[#allocation14 + $0x148] sm:$0xff]
    %v2450 = vld [vmem:[#allocation14 + $0x150] sm:$0xff]
    %v2451 = vld [vmem:[#allocation14 + $0x158] sm:$0xff]
    %v2452 = vld [vmem:[#allocation14 + $0x160] sm:$0xff]
    %v2453 = vld [vmem:[#allocation14 + $0x168] sm:$0xff]
    %v2454 = vld [vmem:[#allocation14 + $0x170] sm:$0xff]
    %v2455 = vld [vmem:[#allocation14 + $0x178] sm:$0xff]
    %v2456 = vld [vmem:[#allocation14 + $0x180] sm:$0xff]
    %v2457 = vld [vmem:[#allocation14 + $0x188] sm:$0xff]
    %v2458 = vld [vmem:[#allocation14 + $0x190] sm:$0xff]
    %v2459 = vld [vmem:[#allocation14 + $0x198] sm:$0xff]
    %v2460 = vld [vmem:[#allocation14 + $0x1a0] sm:$0xff]
    %v2461 = vld [vmem:[#allocation14 + $0x1a8] sm:$0xff]
    %v2462 = vld [vmem:[#allocation14 + $0x1b0] sm:$0xff]
    %v2463 = vld [vmem:[#allocation14 + $0x1b8] sm:$0xff]
    %v2464 = vld [vmem:[#allocation14 + $0x1c0] sm:$0xff]
    %v2465 = vld [vmem:[#allocation14 + $0x1c8] sm:$0xff]
    %v2466 = vld [vmem:[#allocation14 + $0x1d0] sm:$0xff]
    %v2467 = vld [vmem:[#allocation14 + $0x1d8] sm:$0xff]
    %v2468 = vld [vmem:[#allocation14 + $0x1e0] sm:$0xff]
    %v2469 = vld [vmem:[#allocation14 + $0x1e8] sm:$0xff]
    %v2470 = vld [vmem:[#allocation14 + $0x1f0] sm:$0xff]
    %v2471 = vld [vmem:[#allocation14 + $0x1f8] sm:$0xff]
    %v2472 = vld [vmem:[#allocation14 + $0x200] sm:$0xff]
    %v2473 = vld [vmem:[#allocation14 + $0x208] sm:$0xff]
    %v2474 = vld [vmem:[#allocation14 + $0x210] sm:$0xff]
    %v2475 = vld [vmem:[#allocation14 + $0x218] sm:$0xff]
    %v2476 = vld [vmem:[#allocation14 + $0x220] sm:$0xff]
    %v2477 = vld [vmem:[#allocation14 + $0x228] sm:$0xff]
    %v2478 = vld [vmem:[#allocation14 + $0x230] sm:$0xff]
    %v2479 = vld [vmem:[#allocation14 + $0x238] sm:$0xff]
    %v2480 = vld [vmem:[#allocation14 + $0x240] sm:$0xff]
    %v2481 = vld [vmem:[#allocation14 + $0x248] sm:$0xff]
    %v2482 = vld [vmem:[#allocation14 + $0x250] sm:$0xff]
    %v2483 = vld [vmem:[#allocation14 + $0x258] sm:$0xff]
    %v2484 = vld [vmem:[#allocation14 + $0x260] sm:$0xff]
    %v2485 = vld [vmem:[#allocation14 + $0x268] sm:$0xff]
    %v2486 = vld [vmem:[#allocation14 + $0x270] sm:$0xff]
    %v2487 = vld [vmem:[#allocation14 + $0x278] sm:$0xff]
    %v2488 = vld [vmem:[#allocation14 + $0x280] sm:$0xff]
    %v2489 = vld [vmem:[#allocation14 + $0x288] sm:$0xff]
    %v2490 = vld [vmem:[#allocation14 + $0x290] sm:$0xff]
    %v2491 = vld [vmem:[#allocation14 + $0x298] sm:$0xff]
    %v2492 = vld [vmem:[#allocation14 + $0x2a0] sm:$0xff]
    %v2493 = vld [vmem:[#allocation14 + $0x2a8] sm:$0xff]
    %v2494 = vld [vmem:[#allocation14 + $0x2b0] sm:$0xff]
    %v2495 = vld [vmem:[#allocation14 + $0x2b8] sm:$0xff]
    %v2496 = vld [vmem:[#allocation14 + $0x2c0] sm:$0xff]
    %v2497 = vld [vmem:[#allocation14 + $0x2c8] sm:$0xff]
    %v2498 = vld [vmem:[#allocation14 + $0x2d0] sm:$0xff]
    %v2499 = vld [vmem:[#allocation14 + $0x2d8] sm:$0xff]
    %v2500 = vld [vmem:[#allocation14 + $0x2e0] sm:$0xff]
    %v2501 = vld [vmem:[#allocation14 + $0x2e8] sm:$0xff]
    %v2502 = vld [vmem:[#allocation14 + $0x2f0] sm:$0xff]
    %v2503 = vld [vmem:[#allocation14 + $0x2f8] sm:$0xff]
    %v2504 = vld [vmem:[#allocation14 + $0x300] sm:$0xff]
    %v2505 = vld [vmem:[#allocation14 + $0x308] sm:$0xff]
    %v2506 = vld [vmem:[#allocation14 + $0x310] sm:$0xff]
    %v2507 = vld [vmem:[#allocation14 + $0x318] sm:$0xff]
    %v2508 = vld [vmem:[#allocation14 + $0x320] sm:$0xff]
    %v2509 = vld [vmem:[#allocation14 + $0x328] sm:$0xff]
    %v2510 = vld [vmem:[#allocation14 + $0x330] sm:$0xff]
    %v2511 = vld [vmem:[#allocation14 + $0x338] sm:$0xff]
    %v2512 = vld [vmem:[#allocation14 + $0x340] sm:$0xff]
    %v2513 = vld [vmem:[#allocation14 + $0x348] sm:$0xff]
    %v2514 = vld [vmem:[#allocation14 + $0x350] sm:$0xff]
    %v2515 = vld [vmem:[#allocation14 + $0x358] sm:$0xff]
    %v2516 = vld [vmem:[#allocation14 + $0x360] sm:$0xff]
    %v2517 = vld [vmem:[#allocation14 + $0x368] sm:$0xff]
    %v2518 = vld [vmem:[#allocation14 + $0x370] sm:$0xff]
    %v2519 = vld [vmem:[#allocation14 + $0x378] sm:$0xff]
    %v2520 = vld [vmem:[#allocation14 + $0x380] sm:$0xff]
    %v2521 = vld [vmem:[#allocation14 + $0x388] sm:$0xff]
    %v2522 = vld [vmem:[#allocation14 + $0x390] sm:$0xff]
    %v2523 = vld [vmem:[#allocation14 + $0x398] sm:$0xff]
    %v2524 = vld [vmem:[#allocation14 + $0x3a0] sm:$0xff]
    %v2525 = vld [vmem:[#allocation14 + $0x3a8] sm:$0xff]
    %v2526 = vld [vmem:[#allocation14 + $0x3b0] sm:$0xff]
    %v2527 = vld [vmem:[#allocation14 + $0x3b8] sm:$0xff]
    %v2528 = vld [vmem:[#allocation14 + $0x3c0] sm:$0xff]
    %v2529 = vld [vmem:[#allocation14 + $0x3c8] sm:$0xff]
    %v2530 = vld [vmem:[#allocation14 + $0x3d0] sm:$0xff]
    %v2531 = vld [vmem:[#allocation14 + $0x3d8] sm:$0xff]
    %v2532 = vld [vmem:[#allocation14 + $0x3e0] sm:$0xff]
    %v2533 = vld [vmem:[#allocation14 + $0x3e8] sm:$0xff]
    %v2534 = vld [vmem:[#allocation14 + $0x3f0] sm:$0xff]
    %v2535 = vld [vmem:[#allocation14 + $0x3f8] sm:$0xff]
    %v2536 = vld [vmem:[#allocation14 + $0x400] sm:$0xff]
    %v2537 = vld [vmem:[#allocation14 + $0x408] sm:$0xff]
    %v2538 = vld [vmem:[#allocation14 + $0x410] sm:$0xff]
    %v2539 = vld [vmem:[#allocation14 + $0x418] sm:$0xff]
    %v2540 = vld [vmem:[#allocation14 + $0x420] sm:$0xff]
    %v2541 = vld [vmem:[#allocation14 + $0x428] sm:$0xff]
    %v2542 = vld [vmem:[#allocation14 + $0x430] sm:$0xff]
    %v2543 = vld [vmem:[#allocation14 + $0x438] sm:$0xff]
    %v2544 = vld [vmem:[#allocation14 + $0x440] sm:$0xff]
    %v2545 = vld [vmem:[#allocation14 + $0x448] sm:$0xff]
    %v2546 = vld [vmem:[#allocation14 + $0x450] sm:$0xff]
    %v2547 = vld [vmem:[#allocation14 + $0x458] sm:$0xff]
    %v2548 = vld [vmem:[#allocation14 + $0x460] sm:$0xff]
    %v2549 = vld [vmem:[#allocation14 + $0x468] sm:$0xff]
    %v2550 = vld [vmem:[#allocation14 + $0x470] sm:$0xff]
    %v2551 = vld [vmem:[#allocation14 + $0x478] sm:$0xff]
    %v2552 = vld [vmem:[#allocation16] sm:$0x3]
    %v2553 = vld [vmem:[#allocation16 + $0x2] sm:$0x3]
    %v2554 = vld [vmem:[#allocation16 + $0x4] sm:$0x3]
    %v2558 = vlaneseq
    %v2559 = vshrl.u32 %v2558, 7
    %v2560 = vsub.s32 0, %v2559
    %v2561 = vrot.slane %v2552, %v2560
    %v2562 = vlaneseq
    %v2563 = vshrl.u32 %v2562, 7
    %v2564 = vsub.s32 1, %v2563
    %v2565 = vrot.slane %v2552, %v2564
    %v2566 = vlaneseq
    %v2567 = vshrl.u32 %v2566, 7
    %v2568 = vsub.s32 0, %v2567
    %v2569 = vrot.slane %v2553, %v2568
    %v2570 = vlaneseq
    %v2571 = vshrl.u32 %v2570, 7
    %v2572 = vsub.s32 1, %v2571
    %v2573 = vrot.slane %v2553, %v2572
    %v2574 = vlaneseq
    %v2575 = vshrl.u32 %v2574, 7
    %v2576 = vsub.s32 0, %v2575
    %v2577 = vrot.slane %v2554, %v2576
    %v2578 = vlaneseq
    %v2579 = vshrl.u32 %v2578, 7
    %v2580 = vsub.s32 1, %v2579
    %v2581 = vrot.slane %v2554, %v2580
    %v2636 = vunpack.c.l.b16 %v2408
    %v2637 = vunpack.c.h.b16 %v2408
    %v2638 = vunpack.c.l.b16 %v2409
    %v2639 = vunpack.c.h.b16 %v2409
    %v2640 = vunpack.c.l.b16 %v2410
    %v2641 = vunpack.c.h.b16 %v2410
    %v2642 = vunpack.c.l.b16 %v2411
    %v2643 = vunpack.c.h.b16 %v2411
    %v2644 = vunpack.c.l.b16 %v2412
    %v2645 = vunpack.c.h.b16 %v2412
    %v2646 = vunpack.c.l.b16 %v2413
    %v2647 = vunpack.c.h.b16 %v2413
    %v2648 = vunpack.c.l.b16 %v2414
    %v2649 = vunpack.c.h.b16 %v2414
    %v2650 = vunpack.c.l.b16 %v2415
    %v2651 = vunpack.c.h.b16 %v2415
    %v2652 = vunpack.c.l.b16 %v2416
    %v2653 = vunpack.c.h.b16 %v2416
    %v2654 = vunpack.c.l.b16 %v2417
    %v2655 = vunpack.c.h.b16 %v2417
    %v2656 = vunpack.c.l.b16 %v2418
    %v2657 = vunpack.c.h.b16 %v2418
    %v2658 = vunpack.c.l.b16 %v2419
    %v2659 = vunpack.c.h.b16 %v2419
    %v2660 = vunpack.c.l.b16 %v2420
    %v2661 = vunpack.c.h.b16 %v2420
    %v2662 = vunpack.c.l.b16 %v2421
    %v2663 = vunpack.c.h.b16 %v2421
    %v2664 = vunpack.c.l.b16 %v2422
    %v2665 = vunpack.c.h.b16 %v2422
    %v2666 = vunpack.c.l.b16 %v2423
    %v2667 = vunpack.c.h.b16 %v2423
    %v2668 = vunpack.c.l.b16 %v2424
    %v2669 = vunpack.c.h.b16 %v2424
    %v2670 = vunpack.c.l.b16 %v2425
    %v2671 = vunpack.c.h.b16 %v2425
    %v2672 = vunpack.c.l.b16 %v2426
    %v2673 = vunpack.c.h.b16 %v2426
    %v2674 = vunpack.c.l.b16 %v2427
    %v2675 = vunpack.c.h.b16 %v2427
    %v2676 = vunpack.c.l.b16 %v2428
    %v2677 = vunpack.c.h.b16 %v2428
    %v2678 = vunpack.c.l.b16 %v2429
    %v2679 = vunpack.c.h.b16 %v2429
    %v2680 = vunpack.c.l.b16 %v2430
    %v2681 = vunpack.c.h.b16 %v2430
    %v2682 = vunpack.c.l.b16 %v2431
    %v2683 = vunpack.c.h.b16 %v2431
    %v2684 = vunpack.c.l.b16 %v2432
    %v2685 = vunpack.c.h.b16 %v2432
    %v2686 = vunpack.c.l.b16 %v2433
    %v2687 = vunpack.c.h.b16 %v2433
    %v2688 = vunpack.c.l.b16 %v2434
    %v2689 = vunpack.c.h.b16 %v2434
    %v2690 = vunpack.c.l.b16 %v2435
    %v2691 = vunpack.c.h.b16 %v2435
    %v2692 = vunpack.c.l.b16 %v2436
    %v2693 = vunpack.c.h.b16 %v2436
    %v2694 = vunpack.c.l.b16 %v2437
    %v2695 = vunpack.c.h.b16 %v2437
    %v2696 = vunpack.c.l.b16 %v2438
    %v2697 = vunpack.c.h.b16 %v2438
    %v2698 = vunpack.c.l.b16 %v2439
    %v2699 = vunpack.c.h.b16 %v2439
    %v2700 = vunpack.c.l.b16 %v2440
    %v2701 = vunpack.c.h.b16 %v2440
    %v2702 = vunpack.c.l.b16 %v2441
    %v2703 = vunpack.c.h.b16 %v2441
    %v2704 = vunpack.c.l.b16 %v2442
    %v2705 = vunpack.c.h.b16 %v2442
    %v2706 = vunpack.c.l.b16 %v2443
    %v2707 = vunpack.c.h.b16 %v2443
    %v2708 = vunpack.c.l.b16 %v2444
    %v2709 = vunpack.c.h.b16 %v2444
    %v2710 = vunpack.c.l.b16 %v2445
    %v2711 = vunpack.c.h.b16 %v2445
    %v2712 = vunpack.c.l.b16 %v2446
    %v2713 = vunpack.c.h.b16 %v2446
    %v2714 = vunpack.c.l.b16 %v2447
    %v2715 = vunpack.c.h.b16 %v2447
    %v2716 = vunpack.c.l.b16 %v2448
    %v2717 = vunpack.c.h.b16 %v2448
    %v2718 = vunpack.c.l.b16 %v2449
    %v2719 = vunpack.c.h.b16 %v2449
    %v2720 = vunpack.c.l.b16 %v2450
    %v2721 = vunpack.c.h.b16 %v2450
    %v2722 = vunpack.c.l.b16 %v2451
    %v2723 = vunpack.c.h.b16 %v2451
    %v2724 = vunpack.c.l.b16 %v2452
    %v2725 = vunpack.c.h.b16 %v2452
    %v2726 = vunpack.c.l.b16 %v2453
    %v2727 = vunpack.c.h.b16 %v2453
    %v2728 = vunpack.c.l.b16 %v2454
    %v2729 = vunpack.c.h.b16 %v2454
    %v2730 = vunpack.c.l.b16 %v2455
    %v2731 = vunpack.c.h.b16 %v2455
    %v2732 = vpack.c.b16 %v2638, %v2636
    %v2733 = vpack.c.b16 %v2639, %v2637
    %v2734 = vpack.c.b16 %v2642, %v2640
    %v2735 = vpack.c.b16 %v2643, %v2641
    %v2736 = vpack.c.b16 %v2646, %v2644
    %v2737 = vpack.c.b16 %v2647, %v2645
    %v2738 = vpack.c.b16 %v2650, %v2648
    %v2739 = vpack.c.b16 %v2651, %v2649
    %v2740 = vpack.c.b16 %v2654, %v2652
    %v2741 = vpack.c.b16 %v2655, %v2653
    %v2742 = vpack.c.b16 %v2658, %v2656
    %v2743 = vpack.c.b16 %v2659, %v2657
    %v2744 = vpack.c.b16 %v2662, %v2660
    %v2745 = vpack.c.b16 %v2663, %v2661
    %v2746 = vpack.c.b16 %v2666, %v2664
    %v2747 = vpack.c.b16 %v2667, %v2665
    %v2748 = vpack.c.b16 %v2670, %v2668
    %v2749 = vpack.c.b16 %v2671, %v2669
    %v2750 = vpack.c.b16 %v2674, %v2672
    %v2751 = vpack.c.b16 %v2675, %v2673
    %v2752 = vpack.c.b16 %v2678, %v2676
    %v2753 = vpack.c.b16 %v2679, %v2677
    %v2754 = vpack.c.b16 %v2682, %v2680
    %v2755 = vpack.c.b16 %v2683, %v2681
    %v2756 = vpack.c.b16 %v2686, %v2684
    %v2757 = vpack.c.b16 %v2687, %v2685
    %v2758 = vpack.c.b16 %v2690, %v2688
    %v2759 = vpack.c.b16 %v2691, %v2689
    %v2760 = vpack.c.b16 %v2694, %v2692
    %v2761 = vpack.c.b16 %v2695, %v2693
    %v2762 = vpack.c.b16 %v2698, %v2696
    %v2763 = vpack.c.b16 %v2699, %v2697
    %v2764 = vpack.c.b16 %v2702, %v2700
    %v2765 = vpack.c.b16 %v2703, %v2701
    %v2766 = vpack.c.b16 %v2706, %v2704
    %v2767 = vpack.c.b16 %v2707, %v2705
    %v2768 = vpack.c.b16 %v2710, %v2708
    %v2769 = vpack.c.b16 %v2711, %v2709
    %v2770 = vpack.c.b16 %v2714, %v2712
    %v2771 = vpack.c.b16 %v2715, %v2713
    %v2772 = vpack.c.b16 %v2718, %v2716
    %v2773 = vpack.c.b16 %v2719, %v2717
    %v2774 = vpack.c.b16 %v2722, %v2720
    %v2775 = vpack.c.b16 %v2723, %v2721
    %v2776 = vpack.c.b16 %v2726, %v2724
    %v2777 = vpack.c.b16 %v2727, %v2725
    %v2778 = vpack.c.b16 %v2730, %v2728
    %v2779 = vpack.c.b16 %v2731, %v2729
    %2828 = vmatprep.subr.bf16.mxu0 %v2733
    %2829 = vmatpush1.bf16.msra.mxu0 %v2732
    %2830 = vmatprep.subr.bf16.mxu0 %v2735
    %2831 = vmatpush1.bf16.msra.mxu0 %v2734
    %2832 = vmatprep.subr.bf16.mxu0 %v2737
    %2833 = vmatpush1.bf16.msra.mxu0 %v2736
    %2834 = vmatprep.subr.bf16.mxu0 %v2739
    %2835 = vmatpush1.bf16.msra.mxu0 %v2738
    %2836 = vmatprep.subr.bf16.mxu0 %v2741
    %2837 = vmatpush1.bf16.msra.mxu0 %v2740
    %2838 = vmatprep.subr.bf16.mxu0 %v2743
    %2839 = vmatpush1.bf16.msra.mxu0 %v2742
    %2840 = vmatprep.subr.bf16.mxu0 %v2745
    %2841 = vmatpush1.bf16.msra.mxu0 %v2744
    %2842 = vmatprep.subr.bf16.mxu0 %v2747
    %2843 = vmatpush1.bf16.msra.mxu0 %v2746
    %2844 = vmatprep.subr.bf16.mxu0 %v2749
    %2845 = vmatpush1.bf16.msra.mxu0 %v2748
    %2846 = vmatprep.subr.bf16.mxu0 %v2751
    %2847 = vmatpush1.bf16.msra.mxu0 %v2750
    %2848 = vmatprep.subr.bf16.mxu0 %v2753
    %2849 = vmatpush1.bf16.msra.mxu0 %v2752
    %2850 = vmatprep.subr.bf16.mxu0 %v2755
    %2851 = vmatpush1.bf16.msra.mxu0 %v2754
    %2852 = vmatprep.subr.bf16.mxu0 %v2757
    %2853 = vmatpush1.bf16.msra.mxu0 %v2756
    %2854 = vmatprep.subr.bf16.mxu0 %v2759
    %2855 = vmatpush1.bf16.msra.mxu0 %v2758
    %2856 = vmatprep.subr.bf16.mxu0 %v2761
    %2857 = vmatpush1.bf16.msra.mxu0 %v2760
    %2858 = vmatprep.subr.bf16.mxu0 %v2763
    %2859 = vmatpush1.bf16.msra.mxu0 %v2762
    %2860 = vmatprep.mubr.bf16.mxu0 %v2400
    %2861 = vmatmul.mubr.bf16.gmra.mrb[0].mxu0 %v2399
    %v2862 = vpop.f32.mrb[0].mxu0
    %v2863 = vadd.f32 %v2561, %v2862
    %v2864 = vpop.f32.mrb[0].mxu0
    %v2865 = vadd.f32 %v2565, %v2864
    %v2866 = vpop.f32.mrb[0].mxu0
    %v2867 = vpop.f32.mrb[0].mxu0
    %2868 = vdwg.mxu0
    %2869 = vmatprep.subr.bf16.mxu0 %v2765
    %2870 = vmatpush1.bf16.msra.mxu0 %v2764
    %2871 = vmatprep.subr.bf16.mxu0 %v2767
    %2872 = vmatpush1.bf16.msra.mxu0 %v2766
    %2873 = vmatprep.subr.bf16.mxu0 %v2769
    %2874 = vmatpush1.bf16.msra.mxu0 %v2768
    %2875 = vmatprep.subr.bf16.mxu0 %v2771
    %2876 = vmatpush1.bf16.msra.mxu0 %v2770
    %2877 = vmatprep.subr.bf16.mxu0 %v2773
    %2878 = vmatpush1.bf16.msra.mxu0 %v2772
    %2879 = vmatprep.subr.bf16.mxu0 %v2775
    %2880 = vmatpush1.bf16.msra.mxu0 %v2774
    %2881 = vmatprep.subr.bf16.mxu0 %v2777
    %2882 = vmatpush1.bf16.msra.mxu0 %v2776
    %2883 = vmatprep.subr.bf16.mxu0 %v2779
    %2884 = vmatpush1.bf16.msra.mxu0 %v2778
    %2885 = vmatprep.subr.bf16.mxu0 0
    %2886 = vmatpush1.bf16.msra.mxu0 0
    %2887 = vmatprep.subr.bf16.mxu0 0
    %2888 = vmatpush1.bf16.msra.mxu0 0
    %2889 = vmatprep.subr.bf16.mxu0 0
    %2890 = vmatpush1.bf16.msra.mxu0 0
    %2891 = vmatprep.subr.bf16.mxu0 0
    %2892 = vmatpush1.bf16.msra.mxu0 0
    %2893 = vmatprep.subr.bf16.mxu0 0
    %2894 = vmatpush1.bf16.msra.mxu0 0
    %2895 = vmatprep.subr.bf16.mxu0 0
    %2896 = vmatpush1.bf16.msra.mxu0 0
    %2897 = vmatprep.subr.bf16.mxu0 0
    %2898 = vmatpush1.bf16.msra.mxu0 0
    %2899 = vmatprep.subr.bf16.mxu0 0
    %2900 = vmatpush1.bf16.msra.mxu0 0
    %2901 = vmatprep.mubr.bf16.mxu0 0
    %2902 = vmatmul.mubr.bf16.gmra.mrb[0].mxu0 %v2401
    %v2903 = vpop.f32.mrb[0].mxu0
    %v2904 = vadd.f32 %v2863, %v2903
    %v2905 = vpop.f32.mrb[0].mxu0
    %v2906 = vadd.f32 %v2865, %v2905
    %v2907 = vpop.f32.mrb[0].mxu0
    %v2908 = vpop.f32.mrb[0].mxu0
    %2909 = vdwg.mxu0
    %v2958 = vunpack.c.l.b16 %v2456
    %v2959 = vunpack.c.h.b16 %v2456
    %v2960 = vunpack.c.l.b16 %v2457
    %v2961 = vunpack.c.h.b16 %v2457
    %v2962 = vunpack.c.l.b16 %v2458
    %v2963 = vunpack.c.h.b16 %v2458
    %v2964 = vunpack.c.l.b16 %v2459
    %v2965 = vunpack.c.h.b16 %v2459
    %v2966 = vunpack.c.l.b16 %v2460
    %v2967 = vunpack.c.h.b16 %v2460
    %v2968 = vunpack.c.l.b16 %v2461
    %v2969 = vunpack.c.h.b16 %v2461
    %v2970 = vunpack.c.l.b16 %v2462
    %v2971 = vunpack.c.h.b16 %v2462
    %v2972 = vunpack.c.l.b16 %v2463
    %v2973 = vunpack.c.h.b16 %v2463
    %v2974 = vunpack.c.l.b16 %v2464
    %v2975 = vunpack.c.h.b16 %v2464
    %v2976 = vunpack.c.l.b16 %v2465
    %v2977 = vunpack.c.h.b16 %v2465
    %v2978 = vunpack.c.l.b16 %v2466
    %v2979 = vunpack.c.h.b16 %v2466
    %v2980 = vunpack.c.l.b16 %v2467
    %v2981 = vunpack.c.h.b16 %v2467
    %v2982 = vunpack.c.l.b16 %v2468
    %v2983 = vunpack.c.h.b16 %v2468
    %v2984 = vunpack.c.l.b16 %v2469
    %v2985 = vunpack.c.h.b16 %v2469
    %v2986 = vunpack.c.l.b16 %v2470
    %v2987 = vunpack.c.h.b16 %v2470
    %v2988 = vunpack.c.l.b16 %v2471
    %v2989 = vunpack.c.h.b16 %v2471
    %v2990 = vunpack.c.l.b16 %v2472
    %v2991 = vunpack.c.h.b16 %v2472
    %v2992 = vunpack.c.l.b16 %v2473
    %v2993 = vunpack.c.h.b16 %v2473
    %v2994 = vunpack.c.l.b16 %v2474
    %v2995 = vunpack.c.h.b16 %v2474
    %v2996 = vunpack.c.l.b16 %v2475
    %v2997 = vunpack.c.h.b16 %v2475
    %v2998 = vunpack.c.l.b16 %v2476
    %v2999 = vunpack.c.h.b16 %v2476
    %v3000 = vunpack.c.l.b16 %v2477
    %v3001 = vunpack.c.h.b16 %v2477
    %v3002 = vunpack.c.l.b16 %v2478
    %v3003 = vunpack.c.h.b16 %v2478
    %v3004 = vunpack.c.l.b16 %v2479
    %v3005 = vunpack.c.h.b16 %v2479
    %v3006 = vunpack.c.l.b16 %v2480
    %v3007 = vunpack.c.h.b16 %v2480
    %v3008 = vunpack.c.l.b16 %v2481
    %v3009 = vunpack.c.h.b16 %v2481
    %v3010 = vunpack.c.l.b16 %v2482
    %v3011 = vunpack.c.h.b16 %v2482
    %v3012 = vunpack.c.l.b16 %v2483
    %v3013 = vunpack.c.h.b16 %v2483
    %v3014 = vunpack.c.l.b16 %v2484
    %v3015 = vunpack.c.h.b16 %v2484
    %v3016 = vunpack.c.l.b16 %v2485
    %v3017 = vunpack.c.h.b16 %v2485
    %v3018 = vunpack.c.l.b16 %v2486
    %v3019 = vunpack.c.h.b16 %v2486
    %v3020 = vunpack.c.l.b16 %v2487
    %v3021 = vunpack.c.h.b16 %v2487
    %v3022 = vunpack.c.l.b16 %v2488
    %v3023 = vunpack.c.h.b16 %v2488
    %v3024 = vunpack.c.l.b16 %v2489
    %v3025 = vunpack.c.h.b16 %v2489
    %v3026 = vunpack.c.l.b16 %v2490
    %v3027 = vunpack.c.h.b16 %v2490
    %v3028 = vunpack.c.l.b16 %v2491
    %v3029 = vunpack.c.h.b16 %v2491
    %v3030 = vunpack.c.l.b16 %v2492
    %v3031 = vunpack.c.h.b16 %v2492
    %v3032 = vunpack.c.l.b16 %v2493
    %v3033 = vunpack.c.h.b16 %v2493
    %v3034 = vunpack.c.l.b16 %v2494
    %v3035 = vunpack.c.h.b16 %v2494
    %v3036 = vunpack.c.l.b16 %v2495
    %v3037 = vunpack.c.h.b16 %v2495
    %v3038 = vunpack.c.l.b16 %v2496
    %v3039 = vunpack.c.h.b16 %v2496
    %v3040 = vunpack.c.l.b16 %v2497
    %v3041 = vunpack.c.h.b16 %v2497
    %v3042 = vunpack.c.l.b16 %v2498
    %v3043 = vunpack.c.h.b16 %v2498
    %v3044 = vunpack.c.l.b16 %v2499
    %v3045 = vunpack.c.h.b16 %v2499
    %v3046 = vunpack.c.l.b16 %v2500
    %v3047 = vunpack.c.h.b16 %v2500
    %v3048 = vunpack.c.l.b16 %v2501
    %v3049 = vunpack.c.h.b16 %v2501
    %v3050 = vunpack.c.l.b16 %v2502
    %v3051 = vunpack.c.h.b16 %v2502
    %v3052 = vunpack.c.l.b16 %v2503
    %v3053 = vunpack.c.h.b16 %v2503
    %v3054 = vpack.c.b16 %v2960, %v2958
    %v3055 = vpack.c.b16 %v2961, %v2959
    %v3056 = vpack.c.b16 %v2964, %v2962
    %v3057 = vpack.c.b16 %v2965, %v2963
    %v3058 = vpack.c.b16 %v2968, %v2966
    %v3059 = vpack.c.b16 %v2969, %v2967
    %v3060 = vpack.c.b16 %v2972, %v2970
    %v3061 = vpack.c.b16 %v2973, %v2971
    %v3062 = vpack.c.b16 %v2976, %v2974
    %v3063 = vpack.c.b16 %v2977, %v2975
    %v3064 = vpack.c.b16 %v2980, %v2978
    %v3065 = vpack.c.b16 %v2981, %v2979
    %v3066 = vpack.c.b16 %v2984, %v2982
    %v3067 = vpack.c.b16 %v2985, %v2983
    %v3068 = vpack.c.b16 %v2988, %v2986
    %v3069 = vpack.c.b16 %v2989, %v2987
    %v3070 = vpack.c.b16 %v2992, %v2990
    %v3071 = vpack.c.b16 %v2993, %v2991
    %v3072 = vpack.c.b16 %v2996, %v2994
    %v3073 = vpack.c.b16 %v2997, %v2995
    %v3074 = vpack.c.b16 %v3000, %v2998
    %v3075 = vpack.c.b16 %v3001, %v2999
    %v3076 = vpack.c.b16 %v3004, %v3002
    %v3077 = vpack.c.b16 %v3005, %v3003
    %v3078 = vpack.c.b16 %v3008, %v3006
    %v3079 = vpack.c.b16 %v3009, %v3007
    %v3080 = vpack.c.b16 %v3012, %v3010
    %v3081 = vpack.c.b16 %v3013, %v3011
    %v3082 = vpack.c.b16 %v3016, %v3014
    %v3083 = vpack.c.b16 %v3017, %v3015
    %v3084 = vpack.c.b16 %v3020, %v3018
    %v3085 = vpack.c.b16 %v3021, %v3019
    %v3086 = vpack.c.b16 %v3024, %v3022
    %v3087 = vpack.c.b16 %v3025, %v3023
    %v3088 = vpack.c.b16 %v3028, %v3026
    %v3089 = vpack.c.b16 %v3029, %v3027
    %v3090 = vpack.c.b16 %v3032, %v3030
    %v3091 = vpack.c.b16 %v3033, %v3031
    %v3092 = vpack.c.b16 %v3036, %v3034
    %v3093 = vpack.c.b16 %v3037, %v3035
    %v3094 = vpack.c.b16 %v3040, %v3038
    %v3095 = vpack.c.b16 %v3041, %v3039
    %v3096 = vpack.c.b16 %v3044, %v3042
    %v3097 = vpack.c.b16 %v3045, %v3043
    %v3098 = vpack.c.b16 %v3048, %v3046
    %v3099 = vpack.c.b16 %v3049, %v3047
    %v3100 = vpack.c.b16 %v3052, %v3050
    %v3101 = vpack.c.b16 %v3053, %v3051
    %3150 = vmatprep.subr.bf16.mxu0 %v3055
    %3151 = vmatpush1.bf16.msra.mxu0 %v3054
    %3152 = vmatprep.subr.bf16.mxu0 %v3057
    %3153 = vmatpush1.bf16.msra.mxu0 %v3056
    %3154 = vmatprep.subr.bf16.mxu0 %v3059
    %3155 = vmatpush1.bf16.msra.mxu0 %v3058
    %3156 = vmatprep.subr.bf16.mxu0 %v3061
    %3157 = vmatpush1.bf16.msra.mxu0 %v3060
    %3158 = vmatprep.subr.bf16.mxu0 %v3063
    %3159 = vmatpush1.bf16.msra.mxu0 %v3062
    %3160 = vmatprep.subr.bf16.mxu0 %v3065
    %3161 = vmatpush1.bf16.msra.mxu0 %v3064
    %3162 = vmatprep.subr.bf16.mxu0 %v3067
    %3163 = vmatpush1.bf16.msra.mxu0 %v3066
    %3164 = vmatprep.subr.bf16.mxu0 %v3069
    %3165 = vmatpush1.bf16.msra.mxu0 %v3068
    %3166 = vmatprep.subr.bf16.mxu0 %v3071
    %3167 = vmatpush1.bf16.msra.mxu0 %v3070
    %3168 = vmatprep.subr.bf16.mxu0 %v3073
    %3169 = vmatpush1.bf16.msra.mxu0 %v3072
    %3170 = vmatprep.subr.bf16.mxu0 %v3075
    %3171 = vmatpush1.bf16.msra.mxu0 %v3074
    %3172 = vmatprep.subr.bf16.mxu0 %v3077
    %3173 = vmatpush1.bf16.msra.mxu0 %v3076
    %3174 = vmatprep.subr.bf16.mxu0 %v3079
    %3175 = vmatpush1.bf16.msra.mxu0 %v3078
    %3176 = vmatprep.subr.bf16.mxu0 %v3081
    %3177 = vmatpush1.bf16.msra.mxu0 %v3080
    %3178 = vmatprep.subr.bf16.mxu0 %v3083
    %3179 = vmatpush1.bf16.msra.mxu0 %v3082
    %3180 = vmatprep.subr.bf16.mxu0 %v3085
    %3181 = vmatpush1.bf16.msra.mxu0 %v3084
    %3182 = vmatprep.mubr.bf16.mxu0 %v2403
    %3183 = vmatmul.mubr.bf16.gmra.mrb[0].mxu0 %v2402
    %v3184 = vpop.f32.mrb[0].mxu0
    %v3185 = vadd.f32 %v2569, %v3184
    %v3186 = vpop.f32.mrb[0].mxu0
    %v3187 = vadd.f32 %v2573, %v3186
    %v3188 = vpop.f32.mrb[0].mxu0
    %v3189 = vpop.f32.mrb[0].mxu0
    %3190 = vdwg.mxu0
    %3191 = vmatprep.subr.bf16.mxu0 %v3087
    %3192 = vmatpush1.bf16.msra.mxu0 %v3086
    %3193 = vmatprep.subr.bf16.mxu0 %v3089
    %3194 = vmatpush1.bf16.msra.mxu0 %v3088
    %3195 = vmatprep.subr.bf16.mxu0 %v3091
    %3196 = vmatpush1.bf16.msra.mxu0 %v3090
    %3197 = vmatprep.subr.bf16.mxu0 %v3093
    %3198 = vmatpush1.bf16.msra.mxu0 %v3092
    %3199 = vmatprep.subr.bf16.mxu0 %v3095
    %3200 = vmatpush1.bf16.msra.mxu0 %v3094
    %3201 = vmatprep.subr.bf16.mxu0 %v3097
    %3202 = vmatpush1.bf16.msra.mxu0 %v3096
    %3203 = vmatprep.subr.bf16.mxu0 %v3099
    %3204 = vmatpush1.bf16.msra.mxu0 %v3098
    %3205 = vmatprep.subr.bf16.mxu0 %v3101
    %3206 = vmatpush1.bf16.msra.mxu0 %v3100
    %3207 = vmatprep.subr.bf16.mxu0 0
    %3208 = vmatpush1.bf16.msra.mxu0 0
    %3209 = vmatprep.subr.bf16.mxu0 0
    %3210 = vmatpush1.bf16.msra.mxu0 0
    %3211 = vmatprep.subr.bf16.mxu0 0
    %3212 = vmatpush1.bf16.msra.mxu0 0
    %3213 = vmatprep.subr.bf16.mxu0 0
    %3214 = vmatpush1.bf16.msra.mxu0 0
    %3215 = vmatprep.subr.bf16.mxu0 0
    %3216 = vmatpush1.bf16.msra.mxu0 0
    %3217 = vmatprep.subr.bf16.mxu0 0
    %3218 = vmatpush1.bf16.msra.mxu0 0
    %3219 = vmatprep.subr.bf16.mxu0 0
    %3220 = vmatpush1.bf16.msra.mxu0 0
    %3221 = vmatprep.subr.bf16.mxu0 0
    %3222 = vmatpush1.bf16.msra.mxu0 0
    %3223 = vmatprep.mubr.bf16.mxu0 0
    %3224 = vmatmul.mubr.bf16.gmra.mrb[0].mxu0 %v2404
    %v3225 = vpop.f32.mrb[0].mxu0
    %v3226 = vadd.f32 %v3185, %v3225
    %v3227 = vpop.f32.mrb[0].mxu0
    %v3228 = vadd.f32 %v3187, %v3227
    %v3229 = vpop.f32.mrb[0].mxu0
    %v3230 = vpop.f32.mrb[0].mxu0
    %3231 = vdwg.mxu0
    %v3280 = vunpack.c.l.b16 %v2504
    %v3281 = vunpack.c.h.b16 %v2504
    %v3282 = vunpack.c.l.b16 %v2505
    %v3283 = vunpack.c.h.b16 %v2505
    %v3284 = vunpack.c.l.b16 %v2506
    %v3285 = vunpack.c.h.b16 %v2506
    %v3286 = vunpack.c.l.b16 %v2507
    %v3287 = vunpack.c.h.b16 %v2507
    %v3288 = vunpack.c.l.b16 %v2508
    %v3289 = vunpack.c.h.b16 %v2508
    %v3290 = vunpack.c.l.b16 %v2509
    %v3291 = vunpack.c.h.b16 %v2509
    %v3292 = vunpack.c.l.b16 %v2510
    %v3293 = vunpack.c.h.b16 %v2510
    %v3294 = vunpack.c.l.b16 %v2511
    %v3295 = vunpack.c.h.b16 %v2511
    %v3296 = vunpack.c.l.b16 %v2512
    %v3297 = vunpack.c.h.b16 %v2512
    %v3298 = vunpack.c.l.b16 %v2513
    %v3299 = vunpack.c.h.b16 %v2513
    %v3300 = vunpack.c.l.b16 %v2514
    %v3301 = vunpack.c.h.b16 %v2514
    %v3302 = vunpack.c.l.b16 %v2515
    %v3303 = vunpack.c.h.b16 %v2515
    %v3304 = vunpack.c.l.b16 %v2516
    %v3305 = vunpack.c.h.b16 %v2516
    %v3306 = vunpack.c.l.b16 %v2517
    %v3307 = vunpack.c.h.b16 %v2517
    %v3308 = vunpack.c.l.b16 %v2518
    %v3309 = vunpack.c.h.b16 %v2518
    %v3310 = vunpack.c.l.b16 %v2519
    %v3311 = vunpack.c.h.b16 %v2519
    %v3312 = vunpack.c.l.b16 %v2520
    %v3313 = vunpack.c.h.b16 %v2520
    %v3314 = vunpack.c.l.b16 %v2521
    %v3315 = vunpack.c.h.b16 %v2521
    %v3316 = vunpack.c.l.b16 %v2522
    %v3317 = vunpack.c.h.b16 %v2522
    %v3318 = vunpack.c.l.b16 %v2523
    %v3319 = vunpack.c.h.b16 %v2523
    %v3320 = vunpack.c.l.b16 %v2524
    %v3321 = vunpack.c.h.b16 %v2524
    %v3322 = vunpack.c.l.b16 %v2525
    %v3323 = vunpack.c.h.b16 %v2525
    %v3324 = vunpack.c.l.b16 %v2526
    %v3325 = vunpack.c.h.b16 %v2526
    %v3326 = vunpack.c.l.b16 %v2527
    %v3327 = vunpack.c.h.b16 %v2527
    %v3328 = vunpack.c.l.b16 %v2528
    %v3329 = vunpack.c.h.b16 %v2528
    %v3330 = vunpack.c.l.b16 %v2529
    %v3331 = vunpack.c.h.b16 %v2529
    %v3332 = vunpack.c.l.b16 %v2530
    %v3333 = vunpack.c.h.b16 %v2530
    %v3334 = vunpack.c.l.b16 %v2531
    %v3335 = vunpack.c.h.b16 %v2531
    %v3336 = vunpack.c.l.b16 %v2532
    %v3337 = vunpack.c.h.b16 %v2532
    %v3338 = vunpack.c.l.b16 %v2533
    %v3339 = vunpack.c.h.b16 %v2533
    %v3340 = vunpack.c.l.b16 %v2534
    %v3341 = vunpack.c.h.b16 %v2534
    %v3342 = vunpack.c.l.b16 %v2535
    %v3343 = vunpack.c.h.b16 %v2535
    %v3344 = vunpack.c.l.b16 %v2536
    %v3345 = vunpack.c.h.b16 %v2536
    %v3346 = vunpack.c.l.b16 %v2537
    %v3347 = vunpack.c.h.b16 %v2537
    %v3348 = vunpack.c.l.b16 %v2538
    %v3349 = vunpack.c.h.b16 %v2538
    %v3350 = vunpack.c.l.b16 %v2539
    %v3351 = vunpack.c.h.b16 %v2539
    %v3352 = vunpack.c.l.b16 %v2540
    %v3353 = vunpack.c.h.b16 %v2540
    %v3354 = vunpack.c.l.b16 %v2541
    %v3355 = vunpack.c.h.b16 %v2541
    %v3356 = vunpack.c.l.b16 %v2542
    %v3357 = vunpack.c.h.b16 %v2542
    %v3358 = vunpack.c.l.b16 %v2543
    %v3359 = vunpack.c.h.b16 %v2543
    %v3360 = vunpack.c.l.b16 %v2544
    %v3361 = vunpack.c.h.b16 %v2544
    %v3362 = vunpack.c.l.b16 %v2545
    %v3363 = vunpack.c.h.b16 %v2545
    %v3364 = vunpack.c.l.b16 %v2546
    %v3365 = vunpack.c.h.b16 %v2546
    %v3366 = vunpack.c.l.b16 %v2547
    %v3367 = vunpack.c.h.b16 %v2547
    %v3368 = vunpack.c.l.b16 %v2548
    %v3369 = vunpack.c.h.b16 %v2548
    %v3370 = vunpack.c.l.b16 %v2549
    %v3371 = vunpack.c.h.b16 %v2549
    %v3372 = vunpack.c.l.b16 %v2550
    %v3373 = vunpack.c.h.b16 %v2550
    %v3374 = vunpack.c.l.b16 %v2551
    %v3375 = vunpack.c.h.b16 %v2551
    %v3376 = vpack.c.b16 %v3282, %v3280
    %v3377 = vpack.c.b16 %v3283, %v3281
    %v3378 = vpack.c.b16 %v3286, %v3284
    %v3379 = vpack.c.b16 %v3287, %v3285
    %v3380 = vpack.c.b16 %v3290, %v3288
    %v3381 = vpack.c.b16 %v3291, %v3289
    %v3382 = vpack.c.b16 %v3294, %v3292
    %v3383 = vpack.c.b16 %v3295, %v3293
    %v3384 = vpack.c.b16 %v3298, %v3296
    %v3385 = vpack.c.b16 %v3299, %v3297
    %v3386 = vpack.c.b16 %v3302, %v3300
    %v3387 = vpack.c.b16 %v3303, %v3301
    %v3388 = vpack.c.b16 %v3306, %v3304
    %v3389 = vpack.c.b16 %v3307, %v3305
    %v3390 = vpack.c.b16 %v3310, %v3308
    %v3391 = vpack.c.b16 %v3311, %v3309
    %v3392 = vpack.c.b16 %v3314, %v3312
    %v3393 = vpack.c.b16 %v3315, %v3313
    %v3394 = vpack.c.b16 %v3318, %v3316
    %v3395 = vpack.c.b16 %v3319, %v3317
    %v3396 = vpack.c.b16 %v3322, %v3320
    %v3397 = vpack.c.b16 %v3323, %v3321
    %v3398 = vpack.c.b16 %v3326, %v3324
    %v3399 = vpack.c.b16 %v3327, %v3325
    %v3400 = vpack.c.b16 %v3330, %v3328
    %v3401 = vpack.c.b16 %v3331, %v3329
    %v3402 = vpack.c.b16 %v3334, %v3332
    %v3403 = vpack.c.b16 %v3335, %v3333
    %v3404 = vpack.c.b16 %v3338, %v3336
    %v3405 = vpack.c.b16 %v3339, %v3337
    %v3406 = vpack.c.b16 %v3342, %v3340
    %v3407 = vpack.c.b16 %v3343, %v3341
    %v3408 = vpack.c.b16 %v3346, %v3344
    %v3409 = vpack.c.b16 %v3347, %v3345
    %v3410 = vpack.c.b16 %v3350, %v3348
    %v3411 = vpack.c.b16 %v3351, %v3349
    %v3412 = vpack.c.b16 %v3354, %v3352
    %v3413 = vpack.c.b16 %v3355, %v3353
    %v3414 = vpack.c.b16 %v3358, %v3356
    %v3415 = vpack.c.b16 %v3359, %v3357
    %v3416 = vpack.c.b16 %v3362, %v3360
    %v3417 = vpack.c.b16 %v3363, %v3361
    %v3418 = vpack.c.b16 %v3366, %v3364
    %v3419 = vpack.c.b16 %v3367, %v3365
    %v3420 = vpack.c.b16 %v3370, %v3368
    %v3421 = vpack.c.b16 %v3371, %v3369
    %v3422 = vpack.c.b16 %v3374, %v3372
    %v3423 = vpack.c.b16 %v3375, %v3373
    %3472 = vmatprep.subr.bf16.mxu0 %v3377
    %3473 = vmatpush1.bf16.msra.mxu0 %v3376
    %3474 = vmatprep.subr.bf16.mxu0 %v3379
    %3475 = vmatpush1.bf16.msra.mxu0 %v3378
    %3476 = vmatprep.subr.bf16.mxu0 %v3381
    %3477 = vmatpush1.bf16.msra.mxu0 %v3380
    %3478 = vmatprep.subr.bf16.mxu0 %v3383
    %3479 = vmatpush1.bf16.msra.mxu0 %v3382
    %3480 = vmatprep.subr.bf16.mxu0 %v3385
    %3481 = vmatpush1.bf16.msra.mxu0 %v3384
    %3482 = vmatprep.subr.bf16.mxu0 %v3387
    %3483 = vmatpush1.bf16.msra.mxu0 %v3386
    %3484 = vmatprep.subr.bf16.mxu0 %v3389
    %3485 = vmatpush1.bf16.msra.mxu0 %v3388
    %3486 = vmatprep.subr.bf16.mxu0 %v3391
    %3487 = vmatpush1.bf16.msra.mxu0 %v3390
    %3488 = vmatprep.subr.bf16.mxu0 %v3393
    %3489 = vmatpush1.bf16.msra.mxu0 %v3392
    %3490 = vmatprep.subr.bf16.mxu0 %v3395
    %3491 = vmatpush1.bf16.msra.mxu0 %v3394
    %3492 = vmatprep.subr.bf16.mxu0 %v3397
    %3493 = vmatpush1.bf16.msra.mxu0 %v3396
    %3494 = vmatprep.subr.bf16.mxu0 %v3399
    %3495 = vmatpush1.bf16.msra.mxu0 %v3398
    %3496 = vmatprep.subr.bf16.mxu0 %v3401
    %3497 = vmatpush1.bf16.msra.mxu0 %v3400
    %3498 = vmatprep.subr.bf16.mxu0 %v3403
    %3499 = vmatpush1.bf16.msra.mxu0 %v3402
    %3500 = vmatprep.subr.bf16.mxu0 %v3405
    %3501 = vmatpush1.bf16.msra.mxu0 %v3404
    %3502 = vmatprep.subr.bf16.mxu0 %v3407
    %3503 = vmatpush1.bf16.msra.mxu0 %v3406
    %3504 = vmatprep.mubr.bf16.mxu0 %v2406
    %3505 = vmatmul.mubr.bf16.gmra.mrb[0].mxu0 %v2405
    %v3506 = vpop.f32.mrb[0].mxu0
    %v3507 = vadd.f32 %v2577, %v3506
    %v3508 = vpop.f32.mrb[0].mxu0
    %v3509 = vadd.f32 %v2581, %v3508
    %v3510 = vpop.f32.mrb[0].mxu0
    %v3511 = vpop.f32.mrb[0].mxu0
    %3512 = vdwg.mxu0
    %3513 = vmatprep.subr.bf16.mxu0 %v3409
    %3514 = vmatpush1.bf16.msra.mxu0 %v3408
    %3515 = vmatprep.subr.bf16.mxu0 %v3411
    %3516 = vmatpush1.bf16.msra.mxu0 %v3410
    %3517 = vmatprep.subr.bf16.mxu0 %v3413
    %3518 = vmatpush1.bf16.msra.mxu0 %v3412
    %3519 = vmatprep.subr.bf16.mxu0 %v3415
    %3520 = vmatpush1.bf16.msra.mxu0 %v3414
    %3521 = vmatprep.subr.bf16.mxu0 %v3417
    %3522 = vmatpush1.bf16.msra.mxu0 %v3416
    %3523 = vmatprep.subr.bf16.mxu0 %v3419
    %3524 = vmatpush1.bf16.msra.mxu0 %v3418
    %3525 = vmatprep.subr.bf16.mxu0 %v3421
    %3526 = vmatpush1.bf16.msra.mxu0 %v3420
    %3527 = vmatprep.subr.bf16.mxu0 %v3423
    %3528 = vmatpush1.bf16.msra.mxu0 %v3422
    %3529 = vmatprep.subr.bf16.mxu0 0
    %3530 = vmatpush1.bf16.msra.mxu0 0
    %3531 = vmatprep.subr.bf16.mxu0 0
    %3532 = vmatpush1.bf16.msra.mxu0 0
    %3533 = vmatprep.subr.bf16.mxu0 0
    %3534 = vmatpush1.bf16.msra.mxu0 0
    %3535 = vmatprep.subr.bf16.mxu0 0
    %3536 = vmatpush1.bf16.msra.mxu0 0
    %3537 = vmatprep.subr.bf16.mxu0 0
    %3538 = vmatpush1.bf16.msra.mxu0 0
    %3539 = vmatprep.subr.bf16.mxu0 0
    %3540 = vmatpush1.bf16.msra.mxu0 0
    %3541 = vmatprep.subr.bf16.mxu0 0
    %3542 = vmatpush1.bf16.msra.mxu0 0
    %3543 = vmatprep.subr.bf16.mxu0 0
    %3544 = vmatpush1.bf16.msra.mxu0 0
    %3545 = vmatprep.mubr.bf16.mxu0 0
    %3546 = vmatmul.mubr.bf16.gmra.mrb[0].mxu0 %v2407
    %v3547 = vpop.f32.mrb[0].mxu0
    %v3548 = vadd.f32 %v3507, %v3547
    %v3549 = vpop.f32.mrb[0].mxu0
    %v3550 = vadd.f32 %v3509, %v3549
    %v3551 = vpop.f32.mrb[0].mxu0
    %v3552 = vpop.f32.mrb[0].mxu0
    %3553 = vdwg.mxu0
    %v3554 = vmax.f32 %v2904, 0.0
    %v3555 = vmax.f32 %v2906, 0.0
    %v3556 = vmax.f32 %v3226, 0.0
    %v3557 = vmax.f32 %v3228, 0.0
    %v3558 = vmax.f32 %v3548, 0.0
    %v3559 = vmax.f32 %v3550, 0.0
    %v3560 = vpack.c.bf16 %v3554, %v3554
    %v3561 = vpack.c.bf16 %v3555, %v3555
    %v3562 = vpack.c.bf16 %v3556, %v3556
    %v3563 = vpack.c.bf16 %v3557, %v3557
    %v3564 = vpack.c.bf16 %v3558, %v3558
    %v3565 = vpack.c.bf16 %v3559, %v3559
    %v3566 = vld [vmem:[#allocation17] sm:$0xf]
    %v3567 = vld [vmem:[#allocation17 + $0x4] sm:$0xf]
    %v3568 = vld [vmem:[#allocation17 + $0x8] sm:$0xf]
    %v3569 = vld [vmem:[#allocation17 + $0xc] sm:$0xf]
    %v3570 = vld [vmem:[#allocation17 + $0x10] sm:$0xf]
    %v3571 = vld [vmem:[#allocation17 + $0x14] sm:$0xf]
    %v3572 = vld [vmem:[#allocation17 + $0x18] sm:$0xf]
    %v3573 = vld [vmem:[#allocation17 + $0x1c] sm:$0xf]
    %v3574 = vld [vmem:[#allocation17 + $0x20] sm:$0xf]
    %v3575 = vld [vmem:[#allocation17 + $0x24] sm:$0xf]
    %v3576 = vld [vmem:[#allocation17 + $0x28] sm:$0xf]
    %v3577 = vld [vmem:[#allocation17 + $0x2c] sm:$0xf]
    %v3578 = vld [vmem:[#allocation17 + $0x30] sm:$0xf]
    %v3579 = vld [vmem:[#allocation17 + $0x34] sm:$0xf]
    %v3580 = vld [vmem:[#allocation17 + $0x38] sm:$0xf]
    %v3581 = vld [vmem:[#allocation17 + $0x3c] sm:$0xf]
    %v3582 = vld [vmem:[#allocation17 + $0x40] sm:$0xf]
    %v3583 = vld [vmem:[#allocation17 + $0x44] sm:$0xf]
    %v3584 = vld [vmem:[#allocation17 + $0x48] sm:$0xf]
    %v3585 = vld [vmem:[#allocation17 + $0x4c] sm:$0xf]
    %v3586 = vld [vmem:[#allocation17 + $0x50] sm:$0xf]
    %v3587 = vld [vmem:[#allocation17 + $0x54] sm:$0xf]
    %v3588 = vld [vmem:[#allocation17 + $0x58] sm:$0xf]
    %v3589 = vld [vmem:[#allocation17 + $0x5c] sm:$0xf]
    %v3590 = vld [vmem:[#allocation17 + $0x60] sm:$0xf]
    %v3591 = vld [vmem:[#allocation17 + $0x64] sm:$0xf]
    %v3592 = vld [vmem:[#allocation17 + $0x68] sm:$0xf]
    %v3593 = vld [vmem:[#allocation17 + $0x6c] sm:$0xf]
    %v3594 = vld [vmem:[#allocation17 + $0x70] sm:$0xf]
    %v3595 = vld [vmem:[#allocation17 + $0x74] sm:$0xf]
    %v3596 = vld [vmem:[#allocation17 + $0x78] sm:$0xf]
    %v3597 = vld [vmem:[#allocation17 + $0x7c] sm:$0xf]
    %v3598 = vld [vmem:[#allocation17 + $0x80] sm:$0xf]
    %v3599 = vld [vmem:[#allocation17 + $0x84] sm:$0xf]
    %v3600 = vld [vmem:[#allocation17 + $0x88] sm:$0xf]
    %v3601 = vld [vmem:[#allocation17 + $0x8c] sm:$0xf]
    %v3602 = vld [vmem:[#allocation17 + $0x90] sm:$0xf]
    %v3603 = vld [vmem:[#allocation17 + $0x94] sm:$0xf]
    %v3604 = vld [vmem:[#allocation17 + $0x98] sm:$0xf]
    %v3605 = vld [vmem:[#allocation17 + $0x9c] sm:$0xf]
    %v3606 = vld [vmem:[#allocation17 + $0xa0] sm:$0xf]
    %v3607 = vld [vmem:[#allocation17 + $0xa4] sm:$0xf]
    %v3608 = vld [vmem:[#allocation17 + $0xa8] sm:$0xf]
    %v3609 = vld [vmem:[#allocation17 + $0xac] sm:$0xf]
    %v3610 = vld [vmem:[#allocation17 + $0xb0] sm:$0xf]
    %v3611 = vld [vmem:[#allocation17 + $0xb4] sm:$0xf]
    %v3612 = vld [vmem:[#allocation17 + $0xb8] sm:$0xf]
    %v3613 = vld [vmem:[#allocation17 + $0xbc] sm:$0xf]
    %v3614 = vld [vmem:[#allocation17 + $0xc0] sm:$0xf]
    %v3615 = vld [vmem:[#allocation17 + $0xc4] sm:$0xf]
    %v3616 = vld [vmem:[#allocation17 + $0xc8] sm:$0xf]
    %v3617 = vld [vmem:[#allocation17 + $0xcc] sm:$0xf]
    %v3618 = vld [vmem:[#allocation17 + $0xd0] sm:$0xf]
    %v3619 = vld [vmem:[#allocation17 + $0xd4] sm:$0xf]
    %v3620 = vld [vmem:[#allocation17 + $0xd8] sm:$0xf]
    %v3621 = vld [vmem:[#allocation17 + $0xdc] sm:$0xf]
    %v3622 = vld [vmem:[#allocation17 + $0xe0] sm:$0xf]
    %v3623 = vld [vmem:[#allocation17 + $0xe4] sm:$0xf]
    %v3624 = vld [vmem:[#allocation17 + $0xe8] sm:$0xf]
    %v3625 = vld [vmem:[#allocation17 + $0xec] sm:$0xf]
    %v3626 = vld [vmem:[#allocation17 + $0xf0] sm:$0xf]
    %v3627 = vld [vmem:[#allocation17 + $0xf4] sm:$0xf]
    %v3628 = vld [vmem:[#allocation17 + $0xf8] sm:$0xf]
    %v3629 = vld [vmem:[#allocation17 + $0xfc] sm:$0xf]
    %v3630 = vld [vmem:[#allocation17 + $0x100] sm:$0xf]
    %v3631 = vld [vmem:[#allocation17 + $0x104] sm:$0xf]
    %v3632 = vld [vmem:[#allocation17 + $0x108] sm:$0xf]
    %v3633 = vld [vmem:[#allocation17 + $0x10c] sm:$0xf]
    %v3634 = vld [vmem:[#allocation17 + $0x110] sm:$0xf]
    %v3635 = vld [vmem:[#allocation17 + $0x114] sm:$0xf]
    %v3636 = vld [vmem:[#allocation17 + $0x118] sm:$0xf]
    %v3637 = vld [vmem:[#allocation17 + $0x11c] sm:$0xf]
    %v3638 = vld [vmem:[#allocation17 + $0x120] sm:$0xf]
    %v3639 = vld [vmem:[#allocation17 + $0x124] sm:$0xf]
    %v3640 = vld [vmem:[#allocation17 + $0x128] sm:$0xf]
    %v3641 = vld [vmem:[#allocation17 + $0x12c] sm:$0xf]
    %v3642 = vld [vmem:[#allocation17 + $0x130] sm:$0xf]
    %v3643 = vld [vmem:[#allocation17 + $0x134] sm:$0xf]
    %v3644 = vld [vmem:[#allocation17 + $0x138] sm:$0xf]
    %v3645 = vld [vmem:[#allocation17 + $0x13c] sm:$0xf]
    %v3646 = vld [vmem:[#allocation17 + $0x140] sm:$0xf]
    %v3647 = vld [vmem:[#allocation17 + $0x144] sm:$0xf]
    %v3648 = vld [vmem:[#allocation17 + $0x148] sm:$0xf]
    %v3649 = vld [vmem:[#allocation17 + $0x14c] sm:$0xf]
    %v3650 = vld [vmem:[#allocation17 + $0x150] sm:$0xf]
    %v3651 = vld [vmem:[#allocation17 + $0x154] sm:$0xf]
    %v3652 = vld [vmem:[#allocation17 + $0x158] sm:$0xf]
    %v3653 = vld [vmem:[#allocation17 + $0x15c] sm:$0xf]
    %v3654 = vld [vmem:[#allocation17 + $0x160] sm:$0xf]
    %v3655 = vld [vmem:[#allocation17 + $0x164] sm:$0xf]
    %v3656 = vld [vmem:[#allocation17 + $0x168] sm:$0xf]
    %v3657 = vld [vmem:[#allocation17 + $0x16c] sm:$0xf]
    %v3658 = vld [vmem:[#allocation17 + $0x170] sm:$0xf]
    %v3659 = vld [vmem:[#allocation17 + $0x174] sm:$0xf]
    %v3660 = vld [vmem:[#allocation17 + $0x178] sm:$0xf]
    %v3661 = vld [vmem:[#allocation17 + $0x17c] sm:$0xf]
    %v3662 = vld [vmem:[#allocation19] sm:$0x1]
    %v3663 = vld [vmem:[#allocation19 + $0x1] sm:$0x1]
    %v3664 = vld [vmem:[#allocation19 + $0x2] sm:$0x1]
    %v3668 = vlaneseq
    %v3669 = vshrl.u32 %v3668, 7
    %v3670 = vsub.s32 0, %v3669
    %v3671 = vrot.slane %v3662, %v3670
    %v3672 = vlaneseq
    %v3673 = vshrl.u32 %v3672, 7
    %v3674 = vsub.s32 0, %v3673
    %v3675 = vrot.slane %v3663, %v3674
    %v3676 = vlaneseq
    %v3677 = vshrl.u32 %v3676, 7
    %v3678 = vsub.s32 0, %v3677
    %v3679 = vrot.slane %v3664, %v3678
    %v3715 = vunpack.c.l.b16 %v3566
    %v3716 = vunpack.c.l.b16 %v3567
    %v3717 = vunpack.c.l.b16 %v3568
    %v3718 = vunpack.c.l.b16 %v3569
    %v3719 = vunpack.c.l.b16 %v3570
    %v3720 = vunpack.c.l.b16 %v3571
    %v3721 = vunpack.c.l.b16 %v3572
    %v3722 = vunpack.c.l.b16 %v3573
    %v3723 = vunpack.c.l.b16 %v3574
    %v3724 = vunpack.c.l.b16 %v3575
    %v3725 = vunpack.c.l.b16 %v3576
    %v3726 = vunpack.c.l.b16 %v3577
    %v3727 = vunpack.c.l.b16 %v3578
    %v3728 = vunpack.c.l.b16 %v3579
    %v3729 = vunpack.c.l.b16 %v3580
    %v3730 = vunpack.c.l.b16 %v3581
    %v3731 = vunpack.c.l.b16 %v3582
    %v3732 = vunpack.c.l.b16 %v3583
    %v3733 = vunpack.c.l.b16 %v3584
    %v3734 = vunpack.c.l.b16 %v3585
    %v3735 = vunpack.c.l.b16 %v3586
    %v3736 = vunpack.c.l.b16 %v3587
    %v3737 = vunpack.c.l.b16 %v3588
    %v3738 = vunpack.c.l.b16 %v3589
    %v3739 = vunpack.c.l.b16 %v3590
    %v3740 = vunpack.c.l.b16 %v3591
    %v3741 = vunpack.c.l.b16 %v3592
    %v3742 = vunpack.c.l.b16 %v3593
    %v3743 = vunpack.c.l.b16 %v3594
    %v3744 = vunpack.c.l.b16 %v3595
    %v3745 = vunpack.c.l.b16 %v3596
    %v3746 = vunpack.c.l.b16 %v3597
    %v3747 = vpack.c.b16 %v3716, %v3715
    %v3748 = vpack.c.b16 %v3718, %v3717
    %v3749 = vpack.c.b16 %v3720, %v3719
    %v3750 = vpack.c.b16 %v3722, %v3721
    %v3751 = vpack.c.b16 %v3724, %v3723
    %v3752 = vpack.c.b16 %v3726, %v3725
    %v3753 = vpack.c.b16 %v3728, %v3727
    %v3754 = vpack.c.b16 %v3730, %v3729
    %v3755 = vpack.c.b16 %v3732, %v3731
    %v3756 = vpack.c.b16 %v3734, %v3733
    %v3757 = vpack.c.b16 %v3736, %v3735
    %v3758 = vpack.c.b16 %v3738, %v3737
    %v3759 = vpack.c.b16 %v3740, %v3739
    %v3760 = vpack.c.b16 %v3742, %v3741
    %v3761 = vpack.c.b16 %v3744, %v3743
    %v3762 = vpack.c.b16 %v3746, %v3745
    %3779 = vmatprep.subr.bf16.mxu0 0
    %3780 = vmatpush1.bf16.msra.mxu0 %v3747
    %3781 = vmatprep.subr.bf16.mxu0 0
    %3782 = vmatpush1.bf16.msra.mxu0 %v3748
    %3783 = vmatprep.subr.bf16.mxu0 0
    %3784 = vmatpush1.bf16.msra.mxu0 %v3749
    %3785 = vmatprep.subr.bf16.mxu0 0
    %3786 = vmatpush1.bf16.msra.mxu0 %v3750
    %3787 = vmatprep.subr.bf16.mxu0 0
    %3788 = vmatpush1.bf16.msra.mxu0 %v3751
    %3789 = vmatprep.subr.bf16.mxu0 0
    %3790 = vmatpush1.bf16.msra.mxu0 %v3752
    %3791 = vmatprep.subr.bf16.mxu0 0
    %3792 = vmatpush1.bf16.msra.mxu0 %v3753
    %3793 = vmatprep.subr.bf16.mxu0 0
    %3794 = vmatpush1.bf16.msra.mxu0 %v3754
    %3795 = vmatprep.subr.bf16.mxu0 0
    %3796 = vmatpush1.bf16.msra.mxu0 %v3755
    %3797 = vmatprep.subr.bf16.mxu0 0
    %3798 = vmatpush1.bf16.msra.mxu0 %v3756
    %3799 = vmatprep.subr.bf16.mxu0 0
    %3800 = vmatpush1.bf16.msra.mxu0 %v3757
    %3801 = vmatprep.subr.bf16.mxu0 0
    %3802 = vmatpush1.bf16.msra.mxu0 %v3758
    %3803 = vmatprep.subr.bf16.mxu0 0
    %3804 = vmatpush1.bf16.msra.mxu0 %v3759
    %3805 = vmatprep.subr.bf16.mxu0 0
    %3806 = vmatpush1.bf16.msra.mxu0 %v3760
    %3807 = vmatprep.subr.bf16.mxu0 0
    %3808 = vmatpush1.bf16.msra.mxu0 %v3761
    %3809 = vmatprep.subr.bf16.mxu0 0
    %3810 = vmatpush1.bf16.msra.mxu0 %v3762
    %3811 = vmatprep.mubr.bf16.mxu0 %v3561
    %3812 = vmatmul.mubr.bf16.gmra.mrb[0].mxu0 %v3560
    %v3813 = vpop.f32.mrb[0].mxu0
    %v3814 = vadd.f32 %v3671, %v3813
    %v3815 = vpop.f32.mrb[0].mxu0
    %v3816 = vpop.f32.mrb[0].mxu0
    %v3817 = vpop.f32.mrb[0].mxu0
    %3818 = vdwg.mxu0
    %v3851 = vunpack.c.l.b16 %v3598
    %v3852 = vunpack.c.l.b16 %v3599
    %v3853 = vunpack.c.l.b16 %v3600
    %v3854 = vunpack.c.l.b16 %v3601
    %v3855 = vunpack.c.l.b16 %v3602
    %v3856 = vunpack.c.l.b16 %v3603
    %v3857 = vunpack.c.l.b16 %v3604
    %v3858 = vunpack.c.l.b16 %v3605
    %v3859 = vunpack.c.l.b16 %v3606
    %v3860 = vunpack.c.l.b16 %v3607
    %v3861 = vunpack.c.l.b16 %v3608
    %v3862 = vunpack.c.l.b16 %v3609
    %v3863 = vunpack.c.l.b16 %v3610
    %v3864 = vunpack.c.l.b16 %v3611
    %v3865 = vunpack.c.l.b16 %v3612
    %v3866 = vunpack.c.l.b16 %v3613
    %v3867 = vunpack.c.l.b16 %v3614
    %v3868 = vunpack.c.l.b16 %v3615
    %v3869 = vunpack.c.l.b16 %v3616
    %v3870 = vunpack.c.l.b16 %v3617
    %v3871 = vunpack.c.l.b16 %v3618
    %v3872 = vunpack.c.l.b16 %v3619
    %v3873 = vunpack.c.l.b16 %v3620
    %v3874 = vunpack.c.l.b16 %v3621
    %v3875 = vunpack.c.l.b16 %v3622
    %v3876 = vunpack.c.l.b16 %v3623
    %v3877 = vunpack.c.l.b16 %v3624
    %v3878 = vunpack.c.l.b16 %v3625
    %v3879 = vunpack.c.l.b16 %v3626
    %v3880 = vunpack.c.l.b16 %v3627
    %v3881 = vunpack.c.l.b16 %v3628
    %v3882 = vunpack.c.l.b16 %v3629
    %v3883 = vpack.c.b16 %v3852, %v3851
    %v3884 = vpack.c.b16 %v3854, %v3853
    %v3885 = vpack.c.b16 %v3856, %v3855
    %v3886 = vpack.c.b16 %v3858, %v3857
    %v3887 = vpack.c.b16 %v3860, %v3859
    %v3888 = vpack.c.b16 %v3862, %v3861
    %v3889 = vpack.c.b16 %v3864, %v3863
    %v3890 = vpack.c.b16 %v3866, %v3865
    %v3891 = vpack.c.b16 %v3868, %v3867
    %v3892 = vpack.c.b16 %v3870, %v3869
    %v3893 = vpack.c.b16 %v3872, %v3871
    %v3894 = vpack.c.b16 %v3874, %v3873
    %v3895 = vpack.c.b16 %v3876, %v3875
    %v3896 = vpack.c.b16 %v3878, %v3877
    %v3897 = vpack.c.b16 %v3880, %v3879
    %v3898 = vpack.c.b16 %v3882, %v3881
    %3915 = vmatprep.subr.bf16.mxu0 0
    %3916 = vmatpush1.bf16.msra.mxu0 %v3883
    %3917 = vmatprep.subr.bf16.mxu0 0
    %3918 = vmatpush1.bf16.msra.mxu0 %v3884
    %3919 = vmatprep.subr.bf16.mxu0 0
    %3920 = vmatpush1.bf16.msra.mxu0 %v3885
    %3921 = vmatprep.subr.bf16.mxu0 0
    %3922 = vmatpush1.bf16.msra.mxu0 %v3886
    %3923 = vmatprep.subr.bf16.mxu0 0
    %3924 = vmatpush1.bf16.msra.mxu0 %v3887
    %3925 = vmatprep.subr.bf16.mxu0 0
    %3926 = vmatpush1.bf16.msra.mxu0 %v3888
    %3927 = vmatprep.subr.bf16.mxu0 0
    %3928 = vmatpush1.bf16.msra.mxu0 %v3889
    %3929 = vmatprep.subr.bf16.mxu0 0
    %3930 = vmatpush1.bf16.msra.mxu0 %v3890
    %3931 = vmatprep.subr.bf16.mxu0 0
    %3932 = vmatpush1.bf16.msra.mxu0 %v3891
    %3933 = vmatprep.subr.bf16.mxu0 0
    %3934 = vmatpush1.bf16.msra.mxu0 %v3892
    %3935 = vmatprep.subr.bf16.mxu0 0
    %3936 = vmatpush1.bf16.msra.mxu0 %v3893
    %3937 = vmatprep.subr.bf16.mxu0 0
    %3938 = vmatpush1.bf16.msra.mxu0 %v3894
    %3939 = vmatprep.subr.bf16.mxu0 0
    %3940 = vmatpush1.bf16.msra.mxu0 %v3895
    %3941 = vmatprep.subr.bf16.mxu0 0
    %3942 = vmatpush1.bf16.msra.mxu0 %v3896
    %3943 = vmatprep.subr.bf16.mxu0 0
    %3944 = vmatpush1.bf16.msra.mxu0 %v3897
    %3945 = vmatprep.subr.bf16.mxu0 0
    %3946 = vmatpush1.bf16.msra.mxu0 %v3898
    %3947 = vmatprep.mubr.bf16.mxu0 %v3563
    %3948 = vmatmul.mubr.bf16.gmra.mrb[0].mxu0 %v3562
    %v3949 = vpop.f32.mrb[0].mxu0
    %v3950 = vadd.f32 %v3675, %v3949
    %v3951 = vpop.f32.mrb[0].mxu0
    %v3952 = vpop.f32.mrb[0].mxu0
    %v3953 = vpop.f32.mrb[0].mxu0
    %3954 = vdwg.mxu0
    %v3987 = vunpack.c.l.b16 %v3630
    %v3988 = vunpack.c.l.b16 %v3631
    %v3989 = vunpack.c.l.b16 %v3632
    %v3990 = vunpack.c.l.b16 %v3633
    %v3991 = vunpack.c.l.b16 %v3634
    %v3992 = vunpack.c.l.b16 %v3635
    %v3993 = vunpack.c.l.b16 %v3636
    %v3994 = vunpack.c.l.b16 %v3637
    %v3995 = vunpack.c.l.b16 %v3638
    %v3996 = vunpack.c.l.b16 %v3639
    %v3997 = vunpack.c.l.b16 %v3640
    %v3998 = vunpack.c.l.b16 %v3641
    %v3999 = vunpack.c.l.b16 %v3642
    %v4000 = vunpack.c.l.b16 %v3643
    %v4001 = vunpack.c.l.b16 %v3644
    %v4002 = vunpack.c.l.b16 %v3645
    %v4003 = vunpack.c.l.b16 %v3646
    %v4004 = vunpack.c.l.b16 %v3647
    %v4005 = vunpack.c.l.b16 %v3648
    %v4006 = vunpack.c.l.b16 %v3649
    %v4007 = vunpack.c.l.b16 %v3650
    %v4008 = vunpack.c.l.b16 %v3651
    %v4009 = vunpack.c.l.b16 %v3652
    %v4010 = vunpack.c.l.b16 %v3653
    %v4011 = vunpack.c.l.b16 %v3654
    %v4012 = vunpack.c.l.b16 %v3655
    %v4013 = vunpack.c.l.b16 %v3656
    %v4014 = vunpack.c.l.b16 %v3657
    %v4015 = vunpack.c.l.b16 %v3658
    %v4016 = vunpack.c.l.b16 %v3659
    %v4017 = vunpack.c.l.b16 %v3660
    %v4018 = vunpack.c.l.b16 %v3661
    %v4019 = vpack.c.b16 %v3988, %v3987
    %v4020 = vpack.c.b16 %v3990, %v3989
    %v4021 = vpack.c.b16 %v3992, %v3991
    %v4022 = vpack.c.b16 %v3994, %v3993
    %v4023 = vpack.c.b16 %v3996, %v3995
    %v4024 = vpack.c.b16 %v3998, %v3997
    %v4025 = vpack.c.b16 %v4000, %v3999
    %v4026 = vpack.c.b16 %v4002, %v4001
    %v4027 = vpack.c.b16 %v4004, %v4003
    %v4028 = vpack.c.b16 %v4006, %v4005
    %v4029 = vpack.c.b16 %v4008, %v4007
    %v4030 = vpack.c.b16 %v4010, %v4009
    %v4031 = vpack.c.b16 %v4012, %v4011
    %v4032 = vpack.c.b16 %v4014, %v4013
    %v4033 = vpack.c.b16 %v4016, %v4015
    %v4034 = vpack.c.b16 %v4018, %v4017
    %4051 = vmatprep.subr.bf16.mxu0 0
    %4052 = vmatpush1.bf16.msra.mxu0 %v4019
    %4053 = vmatprep.subr.bf16.mxu0 0
    %4054 = vmatpush1.bf16.msra.mxu0 %v4020
    %4055 = vmatprep.subr.bf16.mxu0 0
    %4056 = vmatpush1.bf16.msra.mxu0 %v4021
    %4057 = vmatprep.subr.bf16.mxu0 0
    %4058 = vmatpush1.bf16.msra.mxu0 %v4022
    %4059 = vmatprep.subr.bf16.mxu0 0
    %4060 = vmatpush1.bf16.msra.mxu0 %v4023
    %4061 = vmatprep.subr.bf16.mxu0 0
    %4062 = vmatpush1.bf16.msra.mxu0 %v4024
    %4063 = vmatprep.subr.bf16.mxu0 0
    %4064 = vmatpush1.bf16.msra.mxu0 %v4025
    %4065 = vmatprep.subr.bf16.mxu0 0
    %4066 = vmatpush1.bf16.msra.mxu0 %v4026
    %4067 = vmatprep.subr.bf16.mxu0 0
    %4068 = vmatpush1.bf16.msra.mxu0 %v4027
    %4069 = vmatprep.subr.bf16.mxu0 0
    %4070 = vmatpush1.bf16.msra.mxu0 %v4028
    %4071 = vmatprep.subr.bf16.mxu0 0
    %4072 = vmatpush1.bf16.msra.mxu0 %v4029
    %4073 = vmatprep.subr.bf16.mxu0 0
    %4074 = vmatpush1.bf16.msra.mxu0 %v4030
    %4075 = vmatprep.subr.bf16.mxu0 0
    %4076 = vmatpush1.bf16.msra.mxu0 %v4031
    %4077 = vmatprep.subr.bf16.mxu0 0
    %4078 = vmatpush1.bf16.msra.mxu0 %v4032
    %4079 = vmatprep.subr.bf16.mxu0 0
    %4080 = vmatpush1.bf16.msra.mxu0 %v4033
    %4081 = vmatprep.subr.bf16.mxu0 0
    %4082 = vmatpush1.bf16.msra.mxu0 %v4034
    %4083 = vmatprep.mubr.bf16.mxu0 %v3565
    %4084 = vmatmul.mubr.bf16.gmra.mrb[0].mxu0 %v3564
    %v4085 = vpop.f32.mrb[0].mxu0
    %v4086 = vadd.f32 %v3679, %v4085
    %v4087 = vpop.f32.mrb[0].mxu0
    %v4088 = vpop.f32.mrb[0].mxu0
    %v4089 = vpop.f32.mrb[0].mxu0
    %4090 = vdwg.mxu0
    %v4091 = vmax.f32 %v3814, 0.0
    %v4092 = vmax.f32 %v3950, 0.0
    %v4093 = vmax.f32 %v4086, 0.0
    %v4094 = vpack.c.bf16 %v4091, %v4091
    %v4095 = vpack.c.bf16 %v4092, %v4092
    %v4096 = vpack.c.bf16 %v4093, %v4093
    %v4097 = vld [vmem:[%s13] sm:$0xf]
    %v4098 = vld [vmem:[%s13 + $0x4] sm:$0xf]
    %v4099 = vld [vmem:[%s13 + $0x8] sm:$0xf]
    %v4100 = vld [vmem:[%s13 + $0xc] sm:$0xf]
    %v4101 = vld [vmem:[%s13 + $0x10] sm:$0xf]
    %v4102 = vld [vmem:[%s13 + $0x14] sm:$0xf]
    %v4103 = vld [vmem:[%s13 + $0x18] sm:$0xf]
    %v4104 = vld [vmem:[%s13 + $0x1c] sm:$0xf]
    %v4105 = vld [vmem:[%s13 + $0x20] sm:$0xf]
    %v4106 = vld [vmem:[%s13 + $0x24] sm:$0xf]
    %v4107 = vld [vmem:[%s13 + $0x28] sm:$0xf]
    %v4108 = vld [vmem:[%s13 + $0x2c] sm:$0xf]
    %v4109 = vld [vmem:[%s13 + $0x30] sm:$0xf]
    %v4110 = vld [vmem:[%s13 + $0x34] sm:$0xf]
    %v4111 = vld [vmem:[%s13 + $0x38] sm:$0xf]
    %v4112 = vld [vmem:[%s13 + $0x3c] sm:$0xf]
    %v4113 = vld [vmem:[%s13 + $0x40] sm:$0xf]
    %v4114 = vld [vmem:[%s13 + $0x44] sm:$0xf]
    %v4115 = vld [vmem:[%s13 + $0x48] sm:$0xf]
    %v4116 = vld [vmem:[%s13 + $0x4c] sm:$0xf]
    %v4117 = vld [vmem:[%s13 + $0x50] sm:$0xf]
    %v4118 = vld [vmem:[%s13 + $0x54] sm:$0xf]
    %v4119 = vld [vmem:[%s13 + $0x58] sm:$0xf]
    %v4120 = vld [vmem:[%s13 + $0x5c] sm:$0xf]
    %v4121 = vld [vmem:[%s13 + $0x60] sm:$0xf]
    %v4122 = vld [vmem:[%s13 + $0x64] sm:$0xf]
    %v4123 = vld [vmem:[%s13 + $0x68] sm:$0xf]
    %v4124 = vld [vmem:[%s13 + $0x6c] sm:$0xf]
    %v4125 = vld [vmem:[%s13 + $0x70] sm:$0xf]
    %v4126 = vld [vmem:[%s13 + $0x74] sm:$0xf]
    %v4127 = vld [vmem:[%s13 + $0x78] sm:$0xf]
    %v4128 = vld [vmem:[%s13 + $0x7c] sm:$0xf]
    %v4129 = vld [vmem:[%s13 + $0x80] sm:$0xf]
    %v4130 = vld [vmem:[%s13 + $0x84] sm:$0xf]
    %v4131 = vld [vmem:[%s13 + $0x88] sm:$0xf]
    %v4132 = vld [vmem:[%s13 + $0x8c] sm:$0xf]
    %v4133 = vld [vmem:[%s13 + $0x90] sm:$0xf]
    %v4134 = vld [vmem:[%s13 + $0x94] sm:$0xf]
    %v4135 = vld [vmem:[%s13 + $0x98] sm:$0xf]
    %v4136 = vld [vmem:[%s13 + $0x9c] sm:$0xf]
    %v4137 = vld [vmem:[%s13 + $0xa0] sm:$0xf]
    %v4138 = vld [vmem:[%s13 + $0xa4] sm:$0xf]
    %v4139 = vld [vmem:[%s13 + $0xa8] sm:$0xf]
    %v4140 = vld [vmem:[%s13 + $0xac] sm:$0xf]
    %v4141 = vld [vmem:[%s13 + $0xb0] sm:$0xf]
    %v4142 = vld [vmem:[%s13 + $0xb4] sm:$0xf]
    %v4143 = vld [vmem:[%s13 + $0xb8] sm:$0xf]
    %v4144 = vld [vmem:[%s13 + $0xbc] sm:$0xf]
    %v4145 = vld [vmem:[%s14] sm:$0x1]
    %v4146 = vld [vmem:[%s14 + $0x1] sm:$0x1]
    %v4147 = vld [vmem:[%s14 + $0x2] sm:$0x1]
    %v4151 = vlaneseq
    %v4152 = vshrl.u32 %v4151, 7
    %v4153 = vsub.s32 0, %v4152
    %v4154 = vrot.slane %v4145, %v4153
    %v4155 = vlaneseq
    %v4156 = vshrl.u32 %v4155, 7
    %v4157 = vsub.s32 0, %v4156
    %v4158 = vrot.slane %v4146, %v4157
    %v4159 = vlaneseq
    %v4160 = vshrl.u32 %v4159, 7
    %v4161 = vsub.s32 0, %v4160
    %v4162 = vrot.slane %v4147, %v4161
    %v4182 = vunpack.c.l.b16 %v4097
    %v4183 = vunpack.c.l.b16 %v4098
    %v4184 = vunpack.c.l.b16 %v4099
    %v4185 = vunpack.c.l.b16 %v4100
    %v4186 = vunpack.c.l.b16 %v4101
    %v4187 = vunpack.c.l.b16 %v4102
    %v4188 = vunpack.c.l.b16 %v4103
    %v4189 = vunpack.c.l.b16 %v4104
    %v4190 = vunpack.c.l.b16 %v4105
    %v4191 = vunpack.c.l.b16 %v4106
    %v4192 = vunpack.c.l.b16 %v4107
    %v4193 = vunpack.c.l.b16 %v4108
    %v4194 = vunpack.c.l.b16 %v4109
    %v4195 = vunpack.c.l.b16 %v4110
    %v4196 = vunpack.c.l.b16 %v4111
    %v4197 = vunpack.c.l.b16 %v4112
    %v4198 = vpack.c.b16 %v4183, %v4182
    %v4199 = vpack.c.b16 %v4185, %v4184
    %v4200 = vpack.c.b16 %v4187, %v4186
    %v4201 = vpack.c.b16 %v4189, %v4188
    %v4202 = vpack.c.b16 %v4191, %v4190
    %v4203 = vpack.c.b16 %v4193, %v4192
    %v4204 = vpack.c.b16 %v4195, %v4194
    %v4205 = vpack.c.b16 %v4197, %v4196
    %4214 = vmatprep.subr.bf16.mxu0 0
    %4215 = vmatpush1.bf16.msra.mxu0 %v4198
    %4216 = vmatprep.subr.bf16.mxu0 0
    %4217 = vmatpush1.bf16.msra.mxu0 %v4199
    %4218 = vmatprep.subr.bf16.mxu0 0
    %4219 = vmatpush1.bf16.msra.mxu0 %v4200
    %4220 = vmatprep.subr.bf16.mxu0 0
    %4221 = vmatpush1.bf16.msra.mxu0 %v4201
    %4222 = vmatprep.subr.bf16.mxu0 0
    %4223 = vmatpush1.bf16.msra.mxu0 %v4202
    %4224 = vmatprep.subr.bf16.mxu0 0
    %4225 = vmatpush1.bf16.msra.mxu0 %v4203
    %4226 = vmatprep.subr.bf16.mxu0 0
    %4227 = vmatpush1.bf16.msra.mxu0 %v4204
    %4228 = vmatprep.subr.bf16.mxu0 0
    %4229 = vmatpush1.bf16.msra.mxu0 %v4205
    %4230 = vmatprep.subr.bf16.mxu0 0
    %4231 = vmatpush1.bf16.msra.mxu0 0
    %4232 = vmatprep.subr.bf16.mxu0 0
    %4233 = vmatpush1.bf16.msra.mxu0 0
    %4234 = vmatprep.subr.bf16.mxu0 0
    %4235 = vmatpush1.bf16.msra.mxu0 0
    %4236 = vmatprep.subr.bf16.mxu0 0
    %4237 = vmatpush1.bf16.msra.mxu0 0
    %4238 = vmatprep.subr.bf16.mxu0 0
    %4239 = vmatpush1.bf16.msra.mxu0 0
    %4240 = vmatprep.subr.bf16.mxu0 0
    %4241 = vmatpush1.bf16.msra.mxu0 0
    %4242 = vmatprep.subr.bf16.mxu0 0
    %4243 = vmatpush1.bf16.msra.mxu0 0
    %4244 = vmatprep.subr.bf16.mxu0 0
    %4245 = vmatpush1.bf16.msra.mxu0 0
    %4246 = vmatprep.mubr.bf16.mxu0 0
    %4247 = vmatmul.mubr.bf16.gmra.mrb[0].mxu0 %v4094
    %v4248 = vpop.f32.mrb[0].mxu0
    %v4249 = vadd.f32 %v4154, %v4248
    %v4250 = vpop.f32.mrb[0].mxu0
    %v4251 = vpop.f32.mrb[0].mxu0
    %v4252 = vpop.f32.mrb[0].mxu0
    %4253 = vdwg.mxu0
    %v4270 = vunpack.c.l.b16 %v4113
    %v4271 = vunpack.c.l.b16 %v4114
    %v4272 = vunpack.c.l.b16 %v4115
    %v4273 = vunpack.c.l.b16 %v4116
    %v4274 = vunpack.c.l.b16 %v4117
    %v4275 = vunpack.c.l.b16 %v4118
    %v4276 = vunpack.c.l.b16 %v4119
    %v4277 = vunpack.c.l.b16 %v4120
    %v4278 = vunpack.c.l.b16 %v4121
    %v4279 = vunpack.c.l.b16 %v4122
    %v4280 = vunpack.c.l.b16 %v4123
    %v4281 = vunpack.c.l.b16 %v4124
    %v4282 = vunpack.c.l.b16 %v4125
    %v4283 = vunpack.c.l.b16 %v4126
    %v4284 = vunpack.c.l.b16 %v4127
    %v4285 = vunpack.c.l.b16 %v4128
    %v4286 = vpack.c.b16 %v4271, %v4270
    %v4287 = vpack.c.b16 %v4273, %v4272
    %v4288 = vpack.c.b16 %v4275, %v4274
    %v4289 = vpack.c.b16 %v4277, %v4276
    %v4290 = vpack.c.b16 %v4279, %v4278
    %v4291 = vpack.c.b16 %v4281, %v4280
    %v4292 = vpack.c.b16 %v4283, %v4282
    %v4293 = vpack.c.b16 %v4285, %v4284
    %4302 = vmatprep.subr.bf16.mxu0 0
    %4303 = vmatpush1.bf16.msra.mxu0 %v4286
    %4304 = vmatprep.subr.bf16.mxu0 0
    %4305 = vmatpush1.bf16.msra.mxu0 %v4287
    %4306 = vmatprep.subr.bf16.mxu0 0
    %4307 = vmatpush1.bf16.msra.mxu0 %v4288
    %4308 = vmatprep.subr.bf16.mxu0 0
    %4309 = vmatpush1.bf16.msra.mxu0 %v4289
    %4310 = vmatprep.subr.bf16.mxu0 0
    %4311 = vmatpush1.bf16.msra.mxu0 %v4290
    %4312 = vmatprep.subr.bf16.mxu0 0
    %4313 = vmatpush1.bf16.msra.mxu0 %v4291
    %4314 = vmatprep.subr.bf16.mxu0 0
    %4315 = vmatpush1.bf16.msra.mxu0 %v4292
    %4316 = vmatprep.subr.bf16.mxu0 0
    %4317 = vmatpush1.bf16.msra.mxu0 %v4293
    %4318 = vmatprep.subr.bf16.mxu0 0
    %4319 = vmatpush1.bf16.msra.mxu0 0
    %4320 = vmatprep.subr.bf16.mxu0 0
    %4321 = vmatpush1.bf16.msra.mxu0 0
    %4322 = vmatprep.subr.bf16.mxu0 0
    %4323 = vmatpush1.bf16.msra.mxu0 0
    %4324 = vmatprep.subr.bf16.mxu0 0
    %4325 = vmatpush1.bf16.msra.mxu0 0
    %4326 = vmatprep.subr.bf16.mxu0 0
    %4327 = vmatpush1.bf16.msra.mxu0 0
    %4328 = vmatprep.subr.bf16.mxu0 0
    %4329 = vmatpush1.bf16.msra.mxu0 0
    %4330 = vmatprep.subr.bf16.mxu0 0
    %4331 = vmatpush1.bf16.msra.mxu0 0
    %4332 = vmatprep.subr.bf16.mxu0 0
    %4333 = vmatpush1.bf16.msra.mxu0 0
    %4334 = vmatprep.mubr.bf16.mxu0 0
    %4335 = vmatmul.mubr.bf16.gmra.mrb[0].mxu0 %v4095
    %v4336 = vpop.f32.mrb[0].mxu0
    %v4337 = vadd.f32 %v4158, %v4336
    %v4338 = vpop.f32.mrb[0].mxu0
    %v4339 = vpop.f32.mrb[0].mxu0
    %v4340 = vpop.f32.mrb[0].mxu0
    %4341 = vdwg.mxu0
    %v4358 = vunpack.c.l.b16 %v4129
    %v4359 = vunpack.c.l.b16 %v4130
    %v4360 = vunpack.c.l.b16 %v4131
    %v4361 = vunpack.c.l.b16 %v4132
    %v4362 = vunpack.c.l.b16 %v4133
    %v4363 = vunpack.c.l.b16 %v4134
    %v4364 = vunpack.c.l.b16 %v4135
    %v4365 = vunpack.c.l.b16 %v4136
    %v4366 = vunpack.c.l.b16 %v4137
    %v4367 = vunpack.c.l.b16 %v4138
    %v4368 = vunpack.c.l.b16 %v4139
    %v4369 = vunpack.c.l.b16 %v4140
    %v4370 = vunpack.c.l.b16 %v4141
    %v4371 = vunpack.c.l.b16 %v4142
    %v4372 = vunpack.c.l.b16 %v4143
    %v4373 = vunpack.c.l.b16 %v4144
    %v4374 = vpack.c.b16 %v4359, %v4358
    %v4375 = vpack.c.b16 %v4361, %v4360
    %v4376 = vpack.c.b16 %v4363, %v4362
    %v4377 = vpack.c.b16 %v4365, %v4364
    %v4378 = vpack.c.b16 %v4367, %v4366
    %v4379 = vpack.c.b16 %v4369, %v4368
    %v4380 = vpack.c.b16 %v4371, %v4370
    %v4381 = vpack.c.b16 %v4373, %v4372
    %4390 = vmatprep.subr.bf16.mxu0 0
    %4391 = vmatpush1.bf16.msra.mxu0 %v4374
    %4392 = vmatprep.subr.bf16.mxu0 0
    %4393 = vmatpush1.bf16.msra.mxu0 %v4375
    %4394 = vmatprep.subr.bf16.mxu0 0
    %4395 = vmatpush1.bf16.msra.mxu0 %v4376
    %4396 = vmatprep.subr.bf16.mxu0 0
    %4397 = vmatpush1.bf16.msra.mxu0 %v4377
    %4398 = vmatprep.subr.bf16.mxu0 0
    %4399 = vmatpush1.bf16.msra.mxu0 %v4378
    %4400 = vmatprep.subr.bf16.mxu0 0
    %4401 = vmatpush1.bf16.msra.mxu0 %v4379
    %4402 = vmatprep.subr.bf16.mxu0 0
    %4403 = vmatpush1.bf16.msra.mxu0 %v4380
    %4404 = vmatprep.subr.bf16.mxu0 0
    %4405 = vmatpush1.bf16.msra.mxu0 %v4381
    %4406 = vmatprep.subr.bf16.mxu0 0
    %4407 = vmatpush1.bf16.msra.mxu0 0
    %4408 = vmatprep.subr.bf16.mxu0 0
    %4409 = vmatpush1.bf16.msra.mxu0 0
    %4410 = vmatprep.subr.bf16.mxu0 0
    %4411 = vmatpush1.bf16.msra.mxu0 0
    %4412 = vmatprep.subr.bf16.mxu0 0
    %4413 = vmatpush1.bf16.msra.mxu0 0
    %4414 = vmatprep.subr.bf16.mxu0 0
    %4415 = vmatpush1.bf16.msra.mxu0 0
    %4416 = vmatprep.subr.bf16.mxu0 0
    %4417 = vmatpush1.bf16.msra.mxu0 0
    %4418 = vmatprep.subr.bf16.mxu0 0
    %4419 = vmatpush1.bf16.msra.mxu0 0
    %4420 = vmatprep.subr.bf16.mxu0 0
    %4421 = vmatpush1.bf16.msra.mxu0 0
    %4422 = vmatprep.mubr.bf16.mxu0 0
    %4423 = vmatmul.mubr.bf16.gmra.mrb[0].mxu0 %v4096
    %v4424 = vpop.f32.mrb[0].mxu0
    %v4425 = vadd.f32 %v4162, %v4424
    %v4426 = vpop.f32.mrb[0].mxu0
    %v4427 = vpop.f32.mrb[0].mxu0
    %v4428 = vpop.f32.mrb[0].mxu0
    %4429 = vdwg.mxu0
    %4433 = vrot.lane.b32.xlu0 %v4249, 1
    %v4434 = vpop.permute.xlu0 %4433
    %4435 = vrot.lane.b32.xlu0 %v4337, 1
    %v4436 = vpop.permute.xlu0 %4435
    %4437 = vrot.lane.b32.xlu0 %v4425, 1
    %v4438 = vpop.permute.xlu0 %4437
    %vm4442 = vcmp.gt.f32.partialorder %v4249, %v4434
    %vm4443 = vcmp.gt.f32.partialorder %v4337, %v4436
    %vm4444 = vcmp.gt.f32.partialorder %v4425, %v4438
    %v4445 = vsel %vm4442, 1.0, 0.0
    %v4446 = vsel %vm4443, 1.0, 0.0
    %v4447 = vsel %vm4444, 1.0, 0.0
    %vm4448 = vcmask 9224
    %v4449 = vsel %vm4448, %v4445, 0.0
    %v4450 = vsel %vm4448, %v4446, 0.0
    %v4451 = vadd.f32 %v4449, %v4450
    %v4452 = vsel %vm4448, %v4447, 0.0
    %v4453 = vadd.f32 %v4451, %v4452
    %v4454 = vmul.f32 %v4453, 0.33333334
    %4456 = vrot.lane.b32.xlu0 %v4454, 127
    %v4457 = vpop.permute.xlu0 %4456
    %vm4459 = vcmask 1024
    %4460 = vst.msk [vmem:[%s16] sm:$0x3] %vm4459, %v4457
    // Predicated region
    $region106: #{dla_protected_forward.1} parent=1 // pred_check
      _
    $region107: #{dla_protected_forward.1} parent=1 // pred_check_branch
      %4462 = sbr.rel (0) target = $region109
    $region108: #{dla_protected_forward.1} parent=1 // pred_region
      %s4464 = ssub.s32 32, 32
      %4465 = vsyncadd [#allocation4], %s4464
      %s4467 = sshll.u32 [#allocation20], 4
      %s4468 = int_to_ptr.vmem [resolvable:$true] %s4467
      %4470 = dma.vmem_to_hbm [thread:$0]  %s4468, 32, %s15, [#allocation4]
    $region109: #{dla_protected_forward.1} parent=1 // pred_fallthru
      _
    // Predicated region
    $region110: #{dla_protected_forward.1} parent=1 // pred_check
      _
    $region111: #{dla_protected_forward.1} parent=1 // pred_check_branch
      %4472 = sbr.rel (0) target = $region113
    $region112: #{dla_protected_forward.1} parent=1 // pred_region
      _
    $region113: #{dla_protected_forward.1} parent=1 // pred_fallthru
      _
    // Predicated region
    $region114: #{dla_protected_forward.1} parent=1 // pred_check
      _
    $region115: #{dla_protected_forward.1} parent=1 // pred_check_branch
      %4474 = sbr.rel (0) target = $region117
    $region116: #{dla_protected_forward.1} parent=1 // pred_region
      %4475 = dma.done [#allocation4], 32
    $region117: #{dla_protected_forward.1} parent=1 // pred_fallthru
      _
    // Predicated region
    $region118: #{dla_protected_forward.1} parent=1 // pred_check
      _
    $region119: #{dla_protected_forward.1} parent=1 // pred_check_branch
      %4477 = sbr.rel (0) target = $region121
    $region120: #{dla_protected_forward.1} parent=1 // pred_region
      _
    $region121: #{dla_protected_forward.1} parent=1 // pred_fallthru
      _
    %4478 = vsyncpa [#allocation3], 1
    %4479 = vsyncpa [#allocation6], 1
    %4480 = vsyncpa [#allocation9], 1
    %4481 = vsyncpa [#allocation12], 1
    %4482 = vsyncpa [#allocation15], 1
    %4483 = vsyncpa [#allocation18], 1
    %4484 = vsyncpa [#allocation4], 1

</llo_original>
